<compile_context>
chip_gen: v6e
topology: v6e:2x2x1
jax: 0.10.0
libtpu: 0.0.40
codegen_flags: <defaults>
</compile_context>

<pallas_src>
import functools
import math

import numpy as np
import jax
import jax.numpy as jnp
from jax import lax
from jax.experimental import pallas as pl
from jax.experimental.pallas import tpu as pltpu


_TM_MAX = 256          # row tile  = output channels
_TN_MAX = 2048         # lane tile = N*H*W columns (review: raise well above 512)
_BN_EPS = 1e-5
_LEAKY_SLOPE = 0.2


def _round_up(x, m):
    return (x + m - 1) // m * m


def _vmem_limit_bytes():
    """Generation-aware scoped-VMEM limit (~half of physical capacity)."""
    cap = 128 * 1024 * 1024
    try:
        cap = int(pltpu.get_tpu_info().vmem_capacity_bytes)
    except Exception:
        pass
    if cap <= 0:
        cap = 128 * 1024 * 1024
    # v7x (64 MiB physical) -> 32 MiB; v5e/v6e (128 MiB) -> 64 MiB.
    return max(32 * 1024 * 1024, min(cap // 2, 96 * 1024 * 1024))


_VMEM_LIMIT = _vmem_limit_bytes()


def _pick_m_tiles(cout):
    """Row (Cout) padding + tile.  Rounds to 16 for bf16 sublane packing and
    prefers >=2 row tiles so the 'parallel' grid axis can feed both v7x cores."""
    mp = _round_up(cout, 16)
    if mp > _TM_MAX:
        tm = _TM_MAX
        mp = _round_up(mp, tm)
    elif mp >= 32 and mp % 32 == 0:
        tm = mp // 2
    else:
        tm = mp
    return mp, tm


def _pick_col_tiles(n_cols):
    """Column (N*H*W) padding + lane tile (128-aligned, <= _TN_MAX)."""
    lp = _round_up(n_cols, 128)
    if lp <= _TN_MAX:
        return lp, lp
    return _round_up(n_cols, _TN_MAX), _TN_MAX


# ----------------------------------------------------------------------------
# Conv kernel: direct (no im2col) stride-1 convolution as KH*KW shifted
# matmuls over one DMA'd lane window, with BN/Tanh fused into the epilogue.
# ----------------------------------------------------------------------------
def _conv_kernel(*refs, mode, tap_offs, tn, tn_ext, n_j, n_valid, prefetch):
    if mode == "tanh":
        w_ref, x_hbm = refs[0], refs[1]
        mask_ref = None
        rest = refs[2:]
    else:
        w_ref, x_hbm, mask_ref = refs[0], refs[1], refs[2]
        rest = refs[3:]
    if mode == "bn_stats":
        y_ref, s_ref, q_ref, buf, sem, acc_ref = rest
    else:
        y_ref, buf, sem, acc_ref = rest

    j = pl.program_id(1)

    def window_copy(jj, slot):
        # One lane window [jj*tn, jj*tn + tn_ext) of the flattened padded
        # activation; tn_ext = tn + max tap offset so every tap slice is local.
        return pltpu.make_async_copy(
            x_hbm.at[:, pl.ds(jj * tn, tn_ext)], buf.at[slot], sem.at[slot])

    if prefetch:
        # Column axis is 'arbitrary' (runs sequentially per core), so the next
        # column window can be prefetched while the current one is consumed.
        slot = j % 2

        @pl.when(j == 0)
        def _prime():
            window_copy(j, slot).start()

        window_copy(j, slot).wait()

        @pl.when(j + 1 < n_j)
        def _prefetch_next():
            window_copy(j + 1, 1 - slot).start()
    else:
        # Fully parallel grid (both axes splittable across cores): each grid
        # step is self-contained.
        slot = 0
        window_copy(j, 0).start()
        window_copy(j, 0).wait()

    win = buf[slot]                                    # (Cin_p, tn_ext) bf16
    # No K grid axis -> no pl.when init/finalize; tap reduction lives here.
    for t, off in enumerate(tap_offs):
        part = jnp.dot(w_ref[t], win[:, off:off + tn],
                       preferred_element_type=jnp.float32)
        if t == 0:
            acc_ref[...] = part
        else:
            acc_ref[...] += part

    acc = acc_ref[...]
    if mode == "tanh":
        y_ref[...] = jnp.tanh(acc).astype(y_ref.dtype)
    elif mode == "bn_fused":
        # Whole N*H*W extent sits in this single lane tile: exact masked
        # BatchNorm (centered variance) + LeakyReLU fused into the epilogue.
        m = mask_ref[...]
        inv_n = 1.0 / n_valid
        mean = jnp.sum(acc * m, axis=1, keepdims=True) * inv_n
        var = jnp.sum(jnp.square(acc - mean) * m, axis=1, keepdims=True) * inv_n
        y = (acc - mean) * lax.rsqrt(var + _BN_EPS)
        y = jnp.where(y >= 0, y, _LEAKY_SLOPE * y)
        y_ref[...] = y.astype(y_ref.dtype)
    else:  # "bn_stats": per-tile partial sums; normalize is fused downstream.
        m = mask_ref[...]
        am = acc * m
        s_ref[...] = jnp.sum(am, axis=1, keepdims=True)[None]
        q_ref[...] = jnp.sum(am * acc, axis=1, keepdims=True)[None]
        y_ref[...] = acc.astype(y_ref.dtype)


def _conv_pallas(w_taps, xf, mask, *, mode, tm, tn, tn_ext, n_j, tap_offs,
                 n_valid):
    """w_taps: (T, Mp, Cin_p) bf16; xf: (Cin_p, Lx) bf16 flattened padded
    activation (stays in HBM); mask: (1, n_j*tn) f32 valid-column mask."""
    T, Mp, Cin_p = w_taps.shape
    n_i = Mp // tm
    Lcols = n_j * tn
    prefetch = mode != "tanh"
    nbuf = 2 if prefetch else 1
    if mode == "bn_fused":
        assert n_j == 1, "fused BN epilogue needs the whole column extent in one tile"

    kernel = functools.partial(_conv_kernel, mode=mode, tap_offs=tap_offs,
                               tn=tn, tn_ext=tn_ext, n_j=n_j,
                               n_valid=n_valid, prefetch=prefetch)

    in_specs = [pl.BlockSpec((T, tm, Cin_p), lambda i, j: (0, i, 0)),
                pl.BlockSpec(memory_space=pl.ANY)]        # manual window DMA
    inputs = [w_taps, xf]
    if mode != "tanh":
        in_specs.append(pl.BlockSpec((1, tn), lambda i, j: (0, j)))
        inputs.append(mask)

    y_dtype = jnp.float32 if mode == "tanh" else jnp.bfloat16
    y_shape = jax.ShapeDtypeStruct((Mp, Lcols), y_dtype)
    y_spec = pl.BlockSpec((tm, tn), lambda i, j: (i, j))
    if mode == "bn_stats":
        stat_shape = jax.ShapeDtypeStruct((n_j, Mp, 1), jnp.float32)
        stat_spec = pl.BlockSpec((1, tm, 1), lambda i, j: (j, i, 0))
        out_shape = (y_shape, stat_shape, stat_shape)
        out_specs = (y_spec, stat_spec, stat_spec)
    else:
        out_shape = y_shape
        out_specs = y_spec

    flops = 2 * Mp * Lcols * Cin_p * T
    bytes_accessed = (n_i * Cin_p * (Lcols + tn_ext) * 2 + w_taps.size * 2
                      + Mp * Lcols * (4 if mode == "tanh" else 2))

    return pl.pallas_call(
        kernel,
        out_shape=out_shape,
        grid=(n_i, n_j),
        in_specs=in_specs,
        out_specs=out_specs,
        scratch_shapes=[pltpu.VMEM((nbuf, Cin_p, tn_ext), jnp.bfloat16),
                        pltpu.SemaphoreType.DMA((nbuf,)),
                        pltpu.VMEM((tm, tn), jnp.float32)],
        compiler_params=pltpu.CompilerParams(
            dimension_semantics=(("parallel", "arbitrary") if prefetch
                                 else ("parallel", "parallel")),
            vmem_limit_bytes=_VMEM_LIMIT),
        cost_estimate=pl.CostEstimate(
            flops=flops,
            transcendentals=(Mp * Lcols if mode == "tanh" else 0),
            bytes_accessed=bytes_accessed),
    )(*inputs)


# ----------------------------------------------------------------------------
# Glue: latent staging, BN-apply + LeakyReLU + 2x bilinear upsample emitted
# directly into the next conv's zero-padded flattened bf16 layout.
# ----------------------------------------------------------------------------
@functools.lru_cache(maxsize=None)
def _up_pad_taps(n_in, pad):
    """2x bilinear (align_corners=True) gather taps with `pad` zero-weight
    border positions on each side (result lands in the next conv's padded grid)."""
    n_out = 2 * n_in
    size = n_out + 2 * pad
    i0 = np.zeros(size, np.int32)
    i1 = np.zeros(size, np.int32)
    w0 = np.zeros(size, np.float32)
    w1 = np.zeros(size, np.float32)
    for o in range(n_out):
        src = 0.0 if n_in == 1 else o * (n_in - 1) / (n_out - 1)
        f0 = int(np.floor(src))
        f1 = min(f0 + 1, n_in - 1)
        i0[pad + o] = f0
        i1[pad + o] = f1
        w0[pad + o] = 1.0 - (src - f0)
        w1[pad + o] = src - f0
    return i0, i1, w0, w1


def _prep_latent(x_nchw, cin_p, pad, lx):
    """(N, nz, 1, 1) latent -> (cin_p, lx) bf16 flattened padded layout."""
    nz = x_nchw.shape[1]
    xt = jnp.transpose(x_nchw, (1, 0, 2, 3))
    xt = jnp.pad(xt, ((0, cin_p - nz), (0, 0), (pad, pad), (pad, pad)))
    xf = xt.reshape(cin_p, -1).astype(jnp.bfloat16)
    return jnp.pad(xf, ((0, 0), (0, lx - xf.shape[1])))


def _bn_leaky_up_pad(y, mean, var, fused, N, Hp, Wp, Ho, Wo, pad_next, lx_next):
    """BN-apply (unless already fused in-kernel) + LeakyReLU + 2x bilinear
    upsample (align_corners=True), emitted directly into the next conv's
    zero-padded flattened bf16 layout as one fused XLA gather/lerp pass."""
    # TODO(synk): fold this gather into the next conv's window DMA so the
    # 4x-larger upsampled activation never round-trips HBM at all.
    c_p = y.shape[0]
    a = y[:, :N * Hp * Wp].astype(jnp.float32).reshape(c_p, N, Hp, Wp)
    a = a[:, :, :Ho, :Wo]
    if not fused:
        a = (a - mean.reshape(c_p, 1, 1, 1)) * lax.rsqrt(
            var.reshape(c_p, 1, 1, 1) + _BN_EPS)
        a = jnp.where(a >= 0, a, _LEAKY_SLOPE * a)
    hi0, hi1, hw0, hw1 = _up_pad_taps(Ho, pad_next)
    wi0, wi1, ww0, ww1 = _up_pad_taps(Wo, pad_next)
    ah = (a[:, :, hi0, :] * hw0[None, None, :, None]
          + a[:, :, hi1, :] * hw1[None, None, :, None])
    out = (ah[:, :, :, wi0] * ww0[None, None, None, :]
           + ah[:, :, :, wi1] * ww1[None, None, None, :])
    out = out.astype(jnp.bfloat16).reshape(c_p, -1)
    return jnp.pad(out, ((0, 0), (0, lx_next - out.shape[1])))


# ----------------------------------------------------------------------------
# DCGAN_G_ResizedConv: parameters + forward
# ----------------------------------------------------------------------------
def init_params(key, sz, nz, nc, ngf):
    """Conv weights ~ N(0, 0.02), matching the module's init loop."""
    cur_ngf = ngf * sz // 8
    shapes = [(cur_ngf, nz, 4, 4)]
    for _ in range(int(math.log2(sz)) - 3):
        shapes.append((cur_ngf // 2, cur_ngf, 3, 3))
        cur_ngf //= 2
    shapes.append((nc, ngf, 3, 3))
    keys = jax.random.split(key, len(shapes))
    return [0.02 * jax.random.normal(k, s, jnp.float32)
            for k, s in zip(keys, shapes)]


@jax.jit
def dcgan_g_resizedconv_forward(x_nchw, params):
    """x_nchw: (N, nz, 1, 1) latent -> (N, nc, sz, sz) image in (-1, 1)."""
    N = x_nchw.shape[0]
    n_layers = len(params)
    H = W = 1
    carry = None
    y = None

    for li, w in enumerate(params):
        Cout, Cin, K, _ = w.shape
        pad = 3 if li == 0 else 1
        last = li == n_layers - 1

        Hp, Wp = H + 2 * pad, W + 2 * pad
        Ho, Wo = Hp - K + 1, Wp - K + 1
        L = N * Hp * Wp                    # column extent (flattened padded grid)
        n_valid = N * Ho * Wo
        tap_offs = tuple(kh * Wp + kw for kh in range(K) for kw in range(K))

        Mp, tm = _pick_m_tiles(Cout)
        Lcols, tn = _pick_col_tiles(L)
        n_j = Lcols // tn
        ext = _round_up((K - 1) * Wp + (K - 1), 128)
        tn_ext = tn + ext
        Lx = Lcols + ext                   # input columns incl. window slack

        # ---- stage this layer's input activation (Cin_p, Lx) bf16 ----------
        if li == 0:
            Cin_p = _round_up(Cin, 16)
            xf = _prep_latent(x_nchw, Cin_p, pad, Lx)
        else:
            (py, pmean, pvar, pfused, pHp, pWp, pHo, pWo, pMp) = carry
            Cin_p = pMp                    # channel rows carried padded/zeroed
            xf = _bn_leaky_up_pad(py, pmean, pvar, pfused, N,
                                  pHp, pWp, pHo, pWo, pad, Lx)

        # ---- weights as (T, Mp, Cin_p) bf16 (tiny) --------------------------
        wt = jnp.transpose(w, (2, 3, 0, 1)).reshape(K * K, Cout, Cin)
        wt = jnp.pad(wt, ((0, 0), (0, Mp - Cout), (0, Cin_p - Cin)))
        wt = wt.astype(jnp.bfloat16)

        # ---- valid-column mask (BN layers only) -----------------------------
        if last:
            mode, mask = "tanh", None
        else:
            mode = "bn_fused" if n_j == 1 else "bn_stats"
            c = jnp.arange(Lcols, dtype=jnp.int32)
            r = c % (Hp * Wp)
            valid = (c < L) & ((r // Wp) < Ho) & ((r % Wp) < Wo)
            mask = valid.astype(jnp.float32)[None, :]

        outs = _conv_pallas(wt, xf, mask, mode=mode, tm=tm, tn=tn,
                            tn_ext=tn_ext, n_j=n_j, tap_offs=tap_offs,
                            n_valid=n_valid)

        if mode == "bn_fused":
            y, mean, var, fused = outs, None, None, True
        elif mode == "bn_stats":
            y, s, q = outs
            mean = jnp.sum(s, axis=0) / n_valid
            # E[x^2] - mean^2 on f32 partial sums (single pass; documented
            # precision choice -- fused path uses the centered form).
            var = jnp.maximum(jnp.sum(q, axis=0) / n_valid - mean * mean, 0.0)
            fused = False
        else:
            y, mean, var, fused = outs, None, None, True

        carry = (y, mean, var, fused, Hp, Wp, Ho, Wo, Mp)
        H, W = 2 * Ho, 2 * Wo              # spatial size after the upsample

    # Final layer: f32 (Mp, Lcols) on the padded grid -> (N, nc, sz, sz).
    # TODO(synk): write the last layer directly in NCHW via out_specs to drop
    # this (tiny) exit slice/transpose.
    img = y[:, :L].reshape(Mp, N, Hp, Wp)[:Cout, :, :Ho, :Wo]
    return jnp.transpose(img, (1, 0, 2, 3))


# ----------------------------------------------------------------------------
# Pure-JAX reference (XLA conv / BN / tanh) for correctness checking.
# ----------------------------------------------------------------------------
def _reference_upsample2x(x):
    h0, h1, hw0, hw1 = _up_pad_taps(x.shape[2], 0)
    w0, w1, ww0, ww1 = _up_pad_taps(x.shape[3], 0)
    xh = (x[:, :, h0, :] * hw0[None, None, :, None]
          + x[:, :, h1, :] * hw1[None, None, :, None])
    return (xh[:, :, :, w0] * ww0[None, None, None, :]
            + xh[:, :, :, w1] * ww1[None, None, None, :])


@jax.jit
def _reference_forward(x_nchw, params):
    dn = ("NCHW", "OIHW", "NCHW")
    out = x_nchw
    n_layers = len(params)
    for li, w in enumerate(params):
        pad = 3 if li == 0 else 1
        out = lax.conv_general_dilated(out, w, (1, 1), [(pad, pad), (pad, pad)],
                                       dimension_numbers=dn)
        if li < n_layers - 1:
            mean = jnp.mean(out, axis=(0, 2, 3), keepdims=True)
            var = jnp.mean(jnp.square(out - mean), axis=(0, 2, 3), keepdims=True)
            out = (out - mean) * lax.rsqrt(var + _BN_EPS)
            out = jnp.where(out >= 0, out, _LEAKY_SLOPE * out)
            out = _reference_upsample2x(out)
        else:
            out = jnp.tanh(out)
    return out


def _run_case(key, sz, nz, nc, ngf, batch, atol):
    k_x, k_p = jax.random.split(key)
    x = jax.random.normal(k_x, (batch, nz, 1, 1), jnp.float32)
    params = init_params(k_p, sz, nz, nc, ngf)
    out = jax.block_until_ready(dcgan_g_resizedconv_forward(x, params))
    assert out.shape == (batch, nc, sz, sz), out.shape
    assert bool(jnp.all(jnp.isfinite(out)))
    assert bool(jnp.all(jnp.abs(out) <= 1.0 + 1e-6))      # tanh output range
    ref = jax.block_until_ready(_reference_forward(x, params))
    err = float(jnp.max(jnp.abs(out - ref)))
    # bf16 MXU operands / bf16 stored activations vs f32 reference: intentional
    # precision trade for a GAN forward pass.
    assert err < atol, f"max |pallas - reference| = {err}"


if __name__ == "__main__":
    key = jax.random.PRNGKey(0)
    k1, k2 = jax.random.split(key)
    # Small config: every layer single column tile -> fused-BN epilogue path.
    _run_case(k1, sz=16, nz=8, nc=3, ngf=8, batch=2, atol=0.1)
    # Larger config: exercises multi row-tile grids, the multi-tile partial
    # BN-stats path and the multi-tile tanh output layer.
    _run_case(k2, sz=32, nz=16, nc=3, ngf=16, batch=8, atol=0.1)
    print("KERNEL_OK")
</pallas_src>

<mosaic_0001>
module attributes {stable_mosaic.version = 11 : i64} {
  func.func @_conv_kernel(%arg0: i32, %arg1: i32, %arg2: memref<16x16x16xbf16, #tpu.memory_space<vmem>>, %arg3: memref<16x256xbf16, #tpu.memory_space<any>>, %arg4: memref<1x128xf32, #tpu.memory_space<vmem>>, %arg5: memref<16x128xbf16, #tpu.memory_space<vmem>>, %arg6: memref<2x16x256xbf16, #tpu.memory_space<vmem>>, %arg7: memref<2x!tpu.dma_semaphore, #tpu.memory_space<semaphore_mem>>, %arg8: memref<16x128xf32, #tpu.memory_space<vmem>>) attributes {dimension_semantics = [#tpu.dimension_semantics<parallel>, #tpu.dimension_semantics<arbitrary>], iteration_bounds = array<i64: 1, 1>, scalar_prefetch = 0 : i64, scratch_operands = 3 : i64, tpu.core_type = #tpu.core_type<tc>, window_params = [{transform_indices = @transform_0, window_bounds = array<i64: 16, 16, 16>}, {}, {transform_indices = @transform_2, window_bounds = array<i64: 1, 128>}, {transform_indices = @transform_3, window_bounds = array<i64: 16, 128>}]} {
    %c2_i32 = arith.constant 2 : i32
    %c0_i32 = arith.constant 0 : i32
    %0 = arith.cmpi eq, %c2_i32, %c0_i32 : i32
    %c1_i32 = arith.constant 1 : i32
    %1 = arith.select %0, %c1_i32, %c2_i32 : i32
    %2 = arith.remsi %arg1, %1 : i32
    %c0_i32_0 = arith.constant 0 : i32
    %3 = arith.cmpi ne, %2, %c0_i32_0 : i32
    %c0_i32_1 = arith.constant 0 : i32
    %4 = arith.cmpi slt, %2, %c0_i32_1 : i32
    %c0_i32_2 = arith.constant 0 : i32
    %5 = arith.cmpi slt, %1, %c0_i32_2 : i32
    %6 = arith.xori %4, %5 : i1
    %7 = arith.andi %6, %3 : i1
    %8 = arith.addi %2, %1 : i32
    %9 = arith.select %7, %8, %2 : i32
    %c0_i32_3 = arith.constant 0 : i32
    %10 = arith.cmpi eq, %arg1, %c0_i32_3 : i32
    %11 = arith.extui %10 : i1 to i32
    %c0_i32_4 = arith.constant 0 : i32
    %12 = arith.cmpi ne, %11, %c0_i32_4 : i32
    scf.if %12 {
      %c128_i32_135 = arith.constant 128 : i32
      %167 = arith.muli %arg1, %c128_i32_135 : i32
      %c0_i32_136 = arith.constant 0 : i32
      %168 = tpu.memref_slice %arg3[%c0_i32_136, %167] : memref<16x256xbf16, #tpu.memory_space<any>> -> memref<16x256xbf16, #tpu.memory_space<any>>
      %c0_i32_137 = arith.constant 0 : i32
      %c0_i32_138 = arith.constant 0 : i32
      %169 = tpu.memref_slice %arg6[%9, %c0_i32_137, %c0_i32_138] : memref<2x16x256xbf16, #tpu.memory_space<vmem>> -> memref<1x16x256xbf16, #tpu.memory_space<vmem>>
      %170 = tpu.memref_squeeze %169 : memref<1x16x256xbf16, #tpu.memory_space<vmem>> -> memref<16x256xbf16, #tpu.memory_space<vmem>>
      %171 = tpu.memref_slice %arg7[%9] : memref<2x!tpu.dma_semaphore, #tpu.memory_space<semaphore_mem>> -> memref<1x!tpu.dma_semaphore, #tpu.memory_space<semaphore_mem>>
      %172 = tpu.memref_squeeze %171 : memref<1x!tpu.dma_semaphore, #tpu.memory_space<semaphore_mem>> -> memref<!tpu.dma_semaphore, #tpu.memory_space<semaphore_mem>>
      tpu.enqueue_dma source(%168 : memref<16x256xbf16, #tpu.memory_space<any>>) target(%170 : memref<16x256xbf16, #tpu.memory_space<vmem>>) target_semaphore(%172 : memref<!tpu.dma_semaphore, #tpu.memory_space<semaphore_mem>>)
    } else {
    }
    %c128_i32 = arith.constant 128 : i32
    %13 = arith.muli %arg1, %c128_i32 : i32
    %c0_i32_5 = arith.constant 0 : i32
    %14 = tpu.memref_slice %arg3[%c0_i32_5, %13] : memref<16x256xbf16, #tpu.memory_space<any>> -> memref<16x256xbf16, #tpu.memory_space<any>>
    %c0_i32_6 = arith.constant 0 : i32
    %c0_i32_7 = arith.constant 0 : i32
    %15 = tpu.memref_slice %arg6[%9, %c0_i32_6, %c0_i32_7] : memref<2x16x256xbf16, #tpu.memory_space<vmem>> -> memref<1x16x256xbf16, #tpu.memory_space<vmem>>
    %16 = tpu.memref_squeeze %15 : memref<1x16x256xbf16, #tpu.memory_space<vmem>> -> memref<16x256xbf16, #tpu.memory_space<vmem>>
    %17 = tpu.memref_slice %arg7[%9] : memref<2x!tpu.dma_semaphore, #tpu.memory_space<semaphore_mem>> -> memref<1x!tpu.dma_semaphore, #tpu.memory_space<semaphore_mem>>
    %18 = tpu.memref_squeeze %17 : memref<1x!tpu.dma_semaphore, #tpu.memory_space<semaphore_mem>> -> memref<!tpu.dma_semaphore, #tpu.memory_space<semaphore_mem>>
    tpu.wait_dma2 semaphore(%18 : memref<!tpu.dma_semaphore, #tpu.memory_space<semaphore_mem>>) src(%14 : memref<16x256xbf16, #tpu.memory_space<any>>) dst(%16 : memref<16x256xbf16, #tpu.memory_space<vmem>>)
    %c1_i32_8 = arith.constant 1 : i32
    %19 = arith.addi %arg1, %c1_i32_8 : i32
    %c1_i32_9 = arith.constant 1 : i32
    %20 = arith.cmpi slt, %19, %c1_i32_9 : i32
    %21 = arith.extui %20 : i1 to i32
    %c0_i32_10 = arith.constant 0 : i32
    %22 = arith.cmpi ne, %21, %c0_i32_10 : i32
    scf.if %22 {
      %c1_i32_135 = arith.constant 1 : i32
      %167 = arith.addi %arg1, %c1_i32_135 : i32
      %c1_i32_136 = arith.constant 1 : i32
      %168 = arith.subi %c1_i32_136, %9 : i32
      %c128_i32_137 = arith.constant 128 : i32
      %169 = arith.muli %167, %c128_i32_137 : i32
      %c0_i32_138 = arith.constant 0 : i32
      %170 = tpu.memref_slice %arg3[%c0_i32_138, %169] : memref<16x256xbf16, #tpu.memory_space<any>> -> memref<16x256xbf16, #tpu.memory_space<any>>
      %c0_i32_139 = arith.constant 0 : i32
      %c0_i32_140 = arith.constant 0 : i32
      %171 = tpu.memref_slice %arg6[%168, %c0_i32_139, %c0_i32_140] : memref<2x16x256xbf16, #tpu.memory_space<vmem>> -> memref<1x16x256xbf16, #tpu.memory_space<vmem>>
      %172 = tpu.memref_squeeze %171 : memref<1x16x256xbf16, #tpu.memory_space<vmem>> -> memref<16x256xbf16, #tpu.memory_space<vmem>>
      %173 = tpu.memref_slice %arg7[%168] : memref<2x!tpu.dma_semaphore, #tpu.memory_space<semaphore_mem>> -> memref<1x!tpu.dma_semaphore, #tpu.memory_space<semaphore_mem>>
      %174 = tpu.memref_squeeze %173 : memref<1x!tpu.dma_semaphore, #tpu.memory_space<semaphore_mem>> -> memref<!tpu.dma_semaphore, #tpu.memory_space<semaphore_mem>>
      tpu.enqueue_dma source(%170 : memref<16x256xbf16, #tpu.memory_space<any>>) target(%172 : memref<16x256xbf16, #tpu.memory_space<vmem>>) target_semaphore(%174 : memref<!tpu.dma_semaphore, #tpu.memory_space<semaphore_mem>>)
    } else {
    }
    %23 = arith.index_cast %9 : i32 to index
    %c0 = arith.constant 0 : index
    %c0_11 = arith.constant 0 : index
    %24 = vector.load %arg6[%23, %c0, %c0_11] : memref<2x16x256xbf16, #tpu.memory_space<vmem>>, vector<1x16x256xbf16>
    %25 = vector.shape_cast %24 : vector<1x16x256xbf16> to vector<16x256xbf16>
    %c0_12 = arith.constant 0 : index
    %c0_13 = arith.constant 0 : index
    %c0_14 = arith.constant 0 : index
    %26 = vector.load %arg2[%c0_12, %c0_13, %c0_14] : memref<16x16x16xbf16, #tpu.memory_space<vmem>>, vector<1x16x16xbf16>
    %27 = vector.shape_cast %26 : vector<1x16x16xbf16> to vector<16x16xbf16>
    %28 = vector.extract_strided_slice %25 {offsets = [0, 0], sizes = [16, 128], strides = [1, 1]} : vector<16x256xbf16> to vector<16x128xbf16>
    %cst = arith.constant dense<0.000000e+00> : vector<16x128xf32>
    %29 = tpu.matmul %27, %28, %cst {dimension_numbers = #tpu.dot_dimension_numbers<[1], [0], [0], [1], [0, 0, 1, 1], [], []>} : vector<16x16xbf16>, vector<16x128xbf16>, vector<16x128xf32> -> vector<16x128xf32>
    %c0_15 = arith.constant 0 : index
    %c0_16 = arith.constant 0 : index
    %30 = vector.load %arg8[%c0_15, %c0_16] : memref<16x128xf32, #tpu.memory_space<vmem>>, vector<16x128xf32>
    tpu.vector_store %arg8[%c0_15, %c0_16], %29 {strides = array<i32>} : memref<16x128xf32, #tpu.memory_space<vmem>>, vector<16x128xf32>,
    %c1 = arith.constant 1 : index
    %c0_17 = arith.constant 0 : index
    %c0_18 = arith.constant 0 : index
    %31 = vector.load %arg2[%c1, %c0_17, %c0_18] : memref<16x16x16xbf16, #tpu.memory_space<vmem>>, vector<1x16x16xbf16>
    %32 = vector.shape_cast %31 : vector<1x16x16xbf16> to vector<16x16xbf16>
    %33 = vector.extract_strided_slice %25 {offsets = [0, 1], sizes = [16, 128], strides = [1, 1]} : vector<16x256xbf16> to vector<16x128xbf16>
    %cst_19 = arith.constant dense<0.000000e+00> : vector<16x128xf32>
    %34 = tpu.matmul %32, %33, %cst_19 {dimension_numbers = #tpu.dot_dimension_numbers<[1], [0], [0], [1], [0, 0, 1, 1], [], []>} : vector<16x16xbf16>, vector<16x128xbf16>, vector<16x128xf32> -> vector<16x128xf32>
    %c0_20 = arith.constant 0 : index
    %c0_21 = arith.constant 0 : index
    %35 = vector.load %arg8[%c0_20, %c0_21] : memref<16x128xf32, #tpu.memory_space<vmem>>, vector<16x128xf32>
    %36 = arith.addf %35, %34 : vector<16x128xf32>
    %c0_22 = arith.constant 0 : index
    %c0_23 = arith.constant 0 : index
    %37 = vector.load %arg8[%c0_22, %c0_23] : memref<16x128xf32, #tpu.memory_space<vmem>>, vector<16x128xf32>
    tpu.vector_store %arg8[%c0_22, %c0_23], %36 {strides = array<i32>} : memref<16x128xf32, #tpu.memory_space<vmem>>, vector<16x128xf32>,
    %c2 = arith.constant 2 : index
    %c0_24 = arith.constant 0 : index
    %c0_25 = arith.constant 0 : index
    %38 = vector.load %arg2[%c2, %c0_24, %c0_25] : memref<16x16x16xbf16, #tpu.memory_space<vmem>>, vector<1x16x16xbf16>
    %39 = vector.shape_cast %38 : vector<1x16x16xbf16> to vector<16x16xbf16>
    %40 = vector.extract_strided_slice %25 {offsets = [0, 2], sizes = [16, 128], strides = [1, 1]} : vector<16x256xbf16> to vector<16x128xbf16>
    %cst_26 = arith.constant dense<0.000000e+00> : vector<16x128xf32>
    %41 = tpu.matmul %39, %40, %cst_26 {dimension_numbers = #tpu.dot_dimension_numbers<[1], [0], [0], [1], [0, 0, 1, 1], [], []>} : vector<16x16xbf16>, vector<16x128xbf16>, vector<16x128xf32> -> vector<16x128xf32>
    %c0_27 = arith.constant 0 : index
    %c0_28 = arith.constant 0 : index
    %42 = vector.load %arg8[%c0_27, %c0_28] : memref<16x128xf32, #tpu.memory_space<vmem>>, vector<16x128xf32>
    %43 = arith.addf %42, %41 : vector<16x128xf32>
    %c0_29 = arith.constant 0 : index
    %c0_30 = arith.constant 0 : index
    %44 = vector.load %arg8[%c0_29, %c0_30] : memref<16x128xf32, #tpu.memory_space<vmem>>, vector<16x128xf32>
    tpu.vector_store %arg8[%c0_29, %c0_30], %43 {strides = array<i32>} : memref<16x128xf32, #tpu.memory_space<vmem>>, vector<16x128xf32>,
    %c3 = arith.constant 3 : index
    %c0_31 = arith.constant 0 : index
    %c0_32 = arith.constant 0 : index
    %45 = vector.load %arg2[%c3, %c0_31, %c0_32] : memref<16x16x16xbf16, #tpu.memory_space<vmem>>, vector<1x16x16xbf16>
    %46 = vector.shape_cast %45 : vector<1x16x16xbf16> to vector<16x16xbf16>
    %47 = vector.extract_strided_slice %25 {offsets = [0, 3], sizes = [16, 128], strides = [1, 1]} : vector<16x256xbf16> to vector<16x128xbf16>
    %cst_33 = arith.constant dense<0.000000e+00> : vector<16x128xf32>
    %48 = tpu.matmul %46, %47, %cst_33 {dimension_numbers = #tpu.dot_dimension_numbers<[1], [0], [0], [1], [0, 0, 1, 1], [], []>} : vector<16x16xbf16>, vector<16x128xbf16>, vector<16x128xf32> -> vector<16x128xf32>
    %c0_34 = arith.constant 0 : index
    %c0_35 = arith.constant 0 : index
    %49 = vector.load %arg8[%c0_34, %c0_35] : memref<16x128xf32, #tpu.memory_space<vmem>>, vector<16x128xf32>
    %50 = arith.addf %49, %48 : vector<16x128xf32>
    %c0_36 = arith.constant 0 : index
    %c0_37 = arith.constant 0 : index
    %51 = vector.load %arg8[%c0_36, %c0_37] : memref<16x128xf32, #tpu.memory_space<vmem>>, vector<16x128xf32>
    tpu.vector_store %arg8[%c0_36, %c0_37], %50 {strides = array<i32>} : memref<16x128xf32, #tpu.memory_space<vmem>>, vector<16x128xf32>,
    %c4 = arith.constant 4 : index
    %c0_38 = arith.constant 0 : index
    %c0_39 = arith.constant 0 : index
    %52 = vector.load %arg2[%c4, %c0_38, %c0_39] : memref<16x16x16xbf16, #tpu.memory_space<vmem>>, vector<1x16x16xbf16>
    %53 = vector.shape_cast %52 : vector<1x16x16xbf16> to vector<16x16xbf16>
    %54 = vector.extract_strided_slice %25 {offsets = [0, 7], sizes = [16, 128], strides = [1, 1]} : vector<16x256xbf16> to vector<16x128xbf16>
    %cst_40 = arith.constant dense<0.000000e+00> : vector<16x128xf32>
    %55 = tpu.matmul %53, %54, %cst_40 {dimension_numbers = #tpu.dot_dimension_numbers<[1], [0], [0], [1], [0, 0, 1, 1], [], []>} : vector<16x16xbf16>, vector<16x128xbf16>, vector<16x128xf32> -> vector<16x128xf32>
    %c0_41 = arith.constant 0 : index
    %c0_42 = arith.constant 0 : index
    %56 = vector.load %arg8[%c0_41, %c0_42] : memref<16x128xf32, #tpu.memory_space<vmem>>, vector<16x128xf32>
    %57 = arith.addf %56, %55 : vector<16x128xf32>
    %c0_43 = arith.constant 0 : index
    %c0_44 = arith.constant 0 : index
    %58 = vector.load %arg8[%c0_43, %c0_44] : memref<16x128xf32, #tpu.memory_space<vmem>>, vector<16x128xf32>
    tpu.vector_store %arg8[%c0_43, %c0_44], %57 {strides = array<i32>} : memref<16x128xf32, #tpu.memory_space<vmem>>, vector<16x128xf32>,
    %c5 = arith.constant 5 : index
    %c0_45 = arith.constant 0 : index
    %c0_46 = arith.constant 0 : index
    %59 = vector.load %arg2[%c5, %c0_45, %c0_46] : memref<16x16x16xbf16, #tpu.memory_space<vmem>>, vector<1x16x16xbf16>
    %60 = vector.shape_cast %59 : vector<1x16x16xbf16> to vector<16x16xbf16>
    %61 = vector.extract_strided_slice %25 {offsets = [0, 8], sizes = [16, 128], strides = [1, 1]} : vector<16x256xbf16> to vector<16x128xbf16>
    %cst_47 = arith.constant dense<0.000000e+00> : vector<16x128xf32>
    %62 = tpu.matmul %60, %61, %cst_47 {dimension_numbers = #tpu.dot_dimension_numbers<[1], [0], [0], [1], [0, 0, 1, 1], [], []>} : vector<16x16xbf16>, vector<16x128xbf16>, vector<16x128xf32> -> vector<16x128xf32>
    %c0_48 = arith.constant 0 : index
    %c0_49 = arith.constant 0 : index
    %63 = vector.load %arg8[%c0_48, %c0_49] : memref<16x128xf32, #tpu.memory_space<vmem>>, vector<16x128xf32>
    %64 = arith.addf %63, %62 : vector<16x128xf32>
    %c0_50 = arith.constant 0 : index
    %c0_51 = arith.constant 0 : index
    %65 = vector.load %arg8[%c0_50, %c0_51] : memref<16x128xf32, #tpu.memory_space<vmem>>, vector<16x128xf32>
    tpu.vector_store %arg8[%c0_50, %c0_51], %64 {strides = array<i32>} : memref<16x128xf32, #tpu.memory_space<vmem>>, vector<16x128xf32>,
    %c6 = arith.constant 6 : index
    %c0_52 = arith.constant 0 : index
    %c0_53 = arith.constant 0 : index
    %66 = vector.load %arg2[%c6, %c0_52, %c0_53] : memref<16x16x16xbf16, #tpu.memory_space<vmem>>, vector<1x16x16xbf16>
    %67 = vector.shape_cast %66 : vector<1x16x16xbf16> to vector<16x16xbf16>
    %68 = vector.extract_strided_slice %25 {offsets = [0, 9], sizes = [16, 128], strides = [1, 1]} : vector<16x256xbf16> to vector<16x128xbf16>
    %cst_54 = arith.constant dense<0.000000e+00> : vector<16x128xf32>
    %69 = tpu.matmul %67, %68, %cst_54 {dimension_numbers = #tpu.dot_dimension_numbers<[1], [0], [0], [1], [0, 0, 1, 1], [], []>} : vector<16x16xbf16>, vector<16x128xbf16>, vector<16x128xf32> -> vector<16x128xf32>
    %c0_55 = arith.constant 0 : index
    %c0_56 = arith.constant 0 : index
    %70 = vector.load %arg8[%c0_55, %c0_56] : memref<16x128xf32, #tpu.memory_space<vmem>>, vector<16x128xf32>
    %71 = arith.addf %70, %69 : vector<16x128xf32>
    %c0_57 = arith.constant 0 : index
    %c0_58 = arith.constant 0 : index
    %72 = vector.load %arg8[%c0_57, %c0_58] : memref<16x128xf32, #tpu.memory_space<vmem>>, vector<16x128xf32>
    tpu.vector_store %arg8[%c0_57, %c0_58], %71 {strides = array<i32>} : memref<16x128xf32, #tpu.memory_space<vmem>>, vector<16x128xf32>,
    %c7 = arith.constant 7 : index
    %c0_59 = arith.constant 0 : index
    %c0_60 = arith.constant 0 : index
    %73 = vector.load %arg2[%c7, %c0_59, %c0_60] : memref<16x16x16xbf16, #tpu.memory_space<vmem>>, vector<1x16x16xbf16>
    %74 = vector.shape_cast %73 : vector<1x16x16xbf16> to vector<16x16xbf16>
    %75 = vector.extract_strided_slice %25 {offsets = [0, 10], sizes = [16, 128], strides = [1, 1]} : vector<16x256xbf16> to vector<16x128xbf16>
    %cst_61 = arith.constant dense<0.000000e+00> : vector<16x128xf32>
    %76 = tpu.matmul %74, %75, %cst_61 {dimension_numbers = #tpu.dot_dimension_numbers<[1], [0], [0], [1], [0, 0, 1, 1], [], []>} : vector<16x16xbf16>, vector<16x128xbf16>, vector<16x128xf32> -> vector<16x128xf32>
    %c0_62 = arith.constant 0 : index
    %c0_63 = arith.constant 0 : index
    %77 = vector.load %arg8[%c0_62, %c0_63] : memref<16x128xf32, #tpu.memory_space<vmem>>, vector<16x128xf32>
    %78 = arith.addf %77, %76 : vector<16x128xf32>
    %c0_64 = arith.constant 0 : index
    %c0_65 = arith.constant 0 : index
    %79 = vector.load %arg8[%c0_64, %c0_65] : memref<16x128xf32, #tpu.memory_space<vmem>>, vector<16x128xf32>
    tpu.vector_store %arg8[%c0_64, %c0_65], %78 {strides = array<i32>} : memref<16x128xf32, #tpu.memory_space<vmem>>, vector<16x128xf32>,
    %c8 = arith.constant 8 : index
    %c0_66 = arith.constant 0 : index
    %c0_67 = arith.constant 0 : index
    %80 = vector.load %arg2[%c8, %c0_66, %c0_67] : memref<16x16x16xbf16, #tpu.memory_space<vmem>>, vector<1x16x16xbf16>
    %81 = vector.shape_cast %80 : vector<1x16x16xbf16> to vector<16x16xbf16>
    %82 = vector.extract_strided_slice %25 {offsets = [0, 14], sizes = [16, 128], strides = [1, 1]} : vector<16x256xbf16> to vector<16x128xbf16>
    %cst_68 = arith.constant dense<0.000000e+00> : vector<16x128xf32>
    %83 = tpu.matmul %81, %82, %cst_68 {dimension_numbers = #tpu.dot_dimension_numbers<[1], [0], [0], [1], [0, 0, 1, 1], [], []>} : vector<16x16xbf16>, vector<16x128xbf16>, vector<16x128xf32> -> vector<16x128xf32>
    %c0_69 = arith.constant 0 : index
    %c0_70 = arith.constant 0 : index
    %84 = vector.load %arg8[%c0_69, %c0_70] : memref<16x128xf32, #tpu.memory_space<vmem>>, vector<16x128xf32>
    %85 = arith.addf %84, %83 : vector<16x128xf32>
    %c0_71 = arith.constant 0 : index
    %c0_72 = arith.constant 0 : index
    %86 = vector.load %arg8[%c0_71, %c0_72] : memref<16x128xf32, #tpu.memory_space<vmem>>, vector<16x128xf32>
    tpu.vector_store %arg8[%c0_71, %c0_72], %85 {strides = array<i32>} : memref<16x128xf32, #tpu.memory_space<vmem>>, vector<16x128xf32>,
    %c9 = arith.constant 9 : index
    %c0_73 = arith.constant 0 : index
    %c0_74 = arith.constant 0 : index
    %87 = vector.load %arg2[%c9, %c0_73, %c0_74] : memref<16x16x16xbf16, #tpu.memory_space<vmem>>, vector<1x16x16xbf16>
    %88 = vector.shape_cast %87 : vector<1x16x16xbf16> to vector<16x16xbf16>
    %89 = vector.extract_strided_slice %25 {offsets = [0, 15], sizes = [16, 128], strides = [1, 1]} : vector<16x256xbf16> to vector<16x128xbf16>
    %cst_75 = arith.constant dense<0.000000e+00> : vector<16x128xf32>
    %90 = tpu.matmul %88, %89, %cst_75 {dimension_numbers = #tpu.dot_dimension_numbers<[1], [0], [0], [1], [0, 0, 1, 1], [], []>} : vector<16x16xbf16>, vector<16x128xbf16>, vector<16x128xf32> -> vector<16x128xf32>
    %c0_76 = arith.constant 0 : index
    %c0_77 = arith.constant 0 : index
    %91 = vector.load %arg8[%c0_76, %c0_77] : memref<16x128xf32, #tpu.memory_space<vmem>>, vector<16x128xf32>
    %92 = arith.addf %91, %90 : vector<16x128xf32>
    %c0_78 = arith.constant 0 : index
    %c0_79 = arith.constant 0 : index
    %93 = vector.load %arg8[%c0_78, %c0_79] : memref<16x128xf32, #tpu.memory_space<vmem>>, vector<16x128xf32>
    tpu.vector_store %arg8[%c0_78, %c0_79], %92 {strides = array<i32>} : memref<16x128xf32, #tpu.memory_space<vmem>>, vector<16x128xf32>,
    %c10 = arith.constant 10 : index
    %c0_80 = arith.constant 0 : index
    %c0_81 = arith.constant 0 : index
    %94 = vector.load %arg2[%c10, %c0_80, %c0_81] : memref<16x16x16xbf16, #tpu.memory_space<vmem>>, vector<1x16x16xbf16>
    %95 = vector.shape_cast %94 : vector<1x16x16xbf16> to vector<16x16xbf16>
    %96 = vector.extract_strided_slice %25 {offsets = [0, 16], sizes = [16, 128], strides = [1, 1]} : vector<16x256xbf16> to vector<16x128xbf16>
    %cst_82 = arith.constant dense<0.000000e+00> : vector<16x128xf32>
    %97 = tpu.matmul %95, %96, %cst_82 {dimension_numbers = #tpu.dot_dimension_numbers<[1], [0], [0], [1], [0, 0, 1, 1], [], []>} : vector<16x16xbf16>, vector<16x128xbf16>, vector<16x128xf32> -> vector<16x128xf32>
    %c0_83 = arith.constant 0 : index
    %c0_84 = arith.constant 0 : index
    %98 = vector.load %arg8[%c0_83, %c0_84] : memref<16x128xf32, #tpu.memory_space<vmem>>, vector<16x128xf32>
    %99 = arith.addf %98, %97 : vector<16x128xf32>
    %c0_85 = arith.constant 0 : index
    %c0_86 = arith.constant 0 : index
    %100 = vector.load %arg8[%c0_85, %c0_86] : memref<16x128xf32, #tpu.memory_space<vmem>>, vector<16x128xf32>
    tpu.vector_store %arg8[%c0_85, %c0_86], %99 {strides = array<i32>} : memref<16x128xf32, #tpu.memory_space<vmem>>, vector<16x128xf32>,
    %c11 = arith.constant 11 : index
    %c0_87 = arith.constant 0 : index
    %c0_88 = arith.constant 0 : index
    %101 = vector.load %arg2[%c11, %c0_87, %c0_88] : memref<16x16x16xbf16, #tpu.memory_space<vmem>>, vector<1x16x16xbf16>
    %102 = vector.shape_cast %101 : vector<1x16x16xbf16> to vector<16x16xbf16>
    %103 = vector.extract_strided_slice %25 {offsets = [0, 17], sizes = [16, 128], strides = [1, 1]} : vector<16x256xbf16> to vector<16x128xbf16>
    %cst_89 = arith.constant dense<0.000000e+00> : vector<16x128xf32>
    %104 = tpu.matmul %102, %103, %cst_89 {dimension_numbers = #tpu.dot_dimension_numbers<[1], [0], [0], [1], [0, 0, 1, 1], [], []>} : vector<16x16xbf16>, vector<16x128xbf16>, vector<16x128xf32> -> vector<16x128xf32>
    %c0_90 = arith.constant 0 : index
    %c0_91 = arith.constant 0 : index
    %105 = vector.load %arg8[%c0_90, %c0_91] : memref<16x128xf32, #tpu.memory_space<vmem>>, vector<16x128xf32>
    %106 = arith.addf %105, %104 : vector<16x128xf32>
    %c0_92 = arith.constant 0 : index
    %c0_93 = arith.constant 0 : index
    %107 = vector.load %arg8[%c0_92, %c0_93] : memref<16x128xf32, #tpu.memory_space<vmem>>, vector<16x128xf32>
    tpu.vector_store %arg8[%c0_92, %c0_93], %106 {strides = array<i32>} : memref<16x128xf32, #tpu.memory_space<vmem>>, vector<16x128xf32>,
    %c12 = arith.constant 12 : index
    %c0_94 = arith.constant 0 : index
    %c0_95 = arith.constant 0 : index
    %108 = vector.load %arg2[%c12, %c0_94, %c0_95] : memref<16x16x16xbf16, #tpu.memory_space<vmem>>, vector<1x16x16xbf16>
    %109 = vector.shape_cast %108 : vector<1x16x16xbf16> to vector<16x16xbf16>
    %110 = vector.extract_strided_slice %25 {offsets = [0, 21], sizes = [16, 128], strides = [1, 1]} : vector<16x256xbf16> to vector<16x128xbf16>
    %cst_96 = arith.constant dense<0.000000e+00> : vector<16x128xf32>
    %111 = tpu.matmul %109, %110, %cst_96 {dimension_numbers = #tpu.dot_dimension_numbers<[1], [0], [0], [1], [0, 0, 1, 1], [], []>} : vector<16x16xbf16>, vector<16x128xbf16>, vector<16x128xf32> -> vector<16x128xf32>
    %c0_97 = arith.constant 0 : index
    %c0_98 = arith.constant 0 : index
    %112 = vector.load %arg8[%c0_97, %c0_98] : memref<16x128xf32, #tpu.memory_space<vmem>>, vector<16x128xf32>
    %113 = arith.addf %112, %111 : vector<16x128xf32>
    %c0_99 = arith.constant 0 : index
    %c0_100 = arith.constant 0 : index
    %114 = vector.load %arg8[%c0_99, %c0_100] : memref<16x128xf32, #tpu.memory_space<vmem>>, vector<16x128xf32>
    tpu.vector_store %arg8[%c0_99, %c0_100], %113 {strides = array<i32>} : memref<16x128xf32, #tpu.memory_space<vmem>>, vector<16x128xf32>,
    %c13 = arith.constant 13 : index
    %c0_101 = arith.constant 0 : index
    %c0_102 = arith.constant 0 : index
    %115 = vector.load %arg2[%c13, %c0_101, %c0_102] : memref<16x16x16xbf16, #tpu.memory_space<vmem>>, vector<1x16x16xbf16>
    %116 = vector.shape_cast %115 : vector<1x16x16xbf16> to vector<16x16xbf16>
    %117 = vector.extract_strided_slice %25 {offsets = [0, 22], sizes = [16, 128], strides = [1, 1]} : vector<16x256xbf16> to vector<16x128xbf16>
    %cst_103 = arith.constant dense<0.000000e+00> : vector<16x128xf32>
    %118 = tpu.matmul %116, %117, %cst_103 {dimension_numbers = #tpu.dot_dimension_numbers<[1], [0], [0], [1], [0, 0, 1, 1], [], []>} : vector<16x16xbf16>, vector<16x128xbf16>, vector<16x128xf32> -> vector<16x128xf32>
    %c0_104 = arith.constant 0 : index
    %c0_105 = arith.constant 0 : index
    %119 = vector.load %arg8[%c0_104, %c0_105] : memref<16x128xf32, #tpu.memory_space<vmem>>, vector<16x128xf32>
    %120 = arith.addf %119, %118 : vector<16x128xf32>
    %c0_106 = arith.constant 0 : index
    %c0_107 = arith.constant 0 : index
    %121 = vector.load %arg8[%c0_106, %c0_107] : memref<16x128xf32, #tpu.memory_space<vmem>>, vector<16x128xf32>
    tpu.vector_store %arg8[%c0_106, %c0_107], %120 {strides = array<i32>} : memref<16x128xf32, #tpu.memory_space<vmem>>, vector<16x128xf32>,
    %c14 = arith.constant 14 : index
    %c0_108 = arith.constant 0 : index
    %c0_109 = arith.constant 0 : index
    %122 = vector.load %arg2[%c14, %c0_108, %c0_109] : memref<16x16x16xbf16, #tpu.memory_space<vmem>>, vector<1x16x16xbf16>
    %123 = vector.shape_cast %122 : vector<1x16x16xbf16> to vector<16x16xbf16>
    %124 = vector.extract_strided_slice %25 {offsets = [0, 23], sizes = [16, 128], strides = [1, 1]} : vector<16x256xbf16> to vector<16x128xbf16>
    %cst_110 = arith.constant dense<0.000000e+00> : vector<16x128xf32>
    %125 = tpu.matmul %123, %124, %cst_110 {dimension_numbers = #tpu.dot_dimension_numbers<[1], [0], [0], [1], [0, 0, 1, 1], [], []>} : vector<16x16xbf16>, vector<16x128xbf16>, vector<16x128xf32> -> vector<16x128xf32>
    %c0_111 = arith.constant 0 : index
    %c0_112 = arith.constant 0 : index
    %126 = vector.load %arg8[%c0_111, %c0_112] : memref<16x128xf32, #tpu.memory_space<vmem>>, vector<16x128xf32>
    %127 = arith.addf %126, %125 : vector<16x128xf32>
    %c0_113 = arith.constant 0 : index
    %c0_114 = arith.constant 0 : index
    %128 = vector.load %arg8[%c0_113, %c0_114] : memref<16x128xf32, #tpu.memory_space<vmem>>, vector<16x128xf32>
    tpu.vector_store %arg8[%c0_113, %c0_114], %127 {strides = array<i32>} : memref<16x128xf32, #tpu.memory_space<vmem>>, vector<16x128xf32>,
    %c15 = arith.constant 15 : index
    %c0_115 = arith.constant 0 : index
    %c0_116 = arith.constant 0 : index
    %129 = vector.load %arg2[%c15, %c0_115, %c0_116] : memref<16x16x16xbf16, #tpu.memory_space<vmem>>, vector<1x16x16xbf16>
    %130 = vector.shape_cast %129 : vector<1x16x16xbf16> to vector<16x16xbf16>
    %131 = vector.extract_strided_slice %25 {offsets = [0, 24], sizes = [16, 128], strides = [1, 1]} : vector<16x256xbf16> to vector<16x128xbf16>
    %cst_117 = arith.constant dense<0.000000e+00> : vector<16x128xf32>
    %132 = tpu.matmul %130, %131, %cst_117 {dimension_numbers = #tpu.dot_dimension_numbers<[1], [0], [0], [1], [0, 0, 1, 1], [], []>} : vector<16x16xbf16>, vector<16x128xbf16>, vector<16x128xf32> -> vector<16x128xf32>
    %c0_118 = arith.constant 0 : index
    %c0_119 = arith.constant 0 : index
    %133 = vector.load %arg8[%c0_118, %c0_119] : memref<16x128xf32, #tpu.memory_space<vmem>>, vector<16x128xf32>
    %134 = arith.addf %133, %132 : vector<16x128xf32>
    %c0_120 = arith.constant 0 : index
    %c0_121 = arith.constant 0 : index
    %135 = vector.load %arg8[%c0_120, %c0_121] : memref<16x128xf32, #tpu.memory_space<vmem>>, vector<16x128xf32>
    tpu.vector_store %arg8[%c0_120, %c0_121], %134 {strides = array<i32>} : memref<16x128xf32, #tpu.memory_space<vmem>>, vector<16x128xf32>,
    %c0_122 = arith.constant 0 : index
    %c0_123 = arith.constant 0 : index
    %136 = vector.load %arg8[%c0_122, %c0_123] : memref<16x128xf32, #tpu.memory_space<vmem>>, vector<16x128xf32>
    %c0_124 = arith.constant 0 : index
    %c0_125 = arith.constant 0 : index
    %137 = vector.load %arg4[%c0_124, %c0_125] : memref<1x128xf32, #tpu.memory_space<vmem>>, vector<1x128xf32>
    %138 = vector.broadcast %137 : vector<1x128xf32> to vector<16x128xf32>
    %139 = arith.mulf %136, %138 : vector<16x128xf32>
    %cst_126 = arith.constant dense<0.000000e+00> : vector<16xf32>
    %140 = vector.multi_reduction <add>, %139, %cst_126 [1] : vector<16x128xf32> to vector<16xf32>
    %141 = vector.shape_cast %140 : vector<16xf32> to vector<16x1xf32>
    %cst_127 = arith.constant 3.125000e-02 : f32
    %142 = vector.broadcast %cst_127 : f32 to vector<16x1xf32>
    %143 = arith.mulf %141, %142 : vector<16x1xf32>
    %144 = vector.broadcast %143 : vector<16x1xf32> to vector<16x128xf32>
    %145 = arith.subf %136, %144 : vector<16x128xf32>
    %146 = arith.mulf %145, %145 : vector<16x128xf32>
    %147 = vector.broadcast %137 : vector<1x128xf32> to vector<16x128xf32>
    %148 = arith.mulf %146, %147 : vector<16x128xf32>
    %cst_128 = arith.constant dense<0.000000e+00> : vector<16xf32>
    %149 = vector.multi_reduction <add>, %148, %cst_128 [1] : vector<16x128xf32> to vector<16xf32>
    %150 = vector.shape_cast %149 : vector<16xf32> to vector<16x1xf32>
    %cst_129 = arith.constant 3.125000e-02 : f32
    %151 = vector.broadcast %cst_129 : f32 to vector<16x1xf32>
    %152 = arith.mulf %150, %151 : vector<16x1xf32>
    %153 = vector.broadcast %143 : vector<16x1xf32> to vector<16x128xf32>
    %154 = arith.subf %136, %153 : vector<16x128xf32>
    %cst_130 = arith.constant 9.99999974E-6 : f32
    %155 = vector.broadcast %cst_130 : f32 to vector<16x1xf32>
    %156 = arith.addf %152, %155 : vector<16x1xf32>
    %157 = math.rsqrt %156 : vector<16x1xf32>
    %158 = vector.broadcast %157 : vector<16x1xf32> to vector<16x128xf32>
    %159 = arith.mulf %154, %158 : vector<16x128xf32>
    %cst_131 = arith.constant 0.000000e+00 : f32
    %160 = vector.broadcast %cst_131 : f32 to vector<16x128xf32>
    %161 = arith.cmpf oge, %159, %160 : vector<16x128xf32>
    %cst_132 = arith.constant 2.000000e-01 : f32
    %162 = vector.broadcast %cst_132 : f32 to vector<16x128xf32>
    %163 = arith.mulf %162, %159 : vector<16x128xf32>
    %164 = arith.select %161, %159, %163 : vector<16x128xi1>, vector<16x128xf32>
    %165 = arith.truncf %164 : vector<16x128xf32> to vector<16x128xbf16>
    %c0_133 = arith.constant 0 : index
    %c0_134 = arith.constant 0 : index
    %166 = vector.load %arg5[%c0_133, %c0_134] : memref<16x128xbf16, #tpu.memory_space<vmem>>, vector<16x128xbf16>
    tpu.vector_store %arg5[%c0_133, %c0_134], %165 {strides = array<i32>} : memref<16x128xbf16, #tpu.memory_space<vmem>>, vector<16x128xbf16>,
    return
  }
  func.func @transform_0(%arg0: i32, %arg1: i32) -> (i32, i32, i32) {
    %c0_i32 = arith.constant 0 : i32
    %c0_i32_0 = arith.constant 0 : i32
    %c0_i32_1 = arith.constant 0 : i32
    return %c0_i32, %arg0, %c0_i32_0 : i32, i32, i32
  }
  func.func @transform_2(%arg0: i32, %arg1: i32) -> (i32, i32) {
    %c0_i32 = arith.constant 0 : i32
    %c0_i32_0 = arith.constant 0 : i32
    return %c0_i32, %arg1 : i32, i32
  }
  func.func @transform_3(%arg0: i32, %arg1: i32) -> (i32, i32) {
    %c0_i32 = arith.constant 0 : i32
    return %arg0, %arg1 : i32, i32
  }
}

module attributes {stable_mosaic.version = 11 : i64} {
  func.func @_conv_kernel(%arg0: i32, %arg1: i32, %arg2: memref<9x16x16xbf16, #tpu.memory_space<vmem>>, %arg3: memref<16x384xbf16, #tpu.memory_space<any>>, %arg4: memref<1x256xf32, #tpu.memory_space<vmem>>, %arg5: memref<16x256xbf16, #tpu.memory_space<vmem>>, %arg6: memref<2x16x384xbf16, #tpu.memory_space<vmem>>, %arg7: memref<2x!tpu.dma_semaphore, #tpu.memory_space<semaphore_mem>>, %arg8: memref<16x256xf32, #tpu.memory_space<vmem>>) attributes {dimension_semantics = [#tpu.dimension_semantics<parallel>, #tpu.dimension_semantics<arbitrary>], iteration_bounds = array<i64: 1, 1>, scalar_prefetch = 0 : i64, scratch_operands = 3 : i64, tpu.core_type = #tpu.core_type<tc>, window_params = [{transform_indices = @transform_0, window_bounds = array<i64: 9, 16, 16>}, {}, {transform_indices = @transform_2, window_bounds = array<i64: 1, 256>}, {transform_indices = @transform_3, window_bounds = array<i64: 16, 256>}]} {
    %c2_i32 = arith.constant 2 : i32
    %c0_i32 = arith.constant 0 : i32
    %0 = arith.cmpi eq, %c2_i32, %c0_i32 : i32
    %c1_i32 = arith.constant 1 : i32
    %1 = arith.select %0, %c1_i32, %c2_i32 : i32
    %2 = arith.remsi %arg1, %1 : i32
    %c0_i32_0 = arith.constant 0 : i32
    %3 = arith.cmpi ne, %2, %c0_i32_0 : i32
    %c0_i32_1 = arith.constant 0 : i32
    %4 = arith.cmpi slt, %2, %c0_i32_1 : i32
    %c0_i32_2 = arith.constant 0 : i32
    %5 = arith.cmpi slt, %1, %c0_i32_2 : i32
    %6 = arith.xori %4, %5 : i1
    %7 = arith.andi %6, %3 : i1
    %8 = arith.addi %2, %1 : i32
    %9 = arith.select %7, %8, %2 : i32
    %c0_i32_3 = arith.constant 0 : i32
    %10 = arith.cmpi eq, %arg1, %c0_i32_3 : i32
    %11 = arith.extui %10 : i1 to i32
    %c0_i32_4 = arith.constant 0 : i32
    %12 = arith.cmpi ne, %11, %c0_i32_4 : i32
    scf.if %12 {
      %c256_i32_86 = arith.constant 256 : i32
      %118 = arith.muli %arg1, %c256_i32_86 : i32
      %c0_i32_87 = arith.constant 0 : i32
      %119 = tpu.memref_slice %arg3[%c0_i32_87, %118] : memref<16x384xbf16, #tpu.memory_space<any>> -> memref<16x384xbf16, #tpu.memory_space<any>>
      %c0_i32_88 = arith.constant 0 : i32
      %c0_i32_89 = arith.constant 0 : i32
      %120 = tpu.memref_slice %arg6[%9, %c0_i32_88, %c0_i32_89] : memref<2x16x384xbf16, #tpu.memory_space<vmem>> -> memref<1x16x384xbf16, #tpu.memory_space<vmem>>
      %121 = tpu.memref_squeeze %120 : memref<1x16x384xbf16, #tpu.memory_space<vmem>> -> memref<16x384xbf16, #tpu.memory_space<vmem>>
      %122 = tpu.memref_slice %arg7[%9] : memref<2x!tpu.dma_semaphore, #tpu.memory_space<semaphore_mem>> -> memref<1x!tpu.dma_semaphore, #tpu.memory_space<semaphore_mem>>
      %123 = tpu.memref_squeeze %122 : memref<1x!tpu.dma_semaphore, #tpu.memory_space<semaphore_mem>> -> memref<!tpu.dma_semaphore, #tpu.memory_space<semaphore_mem>>
      tpu.enqueue_dma source(%119 : memref<16x384xbf16, #tpu.memory_space<any>>) target(%121 : memref<16x384xbf16, #tpu.memory_space<vmem>>) target_semaphore(%123 : memref<!tpu.dma_semaphore, #tpu.memory_space<semaphore_mem>>)
    } else {
    }
    %c256_i32 = arith.constant 256 : i32
    %13 = arith.muli %arg1, %c256_i32 : i32
    %c0_i32_5 = arith.constant 0 : i32
    %14 = tpu.memref_slice %arg3[%c0_i32_5, %13] : memref<16x384xbf16, #tpu.memory_space<any>> -> memref<16x384xbf16, #tpu.memory_space<any>>
    %c0_i32_6 = arith.constant 0 : i32
    %c0_i32_7 = arith.constant 0 : i32
    %15 = tpu.memref_slice %arg6[%9, %c0_i32_6, %c0_i32_7] : memref<2x16x384xbf16, #tpu.memory_space<vmem>> -> memref<1x16x384xbf16, #tpu.memory_space<vmem>>
    %16 = tpu.memref_squeeze %15 : memref<1x16x384xbf16, #tpu.memory_space<vmem>> -> memref<16x384xbf16, #tpu.memory_space<vmem>>
    %17 = tpu.memref_slice %arg7[%9] : memref<2x!tpu.dma_semaphore, #tpu.memory_space<semaphore_mem>> -> memref<1x!tpu.dma_semaphore, #tpu.memory_space<semaphore_mem>>
    %18 = tpu.memref_squeeze %17 : memref<1x!tpu.dma_semaphore, #tpu.memory_space<semaphore_mem>> -> memref<!tpu.dma_semaphore, #tpu.memory_space<semaphore_mem>>
    tpu.wait_dma2 semaphore(%18 : memref<!tpu.dma_semaphore, #tpu.memory_space<semaphore_mem>>) src(%14 : memref<16x384xbf16, #tpu.memory_space<any>>) dst(%16 : memref<16x384xbf16, #tpu.memory_space<vmem>>)
    %c1_i32_8 = arith.constant 1 : i32
    %19 = arith.addi %arg1, %c1_i32_8 : i32
    %c1_i32_9 = arith.constant 1 : i32
    %20 = arith.cmpi slt, %19, %c1_i32_9 : i32
    %21 = arith.extui %20 : i1 to i32
    %c0_i32_10 = arith.constant 0 : i32
    %22 = arith.cmpi ne, %21, %c0_i32_10 : i32
    scf.if %22 {
      %c1_i32_86 = arith.constant 1 : i32
      %118 = arith.addi %arg1, %c1_i32_86 : i32
      %c1_i32_87 = arith.constant 1 : i32
      %119 = arith.subi %c1_i32_87, %9 : i32
      %c256_i32_88 = arith.constant 256 : i32
      %120 = arith.muli %118, %c256_i32_88 : i32
      %c0_i32_89 = arith.constant 0 : i32
      %121 = tpu.memref_slice %arg3[%c0_i32_89, %120] : memref<16x384xbf16, #tpu.memory_space<any>> -> memref<16x384xbf16, #tpu.memory_space<any>>
      %c0_i32_90 = arith.constant 0 : i32
      %c0_i32_91 = arith.constant 0 : i32
      %122 = tpu.memref_slice %arg6[%119, %c0_i32_90, %c0_i32_91] : memref<2x16x384xbf16, #tpu.memory_space<vmem>> -> memref<1x16x384xbf16, #tpu.memory_space<vmem>>
      %123 = tpu.memref_squeeze %122 : memref<1x16x384xbf16, #tpu.memory_space<vmem>> -> memref<16x384xbf16, #tpu.memory_space<vmem>>
      %124 = tpu.memref_slice %arg7[%119] : memref<2x!tpu.dma_semaphore, #tpu.memory_space<semaphore_mem>> -> memref<1x!tpu.dma_semaphore, #tpu.memory_space<semaphore_mem>>
      %125 = tpu.memref_squeeze %124 : memref<1x!tpu.dma_semaphore, #tpu.memory_space<semaphore_mem>> -> memref<!tpu.dma_semaphore, #tpu.memory_space<semaphore_mem>>
      tpu.enqueue_dma source(%121 : memref<16x384xbf16, #tpu.memory_space<any>>) target(%123 : memref<16x384xbf16, #tpu.memory_space<vmem>>) target_semaphore(%125 : memref<!tpu.dma_semaphore, #tpu.memory_space<semaphore_mem>>)
    } else {
    }
    %23 = arith.index_cast %9 : i32 to index
    %c0 = arith.constant 0 : index
    %c0_11 = arith.constant 0 : index
    %24 = vector.load %arg6[%23, %c0, %c0_11] : memref<2x16x384xbf16, #tpu.memory_space<vmem>>, vector<1x16x384xbf16>
    %25 = vector.shape_cast %24 : vector<1x16x384xbf16> to vector<16x384xbf16>
    %c0_12 = arith.constant 0 : index
    %c0_13 = arith.constant 0 : index
    %c0_14 = arith.constant 0 : index
    %26 = vector.load %arg2[%c0_12, %c0_13, %c0_14] : memref<9x16x16xbf16, #tpu.memory_space<vmem>>, vector<1x16x16xbf16>
    %27 = vector.shape_cast %26 : vector<1x16x16xbf16> to vector<16x16xbf16>
    %28 = vector.extract_strided_slice %25 {offsets = [0, 0], sizes = [16, 256], strides = [1, 1]} : vector<16x384xbf16> to vector<16x256xbf16>
    %cst = arith.constant dense<0.000000e+00> : vector<16x256xf32>
    %29 = tpu.matmul %27, %28, %cst {dimension_numbers = #tpu.dot_dimension_numbers<[1], [0], [0], [1], [0, 0, 1, 1], [], []>} : vector<16x16xbf16>, vector<16x256xbf16>, vector<16x256xf32> -> vector<16x256xf32>
    %c0_15 = arith.constant 0 : index
    %c0_16 = arith.constant 0 : index
    %30 = vector.load %arg8[%c0_15, %c0_16] : memref<16x256xf32, #tpu.memory_space<vmem>>, vector<16x256xf32>
    tpu.vector_store %arg8[%c0_15, %c0_16], %29 {strides = array<i32>} : memref<16x256xf32, #tpu.memory_space<vmem>>, vector<16x256xf32>,
    %c1 = arith.constant 1 : index
    %c0_17 = arith.constant 0 : index
    %c0_18 = arith.constant 0 : index
    %31 = vector.load %arg2[%c1, %c0_17, %c0_18] : memref<9x16x16xbf16, #tpu.memory_space<vmem>>, vector<1x16x16xbf16>
    %32 = vector.shape_cast %31 : vector<1x16x16xbf16> to vector<16x16xbf16>
    %33 = vector.extract_strided_slice %25 {offsets = [0, 1], sizes = [16, 256], strides = [1, 1]} : vector<16x384xbf16> to vector<16x256xbf16>
    %cst_19 = arith.constant dense<0.000000e+00> : vector<16x256xf32>
    %34 = tpu.matmul %32, %33, %cst_19 {dimension_numbers = #tpu.dot_dimension_numbers<[1], [0], [0], [1], [0, 0, 1, 1], [], []>} : vector<16x16xbf16>, vector<16x256xbf16>, vector<16x256xf32> -> vector<16x256xf32>
    %c0_20 = arith.constant 0 : index
    %c0_21 = arith.constant 0 : index
    %35 = vector.load %arg8[%c0_20, %c0_21] : memref<16x256xf32, #tpu.memory_space<vmem>>, vector<16x256xf32>
    %36 = arith.addf %35, %34 : vector<16x256xf32>
    %c0_22 = arith.constant 0 : index
    %c0_23 = arith.constant 0 : index
    %37 = vector.load %arg8[%c0_22, %c0_23] : memref<16x256xf32, #tpu.memory_space<vmem>>, vector<16x256xf32>
    tpu.vector_store %arg8[%c0_22, %c0_23], %36 {strides = array<i32>} : memref<16x256xf32, #tpu.memory_space<vmem>>, vector<16x256xf32>,
    %c2 = arith.constant 2 : index
    %c0_24 = arith.constant 0 : index
    %c0_25 = arith.constant 0 : index
    %38 = vector.load %arg2[%c2, %c0_24, %c0_25] : memref<9x16x16xbf16, #tpu.memory_space<vmem>>, vector<1x16x16xbf16>
    %39 = vector.shape_cast %38 : vector<1x16x16xbf16> to vector<16x16xbf16>
    %40 = vector.extract_strided_slice %25 {offsets = [0, 2], sizes = [16, 256], strides = [1, 1]} : vector<16x384xbf16> to vector<16x256xbf16>
    %cst_26 = arith.constant dense<0.000000e+00> : vector<16x256xf32>
    %41 = tpu.matmul %39, %40, %cst_26 {dimension_numbers = #tpu.dot_dimension_numbers<[1], [0], [0], [1], [0, 0, 1, 1], [], []>} : vector<16x16xbf16>, vector<16x256xbf16>, vector<16x256xf32> -> vector<16x256xf32>
    %c0_27 = arith.constant 0 : index
    %c0_28 = arith.constant 0 : index
    %42 = vector.load %arg8[%c0_27, %c0_28] : memref<16x256xf32, #tpu.memory_space<vmem>>, vector<16x256xf32>
    %43 = arith.addf %42, %41 : vector<16x256xf32>
    %c0_29 = arith.constant 0 : index
    %c0_30 = arith.constant 0 : index
    %44 = vector.load %arg8[%c0_29, %c0_30] : memref<16x256xf32, #tpu.memory_space<vmem>>, vector<16x256xf32>
    tpu.vector_store %arg8[%c0_29, %c0_30], %43 {strides = array<i32>} : memref<16x256xf32, #tpu.memory_space<vmem>>, vector<16x256xf32>,
    %c3 = arith.constant 3 : index
    %c0_31 = arith.constant 0 : index
    %c0_32 = arith.constant 0 : index
    %45 = vector.load %arg2[%c3, %c0_31, %c0_32] : memref<9x16x16xbf16, #tpu.memory_space<vmem>>, vector<1x16x16xbf16>
    %46 = vector.shape_cast %45 : vector<1x16x16xbf16> to vector<16x16xbf16>
    %47 = vector.extract_strided_slice %25 {offsets = [0, 10], sizes = [16, 256], strides = [1, 1]} : vector<16x384xbf16> to vector<16x256xbf16>
    %cst_33 = arith.constant dense<0.000000e+00> : vector<16x256xf32>
    %48 = tpu.matmul %46, %47, %cst_33 {dimension_numbers = #tpu.dot_dimension_numbers<[1], [0], [0], [1], [0, 0, 1, 1], [], []>} : vector<16x16xbf16>, vector<16x256xbf16>, vector<16x256xf32> -> vector<16x256xf32>
    %c0_34 = arith.constant 0 : index
    %c0_35 = arith.constant 0 : index
    %49 = vector.load %arg8[%c0_34, %c0_35] : memref<16x256xf32, #tpu.memory_space<vmem>>, vector<16x256xf32>
    %50 = arith.addf %49, %48 : vector<16x256xf32>
    %c0_36 = arith.constant 0 : index
    %c0_37 = arith.constant 0 : index
    %51 = vector.load %arg8[%c0_36, %c0_37] : memref<16x256xf32, #tpu.memory_space<vmem>>, vector<16x256xf32>
    tpu.vector_store %arg8[%c0_36, %c0_37], %50 {strides = array<i32>} : memref<16x256xf32, #tpu.memory_space<vmem>>, vector<16x256xf32>,
    %c4 = arith.constant 4 : index
    %c0_38 = arith.constant 0 : index
    %c0_39 = arith.constant 0 : index
    %52 = vector.load %arg2[%c4, %c0_38, %c0_39] : memref<9x16x16xbf16, #tpu.memory_space<vmem>>, vector<1x16x16xbf16>
    %53 = vector.shape_cast %52 : vector<1x16x16xbf16> to vector<16x16xbf16>
    %54 = vector.extract_strided_slice %25 {offsets = [0, 11], sizes = [16, 256], strides = [1, 1]} : vector<16x384xbf16> to vector<16x256xbf16>
    %cst_40 = arith.constant dense<0.000000e+00> : vector<16x256xf32>
    %55 = tpu.matmul %53, %54, %cst_40 {dimension_numbers = #tpu.dot_dimension_numbers<[1], [0], [0], [1], [0, 0, 1, 1], [], []>} : vector<16x16xbf16>, vector<16x256xbf16>, vector<16x256xf32> -> vector<16x256xf32>
    %c0_41 = arith.constant 0 : index
    %c0_42 = arith.constant 0 : index
    %56 = vector.load %arg8[%c0_41, %c0_42] : memref<16x256xf32, #tpu.memory_space<vmem>>, vector<16x256xf32>
    %57 = arith.addf %56, %55 : vector<16x256xf32>
    %c0_43 = arith.constant 0 : index
    %c0_44 = arith.constant 0 : index
    %58 = vector.load %arg8[%c0_43, %c0_44] : memref<16x256xf32, #tpu.memory_space<vmem>>, vector<16x256xf32>
    tpu.vector_store %arg8[%c0_43, %c0_44], %57 {strides = array<i32>} : memref<16x256xf32, #tpu.memory_space<vmem>>, vector<16x256xf32>,
    %c5 = arith.constant 5 : index
    %c0_45 = arith.constant 0 : index
    %c0_46 = arith.constant 0 : index
    %59 = vector.load %arg2[%c5, %c0_45, %c0_46] : memref<9x16x16xbf16, #tpu.memory_space<vmem>>, vector<1x16x16xbf16>
    %60 = vector.shape_cast %59 : vector<1x16x16xbf16> to vector<16x16xbf16>
    %61 = vector.extract_strided_slice %25 {offsets = [0, 12], sizes = [16, 256], strides = [1, 1]} : vector<16x384xbf16> to vector<16x256xbf16>
    %cst_47 = arith.constant dense<0.000000e+00> : vector<16x256xf32>
    %62 = tpu.matmul %60, %61, %cst_47 {dimension_numbers = #tpu.dot_dimension_numbers<[1], [0], [0], [1], [0, 0, 1, 1], [], []>} : vector<16x16xbf16>, vector<16x256xbf16>, vector<16x256xf32> -> vector<16x256xf32>
    %c0_48 = arith.constant 0 : index
    %c0_49 = arith.constant 0 : index
    %63 = vector.load %arg8[%c0_48, %c0_49] : memref<16x256xf32, #tpu.memory_space<vmem>>, vector<16x256xf32>
    %64 = arith.addf %63, %62 : vector<16x256xf32>
    %c0_50 = arith.constant 0 : index
    %c0_51 = arith.constant 0 : index
    %65 = vector.load %arg8[%c0_50, %c0_51] : memref<16x256xf32, #tpu.memory_space<vmem>>, vector<16x256xf32>
    tpu.vector_store %arg8[%c0_50, %c0_51], %64 {strides = array<i32>} : memref<16x256xf32, #tpu.memory_space<vmem>>, vector<16x256xf32>,
    %c6 = arith.constant 6 : index
    %c0_52 = arith.constant 0 : index
    %c0_53 = arith.constant 0 : index
    %66 = vector.load %arg2[%c6, %c0_52, %c0_53] : memref<9x16x16xbf16, #tpu.memory_space<vmem>>, vector<1x16x16xbf16>
    %67 = vector.shape_cast %66 : vector<1x16x16xbf16> to vector<16x16xbf16>
    %68 = vector.extract_strided_slice %25 {offsets = [0, 20], sizes = [16, 256], strides = [1, 1]} : vector<16x384xbf16> to vector<16x256xbf16>
    %cst_54 = arith.constant dense<0.000000e+00> : vector<16x256xf32>
    %69 = tpu.matmul %67, %68, %cst_54 {dimension_numbers = #tpu.dot_dimension_numbers<[1], [0], [0], [1], [0, 0, 1, 1], [], []>} : vector<16x16xbf16>, vector<16x256xbf16>, vector<16x256xf32> -> vector<16x256xf32>
    %c0_55 = arith.constant 0 : index
    %c0_56 = arith.constant 0 : index
    %70 = vector.load %arg8[%c0_55, %c0_56] : memref<16x256xf32, #tpu.memory_space<vmem>>, vector<16x256xf32>
    %71 = arith.addf %70, %69 : vector<16x256xf32>
    %c0_57 = arith.constant 0 : index
    %c0_58 = arith.constant 0 : index
    %72 = vector.load %arg8[%c0_57, %c0_58] : memref<16x256xf32, #tpu.memory_space<vmem>>, vector<16x256xf32>
    tpu.vector_store %arg8[%c0_57, %c0_58], %71 {strides = array<i32>} : memref<16x256xf32, #tpu.memory_space<vmem>>, vector<16x256xf32>,
    %c7 = arith.constant 7 : index
    %c0_59 = arith.constant 0 : index
    %c0_60 = arith.constant 0 : index
    %73 = vector.load %arg2[%c7, %c0_59, %c0_60] : memref<9x16x16xbf16, #tpu.memory_space<vmem>>, vector<1x16x16xbf16>
    %74 = vector.shape_cast %73 : vector<1x16x16xbf16> to vector<16x16xbf16>
    %75 = vector.extract_strided_slice %25 {offsets = [0, 21], sizes = [16, 256], strides = [1, 1]} : vector<16x384xbf16> to vector<16x256xbf16>
    %cst_61 = arith.constant dense<0.000000e+00> : vector<16x256xf32>
    %76 = tpu.matmul %74, %75, %cst_61 {dimension_numbers = #tpu.dot_dimension_numbers<[1], [0], [0], [1], [0, 0, 1, 1], [], []>} : vector<16x16xbf16>, vector<16x256xbf16>, vector<16x256xf32> -> vector<16x256xf32>
    %c0_62 = arith.constant 0 : index
    %c0_63 = arith.constant 0 : index
    %77 = vector.load %arg8[%c0_62, %c0_63] : memref<16x256xf32, #tpu.memory_space<vmem>>, vector<16x256xf32>
    %78 = arith.addf %77, %76 : vector<16x256xf32>
    %c0_64 = arith.constant 0 : index
    %c0_65 = arith.constant 0 : index
    %79 = vector.load %arg8[%c0_64, %c0_65] : memref<16x256xf32, #tpu.memory_space<vmem>>, vector<16x256xf32>
    tpu.vector_store %arg8[%c0_64, %c0_65], %78 {strides = array<i32>} : memref<16x256xf32, #tpu.memory_space<vmem>>, vector<16x256xf32>,
    %c8 = arith.constant 8 : index
    %c0_66 = arith.constant 0 : index
    %c0_67 = arith.constant 0 : index
    %80 = vector.load %arg2[%c8, %c0_66, %c0_67] : memref<9x16x16xbf16, #tpu.memory_space<vmem>>, vector<1x16x16xbf16>
    %81 = vector.shape_cast %80 : vector<1x16x16xbf16> to vector<16x16xbf16>
    %82 = vector.extract_strided_slice %25 {offsets = [0, 22], sizes = [16, 256], strides = [1, 1]} : vector<16x384xbf16> to vector<16x256xbf16>
    %cst_68 = arith.constant dense<0.000000e+00> : vector<16x256xf32>
    %83 = tpu.matmul %81, %82, %cst_68 {dimension_numbers = #tpu.dot_dimension_numbers<[1], [0], [0], [1], [0, 0, 1, 1], [], []>} : vector<16x16xbf16>, vector<16x256xbf16>, vector<16x256xf32> -> vector<16x256xf32>
    %c0_69 = arith.constant 0 : index
    %c0_70 = arith.constant 0 : index
    %84 = vector.load %arg8[%c0_69, %c0_70] : memref<16x256xf32, #tpu.memory_space<vmem>>, vector<16x256xf32>
    %85 = arith.addf %84, %83 : vector<16x256xf32>
    %c0_71 = arith.constant 0 : index
    %c0_72 = arith.constant 0 : index
    %86 = vector.load %arg8[%c0_71, %c0_72] : memref<16x256xf32, #tpu.memory_space<vmem>>, vector<16x256xf32>
    tpu.vector_store %arg8[%c0_71, %c0_72], %85 {strides = array<i32>} : memref<16x256xf32, #tpu.memory_space<vmem>>, vector<16x256xf32>,
    %c0_73 = arith.constant 0 : index
    %c0_74 = arith.constant 0 : index
    %87 = vector.load %arg8[%c0_73, %c0_74] : memref<16x256xf32, #tpu.memory_space<vmem>>, vector<16x256xf32>
    %c0_75 = arith.constant 0 : index
    %c0_76 = arith.constant 0 : index
    %88 = vector.load %arg4[%c0_75, %c0_76] : memref<1x256xf32, #tpu.memory_space<vmem>>, vector<1x256xf32>
    %89 = vector.broadcast %88 : vector<1x256xf32> to vector<16x256xf32>
    %90 = arith.mulf %87, %89 : vector<16x256xf32>
    %cst_77 = arith.constant dense<0.000000e+00> : vector<16xf32>
    %91 = vector.multi_reduction <add>, %90, %cst_77 [1] : vector<16x256xf32> to vector<16xf32>
    %92 = vector.shape_cast %91 : vector<16xf32> to vector<16x1xf32>
    %cst_78 = arith.constant 7.812500e-03 : f32
    %93 = vector.broadcast %cst_78 : f32 to vector<16x1xf32>
    %94 = arith.mulf %92, %93 : vector<16x1xf32>
    %95 = vector.broadcast %94 : vector<16x1xf32> to vector<16x256xf32>
    %96 = arith.subf %87, %95 : vector<16x256xf32>
    %97 = arith.mulf %96, %96 : vector<16x256xf32>
    %98 = vector.broadcast %88 : vector<1x256xf32> to vector<16x256xf32>
    %99 = arith.mulf %97, %98 : vector<16x256xf32>
    %cst_79 = arith.constant dense<0.000000e+00> : vector<16xf32>
    %100 = vector.multi_reduction <add>, %99, %cst_79 [1] : vector<16x256xf32> to vector<16xf32>
    %101 = vector.shape_cast %100 : vector<16xf32> to vector<16x1xf32>
    %cst_80 = arith.constant 7.812500e-03 : f32
    %102 = vector.broadcast %cst_80 : f32 to vector<16x1xf32>
    %103 = arith.mulf %101, %102 : vector<16x1xf32>
    %104 = vector.broadcast %94 : vector<16x1xf32> to vector<16x256xf32>
    %105 = arith.subf %87, %104 : vector<16x256xf32>
    %cst_81 = arith.constant 9.99999974E-6 : f32
    %106 = vector.broadcast %cst_81 : f32 to vector<16x1xf32>
    %107 = arith.addf %103, %106 : vector<16x1xf32>
    %108 = math.rsqrt %107 : vector<16x1xf32>
    %109 = vector.broadcast %108 : vector<16x1xf32> to vector<16x256xf32>
    %110 = arith.mulf %105, %109 : vector<16x256xf32>
    %cst_82 = arith.constant 0.000000e+00 : f32
    %111 = vector.broadcast %cst_82 : f32 to vector<16x256xf32>
    %112 = arith.cmpf oge, %110, %111 : vector<16x256xf32>
    %cst_83 = arith.constant 2.000000e-01 : f32
    %113 = vector.broadcast %cst_83 : f32 to vector<16x256xf32>
    %114 = arith.mulf %113, %110 : vector<16x256xf32>
    %115 = arith.select %112, %110, %114 : vector<16x256xi1>, vector<16x256xf32>
    %116 = arith.truncf %115 : vector<16x256xf32> to vector<16x256xbf16>
    %c0_84 = arith.constant 0 : index
    %c0_85 = arith.constant 0 : index
    %117 = vector.load %arg5[%c0_84, %c0_85] : memref<16x256xbf16, #tpu.memory_space<vmem>>, vector<16x256xbf16>
    tpu.vector_store %arg5[%c0_84, %c0_85], %116 {strides = array<i32>} : memref<16x256xbf16, #tpu.memory_space<vmem>>, vector<16x256xbf16>,
    return
  }
  func.func @transform_0(%arg0: i32, %arg1: i32) -> (i32, i32, i32) {
    %c0_i32 = arith.constant 0 : i32
    %c0_i32_0 = arith.constant 0 : i32
    %c0_i32_1 = arith.constant 0 : i32
    return %c0_i32, %arg0, %c0_i32_0 : i32, i32, i32
  }
  func.func @transform_2(%arg0: i32, %arg1: i32) -> (i32, i32) {
    %c0_i32 = arith.constant 0 : i32
    %c0_i32_0 = arith.constant 0 : i32
    return %c0_i32, %arg1 : i32, i32
  }
  func.func @transform_3(%arg0: i32, %arg1: i32) -> (i32, i32) {
    %c0_i32 = arith.constant 0 : i32
    return %arg0, %arg1 : i32, i32
  }
}

module attributes {stable_mosaic.version = 11 : i64} {
  func.func @_conv_kernel(%arg0: i32, %arg1: i32, %arg2: memref<9x16x16xbf16, #tpu.memory_space<vmem>>, %arg3: memref<16x896xbf16, #tpu.memory_space<any>>, %arg4: memref<16x768xf32, #tpu.memory_space<vmem>>, %arg5: memref<1x16x896xbf16, #tpu.memory_space<vmem>>, %arg6: memref<1x!tpu.dma_semaphore, #tpu.memory_space<semaphore_mem>>, %arg7: memref<16x768xf32, #tpu.memory_space<vmem>>) attributes {dimension_semantics = [#tpu.dimension_semantics<parallel>, #tpu.dimension_semantics<parallel>], iteration_bounds = array<i64: 1, 1>, scalar_prefetch = 0 : i64, scratch_operands = 3 : i64, tpu.core_type = #tpu.core_type<tc>, window_params = [{transform_indices = @transform_0, window_bounds = array<i64: 9, 16, 16>}, {}, {transform_indices = @transform_2, window_bounds = array<i64: 16, 768>}]} {
    %c768_i32 = arith.constant 768 : i32
    %0 = arith.muli %arg1, %c768_i32 : i32
    %c0_i32 = arith.constant 0 : i32
    %c0_i32_0 = arith.constant 0 : i32
    %c0_i32_1 = arith.constant 0 : i32
    %1 = tpu.memref_slice %arg3[%c0_i32_1, %0] : memref<16x896xbf16, #tpu.memory_space<any>> -> memref<16x896xbf16, #tpu.memory_space<any>>
    %c0_i32_2 = arith.constant 0 : i32
    %c0_i32_3 = arith.constant 0 : i32
    %2 = tpu.memref_slice %arg5[%c0_i32, %c0_i32_2, %c0_i32_3] : memref<1x16x896xbf16, #tpu.memory_space<vmem>> -> memref<1x16x896xbf16, #tpu.memory_space<vmem>>
    %3 = tpu.memref_squeeze %2 : memref<1x16x896xbf16, #tpu.memory_space<vmem>> -> memref<16x896xbf16, #tpu.memory_space<vmem>>
    %4 = tpu.memref_slice %arg6[%c0_i32_0] : memref<1x!tpu.dma_semaphore, #tpu.memory_space<semaphore_mem>> -> memref<1x!tpu.dma_semaphore, #tpu.memory_space<semaphore_mem>>
    %5 = tpu.memref_squeeze %4 : memref<1x!tpu.dma_semaphore, #tpu.memory_space<semaphore_mem>> -> memref<!tpu.dma_semaphore, #tpu.memory_space<semaphore_mem>>
    tpu.enqueue_dma source(%1 : memref<16x896xbf16, #tpu.memory_space<any>>) target(%3 : memref<16x896xbf16, #tpu.memory_space<vmem>>) target_semaphore(%5 : memref<!tpu.dma_semaphore, #tpu.memory_space<semaphore_mem>>)
    %c768_i32_4 = arith.constant 768 : i32
    %6 = arith.muli %arg1, %c768_i32_4 : i32
    %c0_i32_5 = arith.constant 0 : i32
    %c0_i32_6 = arith.constant 0 : i32
    %c0_i32_7 = arith.constant 0 : i32
    %7 = tpu.memref_slice %arg3[%c0_i32_7, %6] : memref<16x896xbf16, #tpu.memory_space<any>> -> memref<16x896xbf16, #tpu.memory_space<any>>
    %c0_i32_8 = arith.constant 0 : i32
    %c0_i32_9 = arith.constant 0 : i32
    %8 = tpu.memref_slice %arg5[%c0_i32_5, %c0_i32_8, %c0_i32_9] : memref<1x16x896xbf16, #tpu.memory_space<vmem>> -> memref<1x16x896xbf16, #tpu.memory_space<vmem>>
    %9 = tpu.memref_squeeze %8 : memref<1x16x896xbf16, #tpu.memory_space<vmem>> -> memref<16x896xbf16, #tpu.memory_space<vmem>>
    %10 = tpu.memref_slice %arg6[%c0_i32_6] : memref<1x!tpu.dma_semaphore, #tpu.memory_space<semaphore_mem>> -> memref<1x!tpu.dma_semaphore, #tpu.memory_space<semaphore_mem>>
    %11 = tpu.memref_squeeze %10 : memref<1x!tpu.dma_semaphore, #tpu.memory_space<semaphore_mem>> -> memref<!tpu.dma_semaphore, #tpu.memory_space<semaphore_mem>>
    tpu.wait_dma2 semaphore(%11 : memref<!tpu.dma_semaphore, #tpu.memory_space<semaphore_mem>>) src(%7 : memref<16x896xbf16, #tpu.memory_space<any>>) dst(%9 : memref<16x896xbf16, #tpu.memory_space<vmem>>)
    %c0 = arith.constant 0 : index
    %c0_10 = arith.constant 0 : index
    %c0_11 = arith.constant 0 : index
    %12 = vector.load %arg5[%c0, %c0_10, %c0_11] : memref<1x16x896xbf16, #tpu.memory_space<vmem>>, vector<1x16x896xbf16>
    %13 = vector.shape_cast %12 : vector<1x16x896xbf16> to vector<16x896xbf16>
    %c0_12 = arith.constant 0 : index
    %c0_13 = arith.constant 0 : index
    %c0_14 = arith.constant 0 : index
    %14 = vector.load %arg2[%c0_12, %c0_13, %c0_14] : memref<9x16x16xbf16, #tpu.memory_space<vmem>>, vector<1x16x16xbf16>
    %15 = vector.shape_cast %14 : vector<1x16x16xbf16> to vector<16x16xbf16>
    %16 = vector.extract_strided_slice %13 {offsets = [0, 0], sizes = [16, 768], strides = [1, 1]} : vector<16x896xbf16> to vector<16x768xbf16>
    %cst = arith.constant dense<0.000000e+00> : vector<16x768xf32>
    %17 = tpu.matmul %15, %16, %cst {dimension_numbers = #tpu.dot_dimension_numbers<[1], [0], [0], [1], [0, 0, 1, 1], [], []>} : vector<16x16xbf16>, vector<16x768xbf16>, vector<16x768xf32> -> vector<16x768xf32>
    %c0_15 = arith.constant 0 : index
    %c0_16 = arith.constant 0 : index
    %18 = vector.load %arg7[%c0_15, %c0_16] : memref<16x768xf32, #tpu.memory_space<vmem>>, vector<16x768xf32>
    tpu.vector_store %arg7[%c0_15, %c0_16], %17 {strides = array<i32>} : memref<16x768xf32, #tpu.memory_space<vmem>>, vector<16x768xf32>,
    %c1 = arith.constant 1 : index
    %c0_17 = arith.constant 0 : index
    %c0_18 = arith.constant 0 : index
    %19 = vector.load %arg2[%c1, %c0_17, %c0_18] : memref<9x16x16xbf16, #tpu.memory_space<vmem>>, vector<1x16x16xbf16>
    %20 = vector.shape_cast %19 : vector<1x16x16xbf16> to vector<16x16xbf16>
    %21 = vector.extract_strided_slice %13 {offsets = [0, 1], sizes = [16, 768], strides = [1, 1]} : vector<16x896xbf16> to vector<16x768xbf16>
    %cst_19 = arith.constant dense<0.000000e+00> : vector<16x768xf32>
    %22 = tpu.matmul %20, %21, %cst_19 {dimension_numbers = #tpu.dot_dimension_numbers<[1], [0], [0], [1], [0, 0, 1, 1], [], []>} : vector<16x16xbf16>, vector<16x768xbf16>, vector<16x768xf32> -> vector<16x768xf32>
    %c0_20 = arith.constant 0 : index
    %c0_21 = arith.constant 0 : index
    %23 = vector.load %arg7[%c0_20, %c0_21] : memref<16x768xf32, #tpu.memory_space<vmem>>, vector<16x768xf32>
    %24 = arith.addf %23, %22 : vector<16x768xf32>
    %c0_22 = arith.constant 0 : index
    %c0_23 = arith.constant 0 : index
    %25 = vector.load %arg7[%c0_22, %c0_23] : memref<16x768xf32, #tpu.memory_space<vmem>>, vector<16x768xf32>
    tpu.vector_store %arg7[%c0_22, %c0_23], %24 {strides = array<i32>} : memref<16x768xf32, #tpu.memory_space<vmem>>, vector<16x768xf32>,
    %c2 = arith.constant 2 : index
    %c0_24 = arith.constant 0 : index
    %c0_25 = arith.constant 0 : index
    %26 = vector.load %arg2[%c2, %c0_24, %c0_25] : memref<9x16x16xbf16, #tpu.memory_space<vmem>>, vector<1x16x16xbf16>
    %27 = vector.shape_cast %26 : vector<1x16x16xbf16> to vector<16x16xbf16>
    %28 = vector.extract_strided_slice %13 {offsets = [0, 2], sizes = [16, 768], strides = [1, 1]} : vector<16x896xbf16> to vector<16x768xbf16>
    %cst_26 = arith.constant dense<0.000000e+00> : vector<16x768xf32>
    %29 = tpu.matmul %27, %28, %cst_26 {dimension_numbers = #tpu.dot_dimension_numbers<[1], [0], [0], [1], [0, 0, 1, 1], [], []>} : vector<16x16xbf16>, vector<16x768xbf16>, vector<16x768xf32> -> vector<16x768xf32>
    %c0_27 = arith.constant 0 : index
    %c0_28 = arith.constant 0 : index
    %30 = vector.load %arg7[%c0_27, %c0_28] : memref<16x768xf32, #tpu.memory_space<vmem>>, vector<16x768xf32>
    %31 = arith.addf %30, %29 : vector<16x768xf32>
    %c0_29 = arith.constant 0 : index
    %c0_30 = arith.constant 0 : index
    %32 = vector.load %arg7[%c0_29, %c0_30] : memref<16x768xf32, #tpu.memory_space<vmem>>, vector<16x768xf32>
    tpu.vector_store %arg7[%c0_29, %c0_30], %31 {strides = array<i32>} : memref<16x768xf32, #tpu.memory_space<vmem>>, vector<16x768xf32>,
    %c3 = arith.constant 3 : index
    %c0_31 = arith.constant 0 : index
    %c0_32 = arith.constant 0 : index
    %33 = vector.load %arg2[%c3, %c0_31, %c0_32] : memref<9x16x16xbf16, #tpu.memory_space<vmem>>, vector<1x16x16xbf16>
    %34 = vector.shape_cast %33 : vector<1x16x16xbf16> to vector<16x16xbf16>
    %35 = vector.extract_strided_slice %13 {offsets = [0, 18], sizes = [16, 768], strides = [1, 1]} : vector<16x896xbf16> to vector<16x768xbf16>
    %cst_33 = arith.constant dense<0.000000e+00> : vector<16x768xf32>
    %36 = tpu.matmul %34, %35, %cst_33 {dimension_numbers = #tpu.dot_dimension_numbers<[1], [0], [0], [1], [0, 0, 1, 1], [], []>} : vector<16x16xbf16>, vector<16x768xbf16>, vector<16x768xf32> -> vector<16x768xf32>
    %c0_34 = arith.constant 0 : index
    %c0_35 = arith.constant 0 : index
    %37 = vector.load %arg7[%c0_34, %c0_35] : memref<16x768xf32, #tpu.memory_space<vmem>>, vector<16x768xf32>
    %38 = arith.addf %37, %36 : vector<16x768xf32>
    %c0_36 = arith.constant 0 : index
    %c0_37 = arith.constant 0 : index
    %39 = vector.load %arg7[%c0_36, %c0_37] : memref<16x768xf32, #tpu.memory_space<vmem>>, vector<16x768xf32>
    tpu.vector_store %arg7[%c0_36, %c0_37], %38 {strides = array<i32>} : memref<16x768xf32, #tpu.memory_space<vmem>>, vector<16x768xf32>,
    %c4 = arith.constant 4 : index
    %c0_38 = arith.constant 0 : index
    %c0_39 = arith.constant 0 : index
    %40 = vector.load %arg2[%c4, %c0_38, %c0_39] : memref<9x16x16xbf16, #tpu.memory_space<vmem>>, vector<1x16x16xbf16>
    %41 = vector.shape_cast %40 : vector<1x16x16xbf16> to vector<16x16xbf16>
    %42 = vector.extract_strided_slice %13 {offsets = [0, 19], sizes = [16, 768], strides = [1, 1]} : vector<16x896xbf16> to vector<16x768xbf16>
    %cst_40 = arith.constant dense<0.000000e+00> : vector<16x768xf32>
    %43 = tpu.matmul %41, %42, %cst_40 {dimension_numbers = #tpu.dot_dimension_numbers<[1], [0], [0], [1], [0, 0, 1, 1], [], []>} : vector<16x16xbf16>, vector<16x768xbf16>, vector<16x768xf32> -> vector<16x768xf32>
    %c0_41 = arith.constant 0 : index
    %c0_42 = arith.constant 0 : index
    %44 = vector.load %arg7[%c0_41, %c0_42] : memref<16x768xf32, #tpu.memory_space<vmem>>, vector<16x768xf32>
    %45 = arith.addf %44, %43 : vector<16x768xf32>
    %c0_43 = arith.constant 0 : index
    %c0_44 = arith.constant 0 : index
    %46 = vector.load %arg7[%c0_43, %c0_44] : memref<16x768xf32, #tpu.memory_space<vmem>>, vector<16x768xf32>
    tpu.vector_store %arg7[%c0_43, %c0_44], %45 {strides = array<i32>} : memref<16x768xf32, #tpu.memory_space<vmem>>, vector<16x768xf32>,
    %c5 = arith.constant 5 : index
    %c0_45 = arith.constant 0 : index
    %c0_46 = arith.constant 0 : index
    %47 = vector.load %arg2[%c5, %c0_45, %c0_46] : memref<9x16x16xbf16, #tpu.memory_space<vmem>>, vector<1x16x16xbf16>
    %48 = vector.shape_cast %47 : vector<1x16x16xbf16> to vector<16x16xbf16>
    %49 = vector.extract_strided_slice %13 {offsets = [0, 20], sizes = [16, 768], strides = [1, 1]} : vector<16x896xbf16> to vector<16x768xbf16>
    %cst_47 = arith.constant dense<0.000000e+00> : vector<16x768xf32>
    %50 = tpu.matmul %48, %49, %cst_47 {dimension_numbers = #tpu.dot_dimension_numbers<[1], [0], [0], [1], [0, 0, 1, 1], [], []>} : vector<16x16xbf16>, vector<16x768xbf16>, vector<16x768xf32> -> vector<16x768xf32>
    %c0_48 = arith.constant 0 : index
    %c0_49 = arith.constant 0 : index
    %51 = vector.load %arg7[%c0_48, %c0_49] : memref<16x768xf32, #tpu.memory_space<vmem>>, vector<16x768xf32>
    %52 = arith.addf %51, %50 : vector<16x768xf32>
    %c0_50 = arith.constant 0 : index
    %c0_51 = arith.constant 0 : index
    %53 = vector.load %arg7[%c0_50, %c0_51] : memref<16x768xf32, #tpu.memory_space<vmem>>, vector<16x768xf32>
    tpu.vector_store %arg7[%c0_50, %c0_51], %52 {strides = array<i32>} : memref<16x768xf32, #tpu.memory_space<vmem>>, vector<16x768xf32>,
    %c6 = arith.constant 6 : index
    %c0_52 = arith.constant 0 : index
    %c0_53 = arith.constant 0 : index
    %54 = vector.load %arg2[%c6, %c0_52, %c0_53] : memref<9x16x16xbf16, #tpu.memory_space<vmem>>, vector<1x16x16xbf16>
    %55 = vector.shape_cast %54 : vector<1x16x16xbf16> to vector<16x16xbf16>
    %56 = vector.extract_strided_slice %13 {offsets = [0, 36], sizes = [16, 768], strides = [1, 1]} : vector<16x896xbf16> to vector<16x768xbf16>
    %cst_54 = arith.constant dense<0.000000e+00> : vector<16x768xf32>
    %57 = tpu.matmul %55, %56, %cst_54 {dimension_numbers = #tpu.dot_dimension_numbers<[1], [0], [0], [1], [0, 0, 1, 1], [], []>} : vector<16x16xbf16>, vector<16x768xbf16>, vector<16x768xf32> -> vector<16x768xf32>
    %c0_55 = arith.constant 0 : index
    %c0_56 = arith.constant 0 : index
    %58 = vector.load %arg7[%c0_55, %c0_56] : memref<16x768xf32, #tpu.memory_space<vmem>>, vector<16x768xf32>
    %59 = arith.addf %58, %57 : vector<16x768xf32>
    %c0_57 = arith.constant 0 : index
    %c0_58 = arith.constant 0 : index
    %60 = vector.load %arg7[%c0_57, %c0_58] : memref<16x768xf32, #tpu.memory_space<vmem>>, vector<16x768xf32>
    tpu.vector_store %arg7[%c0_57, %c0_58], %59 {strides = array<i32>} : memref<16x768xf32, #tpu.memory_space<vmem>>, vector<16x768xf32>,
    %c7 = arith.constant 7 : index
    %c0_59 = arith.constant 0 : index
    %c0_60 = arith.constant 0 : index
    %61 = vector.load %arg2[%c7, %c0_59, %c0_60] : memref<9x16x16xbf16, #tpu.memory_space<vmem>>, vector<1x16x16xbf16>
    %62 = vector.shape_cast %61 : vector<1x16x16xbf16> to vector<16x16xbf16>
    %63 = vector.extract_strided_slice %13 {offsets = [0, 37], sizes = [16, 768], strides = [1, 1]} : vector<16x896xbf16> to vector<16x768xbf16>
    %cst_61 = arith.constant dense<0.000000e+00> : vector<16x768xf32>
    %64 = tpu.matmul %62, %63, %cst_61 {dimension_numbers = #tpu.dot_dimension_numbers<[1], [0], [0], [1], [0, 0, 1, 1], [], []>} : vector<16x16xbf16>, vector<16x768xbf16>, vector<16x768xf32> -> vector<16x768xf32>
    %c0_62 = arith.constant 0 : index
    %c0_63 = arith.constant 0 : index
    %65 = vector.load %arg7[%c0_62, %c0_63] : memref<16x768xf32, #tpu.memory_space<vmem>>, vector<16x768xf32>
    %66 = arith.addf %65, %64 : vector<16x768xf32>
    %c0_64 = arith.constant 0 : index
    %c0_65 = arith.constant 0 : index
    %67 = vector.load %arg7[%c0_64, %c0_65] : memref<16x768xf32, #tpu.memory_space<vmem>>, vector<16x768xf32>
    tpu.vector_store %arg7[%c0_64, %c0_65], %66 {strides = array<i32>} : memref<16x768xf32, #tpu.memory_space<vmem>>, vector<16x768xf32>,
    %c8 = arith.constant 8 : index
    %c0_66 = arith.constant 0 : index
    %c0_67 = arith.constant 0 : index
    %68 = vector.load %arg2[%c8, %c0_66, %c0_67] : memref<9x16x16xbf16, #tpu.memory_space<vmem>>, vector<1x16x16xbf16>
    %69 = vector.shape_cast %68 : vector<1x16x16xbf16> to vector<16x16xbf16>
    %70 = vector.extract_strided_slice %13 {offsets = [0, 38], sizes = [16, 768], strides = [1, 1]} : vector<16x896xbf16> to vector<16x768xbf16>
    %cst_68 = arith.constant dense<0.000000e+00> : vector<16x768xf32>
    %71 = tpu.matmul %69, %70, %cst_68 {dimension_numbers = #tpu.dot_dimension_numbers<[1], [0], [0], [1], [0, 0, 1, 1], [], []>} : vector<16x16xbf16>, vector<16x768xbf16>, vector<16x768xf32> -> vector<16x768xf32>
    %c0_69 = arith.constant 0 : index
    %c0_70 = arith.constant 0 : index
    %72 = vector.load %arg7[%c0_69, %c0_70] : memref<16x768xf32, #tpu.memory_space<vmem>>, vector<16x768xf32>
    %73 = arith.addf %72, %71 : vector<16x768xf32>
    %c0_71 = arith.constant 0 : index
    %c0_72 = arith.constant 0 : index
    %74 = vector.load %arg7[%c0_71, %c0_72] : memref<16x768xf32, #tpu.memory_space<vmem>>, vector<16x768xf32>
    tpu.vector_store %arg7[%c0_71, %c0_72], %73 {strides = array<i32>} : memref<16x768xf32, #tpu.memory_space<vmem>>, vector<16x768xf32>,
    %c0_73 = arith.constant 0 : index
    %c0_74 = arith.constant 0 : index
    %75 = vector.load %arg7[%c0_73, %c0_74] : memref<16x768xf32, #tpu.memory_space<vmem>>, vector<16x768xf32>
    %76 = math.tanh %75 : vector<16x768xf32>
    %c0_75 = arith.constant 0 : index
    %c0_76 = arith.constant 0 : index
    %77 = vector.load %arg4[%c0_75, %c0_76] : memref<16x768xf32, #tpu.memory_space<vmem>>, vector<16x768xf32>
    tpu.vector_store %arg4[%c0_75, %c0_76], %76 {strides = array<i32>} : memref<16x768xf32, #tpu.memory_space<vmem>>, vector<16x768xf32>,
    return
  }
  func.func @transform_0(%arg0: i32, %arg1: i32) -> (i32, i32, i32) {
    %c0_i32 = arith.constant 0 : i32
    %c0_i32_0 = arith.constant 0 : i32
    %c0_i32_1 = arith.constant 0 : i32
    return %c0_i32, %arg0, %c0_i32_0 : i32, i32, i32
  }
  func.func @transform_2(%arg0: i32, %arg1: i32) -> (i32, i32) {
    %c0_i32 = arith.constant 0 : i32
    return %arg0, %arg1 : i32, i32
  }
}

</mosaic_0001>

<llo_original>
// kernel: dcgan_g_resizedconv_forward.3
$region0: #{dcgan_g_resizedconv_forward.3}
  #allocation0 [shape = 'u32[]', space=smem, size = 0x4, offset = 0x4, fixed_abs, tag = 'smem constant byte address 0x4 - core index']
  #allocation1 [shape = 'u32[144,128]{1,0:T(1,128)}', space=vmem, size = 0x12000, scoped, tag = 'internal scratch']
  #allocation2 [shape = 'bf16[2,16,256]{2,1,0:T(8,128)(2,1)}', space=vmem, size = 0x4000, scoped, tag = 'scratch operand']
  #allocation3 [shape = 's32[2]{0}', space=sflag, size = 0x8, scoped, tag = 'scratch operand']
  #allocation4 [shape = 'f32[16,128]{1,0:T(8,128)}', space=vmem, size = 0x2000, scoped, tag = 'scratch operand']
  #allocation5 [shape = 's32[]', space=sflag, size = 0x4, offset = 0, fixed_abs, tag = 'sflag constant byte address 0x0 - dummy sync flag']
  #allocation6 [shape = 's32[]', space=sflag, size = 0x4, offset = 0, fixed_abs, tag = 'sflag constant byte address 0x0 - dummy sync flag']
  %s0 = inlined_call_operand.vmem [shape: bf16[16,16,16], index: 0, kind: input, shape index: {}]
  %s1 = inlined_call_operand.vmem [shape: bf16[16,256], index: 1, kind: input, shape index: {}]
  %s2 = inlined_call_operand.vmem [shape: f32[1,128], index: 2, kind: input, shape index: {}]
  %s3 = inlined_call_operand.vmem [shape: bf16[16,128], index: 3, kind: output, shape index: {}]
  %s4 = sld [smem:[#allocation0]]
  $region94: #{dcgan_g_resizedconv_forward.3} parent=0
    _
  %s6 = ssub.s32 1, %s4
  %s7 = scalar_select 0, %s6, %s4
  // Predicated region
  $region2: #{dcgan_g_resizedconv_forward.3} parent=0 // pred_check
    _
  $region3: #{dcgan_g_resizedconv_forward.3} parent=0 // pred_check_branch
    %9 = sbr.rel (0) target = $region5
  $region4: #{dcgan_g_resizedconv_forward.3} parent=0 // pred_region
    _
  $region5: #{dcgan_g_resizedconv_forward.3} parent=0 // pred_fallthru
    _
  // Predicated region
  $region6: #{dcgan_g_resizedconv_forward.3} parent=0 // pred_check
    _
  $region7: #{dcgan_g_resizedconv_forward.3} parent=0 // pred_check_branch
    %11 = sbr.rel (0) target = $region9
  $region8: #{dcgan_g_resizedconv_forward.3} parent=0 // pred_region
    _
  $region9: #{dcgan_g_resizedconv_forward.3} parent=0 // pred_fallthru
    _
  %s13 = ssub.s32 0, 0
  %s14 = ssub.s32 0, 0
  %p15 = scmp.ne.s32.totalorder 0, 0
  %p16 = scmp.lt.s32.totalorder 0, 0
  %p17 = pnand %p16, %p15
  %p18 = pneg %p17
  %s19 = sadd.s32 0, 2
  %s20 = scalar_select %p18, %s19, 0
  %p21 = scmp.eq.s32.totalorder 0, 0
  // Predicated region
  $region10: #{dcgan_g_resizedconv_forward.3} parent=0 // pred_check
    %p22 = pneg %p21
  $region11: #{dcgan_g_resizedconv_forward.3} parent=0 // pred_check_branch
    %24 = sbr.rel (%p22) target = $region13
  $region12: #{dcgan_g_resizedconv_forward.3} parent=0 // pred_region
    %s25 = smul.u32 0, 128
    %s26 = sshra.s32 %s25, 7
    %s27 = sand.u32 %s25, 127
    %s28 = smul.addr %s26, 4
    %s29 = scalar_lea.vmem %s1, %s28
    %s30 = smul.u32 %s20, 4
    %s31 = smul.addr %s30, 4
    %s32 = scalar_lea.vmem [#allocation2], %s31
    %s33 = scalar_lea.sflag [#allocation3], %s20
    %p35 = scmp.lt.u32.totalorder 16, 8
    %p36 = pneg %p35
    // Predicated region
    $region14: #{dcgan_g_resizedconv_forward.3} parent=12 // pred_check
      _
    $region15: #{dcgan_g_resizedconv_forward.3} parent=12 // pred_check_branch
      %38 = sbr.rel (%p35) target = $region17
    $region16: #{dcgan_g_resizedconv_forward.3} parent=12 // pred_region
      %s54 = sand.u32 16, 7
      %p55 = scmp.eq.s32.totalorder %s54, 0
      // Predicated region
      $region29: #{dcgan_g_resizedconv_forward.3} parent=16 // pred_check
        %p56 = pneg %p55
      $region30: #{dcgan_g_resizedconv_forward.3} parent=16 // pred_check_branch
        %58 = sbr.rel (%p56) target = $region32
      $region31: #{dcgan_g_resizedconv_forward.3} parent=16 // pred_region
        loop: start=0, step=1, limit=1
        $region33: #{dcgan_g_resizedconv_forward.3} parent=31 // loop_pre_header
          _
        $region34: #{dcgan_g_resizedconv_forward.3} parent=31 // loop_header
          %s60 = sphi 0, %s64
          %p61 = scmp.ge.s32.totalorder %s60, 1
          %s65 = sphi %s29, %s29
          %s66 = sphi %s32, %s32
        $region35: #{dcgan_g_resizedconv_forward.3} parent=31 // loop_header_branch
          %63 = sbr.rel (%p61) target = $region39
        $region36: #{dcgan_g_resizedconv_forward.3} parent=31 // loop_body
          %v67 = vld [vmem:[%s65] sm:$0xff]
          %68 = vst [vmem:[%s66] sm:$0xff] %v67
          %v69 = vld [vmem:[%s65 + $0x8] sm:$0xff]
          %70 = vst [vmem:[%s66 + $0x8] sm:$0xff] %v69
        $region37: #{dcgan_g_resizedconv_forward.3} parent=31 // loop_footer
          %s64 = sadd.s32 1, %s60
        $region38: #{dcgan_g_resizedconv_forward.3} parent=31 // loop_footer_branch
          %59 = sbr.rel target = $region34
        $region39: #{dcgan_g_resizedconv_forward.3} parent=31 // loop_exit
          _
      $region32: #{dcgan_g_resizedconv_forward.3} parent=16 // pred_fallthru
        _
      %p71 = pneg %p55
      // Predicated region
      $region40: #{dcgan_g_resizedconv_forward.3} parent=16 // pred_check
        _
      $region41: #{dcgan_g_resizedconv_forward.3} parent=16 // pred_check_branch
        %73 = sbr.rel (%p55) target = $region43
      $region42: #{dcgan_g_resizedconv_forward.3} parent=16 // pred_region
        %s74 = sand.u32 16, 7
      $region43: #{dcgan_g_resizedconv_forward.3} parent=16 // pred_fallthru
        _
    $region17: #{dcgan_g_resizedconv_forward.3} parent=12 // pred_fallthru
      _
    // Predicated region
    $region18: #{dcgan_g_resizedconv_forward.3} parent=12 // pred_check
      %p39 = pneg %p35
    $region19: #{dcgan_g_resizedconv_forward.3} parent=12 // pred_check_branch
      %41 = sbr.rel (%p39) target = $region21
    $region20: #{dcgan_g_resizedconv_forward.3} parent=12 // pred_region
      %s42 = sshll.u32 1, 16
      %s43 = ssub.s32 %s42, 1
      loop: start=0, step=1, limit=1
      $region22: #{dcgan_g_resizedconv_forward.3} parent=20 // loop_pre_header
        _
      $region23: #{dcgan_g_resizedconv_forward.3} parent=20 // loop_header
        %s45 = sphi 0, %s49
        %p46 = scmp.ge.s32.totalorder %s45, 1
        %s50 = sphi %s29, %s29
        %s51 = sphi %s32, %s32
      $region24: #{dcgan_g_resizedconv_forward.3} parent=20 // loop_header_branch
        %48 = sbr.rel (%p46) target = $region28
      $region25: #{dcgan_g_resizedconv_forward.3} parent=20 // loop_body
        %v52 = vld [vmem:[%s50] sm:%s43]
        %53 = vst [vmem:[%s51] sm:%s43] %v52
      $region26: #{dcgan_g_resizedconv_forward.3} parent=20 // loop_footer
        %s49 = sadd.s32 1, %s45
      $region27: #{dcgan_g_resizedconv_forward.3} parent=20 // loop_footer_branch
        %44 = sbr.rel target = $region23
      $region28: #{dcgan_g_resizedconv_forward.3} parent=20 // loop_exit
        _
    $region21: #{dcgan_g_resizedconv_forward.3} parent=12 // pred_fallthru
      _
    // Predicated region
    $region44: #{dcgan_g_resizedconv_forward.3} parent=12 // pred_check
      _
    $region45: #{dcgan_g_resizedconv_forward.3} parent=12 // pred_check_branch
      %77 = sbr.rel (0) target = $region47
    $region46: #{dcgan_g_resizedconv_forward.3} parent=12 // pred_region
      %78 = vsyncadd %s33, 256
    $region47: #{dcgan_g_resizedconv_forward.3} parent=12 // pred_fallthru
      _
  $region13: #{dcgan_g_resizedconv_forward.3} parent=0 // pred_fallthru
    _
  %s79 = smul.u32 %s20, 4
  %s80 = smul.addr %s79, 4
  %s81 = scalar_lea.vmem [#allocation2], %s80
  %s82 = scalar_lea.sflag [#allocation3], %s20
  %s83 = smul.u32 4, 2
  %s84 = smul.u32 %s83, 2
  %s85 = sshll.u32 %s84, 4
  %86 = dma.done %s82, %s85
  %s87 = sadd.s32 0, 1
  %p88 = scmp.lt.s32.totalorder %s87, 1
  // Predicated region
  $region48: #{dcgan_g_resizedconv_forward.3} parent=0 // pred_check
    %p89 = pneg %p88
  $region49: #{dcgan_g_resizedconv_forward.3} parent=0 // pred_check_branch
    %91 = sbr.rel (%p89) target = $region51
  $region50: #{dcgan_g_resizedconv_forward.3} parent=0 // pred_region
    %s92 = ssub.s32 1, %s20
    %s93 = smul.u32 %s87, 128
    %s94 = sshra.s32 %s93, 7
    %s95 = sand.u32 %s93, 127
    %s96 = smul.addr %s94, 4
    %s97 = scalar_lea.vmem %s1, %s96
    %s98 = smul.u32 %s92, 4
    %s99 = smul.addr %s98, 4
    %s100 = scalar_lea.vmem [#allocation2], %s99
    %s101 = scalar_lea.sflag [#allocation3], %s92
    %p103 = scmp.lt.u32.totalorder 16, 8
    %p104 = pneg %p103
    // Predicated region
    $region52: #{dcgan_g_resizedconv_forward.3} parent=50 // pred_check
      _
    $region53: #{dcgan_g_resizedconv_forward.3} parent=50 // pred_check_branch
      %106 = sbr.rel (%p103) target = $region55
    $region54: #{dcgan_g_resizedconv_forward.3} parent=50 // pred_region
      %s122 = sand.u32 16, 7
      %p123 = scmp.eq.s32.totalorder %s122, 0
      // Predicated region
      $region67: #{dcgan_g_resizedconv_forward.3} parent=54 // pred_check
        %p124 = pneg %p123
      $region68: #{dcgan_g_resizedconv_forward.3} parent=54 // pred_check_branch
        %126 = sbr.rel (%p124) target = $region70
      $region69: #{dcgan_g_resizedconv_forward.3} parent=54 // pred_region
        loop: start=0, step=1, limit=1
        $region71: #{dcgan_g_resizedconv_forward.3} parent=69 // loop_pre_header
          _
        $region72: #{dcgan_g_resizedconv_forward.3} parent=69 // loop_header
          %s128 = sphi 0, %s132
          %p129 = scmp.ge.s32.totalorder %s128, 1
          %s133 = sphi %s97, %s97
          %s134 = sphi %s100, %s100
        $region73: #{dcgan_g_resizedconv_forward.3} parent=69 // loop_header_branch
          %131 = sbr.rel (%p129) target = $region77
        $region74: #{dcgan_g_resizedconv_forward.3} parent=69 // loop_body
          %v135 = vld [vmem:[%s133] sm:$0xff]
          %136 = vst [vmem:[%s134] sm:$0xff] %v135
          %v137 = vld [vmem:[%s133 + $0x8] sm:$0xff]
          %138 = vst [vmem:[%s134 + $0x8] sm:$0xff] %v137
        $region75: #{dcgan_g_resizedconv_forward.3} parent=69 // loop_footer
          %s132 = sadd.s32 1, %s128
        $region76: #{dcgan_g_resizedconv_forward.3} parent=69 // loop_footer_branch
          %127 = sbr.rel target = $region72
        $region77: #{dcgan_g_resizedconv_forward.3} parent=69 // loop_exit
          _
      $region70: #{dcgan_g_resizedconv_forward.3} parent=54 // pred_fallthru
        _
      %p139 = pneg %p123
      // Predicated region
      $region78: #{dcgan_g_resizedconv_forward.3} parent=54 // pred_check
        _
      $region79: #{dcgan_g_resizedconv_forward.3} parent=54 // pred_check_branch
        %141 = sbr.rel (%p123) target = $region81
      $region80: #{dcgan_g_resizedconv_forward.3} parent=54 // pred_region
        %s142 = sand.u32 16, 7
      $region81: #{dcgan_g_resizedconv_forward.3} parent=54 // pred_fallthru
        _
    $region55: #{dcgan_g_resizedconv_forward.3} parent=50 // pred_fallthru
      _
    // Predicated region
    $region56: #{dcgan_g_resizedconv_forward.3} parent=50 // pred_check
      %p107 = pneg %p103
    $region57: #{dcgan_g_resizedconv_forward.3} parent=50 // pred_check_branch
      %109 = sbr.rel (%p107) target = $region59
    $region58: #{dcgan_g_resizedconv_forward.3} parent=50 // pred_region
      %s110 = sshll.u32 1, 16
      %s111 = ssub.s32 %s110, 1
      loop: start=0, step=1, limit=1
      $region60: #{dcgan_g_resizedconv_forward.3} parent=58 // loop_pre_header
        _
      $region61: #{dcgan_g_resizedconv_forward.3} parent=58 // loop_header
        %s113 = sphi 0, %s117
        %p114 = scmp.ge.s32.totalorder %s113, 1
        %s118 = sphi %s97, %s97
        %s119 = sphi %s100, %s100
      $region62: #{dcgan_g_resizedconv_forward.3} parent=58 // loop_header_branch
        %116 = sbr.rel (%p114) target = $region66
      $region63: #{dcgan_g_resizedconv_forward.3} parent=58 // loop_body
        %v120 = vld [vmem:[%s118] sm:%s111]
        %121 = vst [vmem:[%s119] sm:%s111] %v120
      $region64: #{dcgan_g_resizedconv_forward.3} parent=58 // loop_footer
        %s117 = sadd.s32 1, %s113
      $region65: #{dcgan_g_resizedconv_forward.3} parent=58 // loop_footer_branch
        %112 = sbr.rel target = $region61
      $region66: #{dcgan_g_resizedconv_forward.3} parent=58 // loop_exit
        _
    $region59: #{dcgan_g_resizedconv_forward.3} parent=50 // pred_fallthru
      _
    // Predicated region
    $region82: #{dcgan_g_resizedconv_forward.3} parent=50 // pred_check
      _
    $region83: #{dcgan_g_resizedconv_forward.3} parent=50 // pred_check_branch
      %145 = sbr.rel (0) target = $region85
    $region84: #{dcgan_g_resizedconv_forward.3} parent=50 // pred_region
      %146 = vsyncadd %s101, 256
    $region85: #{dcgan_g_resizedconv_forward.3} parent=50 // pred_fallthru
      _
  $region51: #{dcgan_g_resizedconv_forward.3} parent=0 // pred_fallthru
    _
  %v147 = vld [vmem:[%s81] sm:$0xff]
  %v148 = vld [vmem:[%s81 + $0x8] sm:$0xff]
  %v149 = vld [vmem:[%s0] sm:$0xf]
  %v150 = vld [vmem:[%s0 + $0x4] sm:$0xf]
  %v153 = vunpack.c.l.b16 %v149
  %v154 = vunpack.c.l.b16 %v150
  %v155 = vpack.c.b16 %v154, %v153
  %v158 = vunpack.c.l.b16 %v147
  %v159 = vunpack.c.l.b16 %v148
  %v160 = vpack.c.b16 %v159, %v158
  %vm162 = vcmask 130048
  %v164 = vsel %vm162, %v155, 0
  %166 = vmatprep.subr.bf16.mxu0 0
  %167 = vmatpush1.bf16.msra.mxu0 0
  %168 = vmatprep.subr.bf16.mxu0 0
  %169 = vmatpush1.bf16.msra.mxu0 0
  %170 = vmatprep.subr.bf16.mxu0 0
  %171 = vmatpush1.bf16.msra.mxu0 0
  %172 = vmatprep.subr.bf16.mxu0 0
  %173 = vmatpush1.bf16.msra.mxu0 0
  %174 = vmatprep.subr.bf16.mxu0 0
  %175 = vmatpush1.bf16.msra.mxu0 0
  %176 = vmatprep.subr.bf16.mxu0 0
  %177 = vmatpush1.bf16.msra.mxu0 0
  %178 = vmatprep.subr.bf16.mxu0 0
  %179 = vmatpush1.bf16.msra.mxu0 0
  %180 = vmatprep.subr.bf16.mxu0 0
  %181 = vmatpush1.bf16.msra.mxu0 %v160
  %182 = vmatprep.subr.bf16.mxu0 0
  %183 = vmatpush2.bf16.msra.mxu0 0
  %184 = vmatprep.subr.bf16.mxu0 0
  %185 = vmatpush2.bf16.msra.mxu0 0
  %186 = vmatprep.subr.bf16.mxu0 0
  %187 = vmatpush2.bf16.msra.mxu0 0
  %188 = vmatprep.subr.bf16.mxu0 0
  %189 = vmatpush2.bf16.msra.mxu0 0
  %190 = vmatprep.subr.bf16.mxu0 0
  %191 = vmatpush2.bf16.msra.mxu0 0
  %192 = vmatprep.subr.bf16.mxu0 0
  %193 = vmatpush2.bf16.msra.mxu0 0
  %194 = vmatprep.subr.bf16.mxu0 0
  %195 = vmatpush2.bf16.msra.mxu0 0
  %196 = vmatprep.subr.bf16.mxu0 0
  %197 = vmatpush2.bf16.msra.mxu0 0
  %198 = vmatprep.mubr.bf16.mxu0 0
  %199 = vmatmul.mubr.bf16.gmra.mxu0 %v164
  %v200 = vpop.f32.mrf.mxu0
  %v201 = vadd.f32 0.0, %v200
  %v202 = vpop.f32.mrf.mxu0
  %v203 = vpop.f32.mrf.mxu0
  %v204 = vadd.f32 0.0, %v203
  %v205 = vpop.f32.mrf.mxu0
  %206 = vdwg.mxu0
  %207 = vst [vmem:[#allocation4] sm:$0xff] %v201
  %208 = vst [vmem:[#allocation4 + $0x8] sm:$0xff] %v204
  %s209 = scalar_lea.vmem %s0, 8
  %v210 = vld [vmem:[%s209] sm:$0xf]
  %v211 = vld [vmem:[%s209 + $0x4] sm:$0xf]
  %v214 = vunpack.c.l.b16 %v210
  %v215 = vunpack.c.l.b16 %v211
  %v216 = vpack.c.b16 %v215, %v214
  %v217 = vunpack.c.h.b16 %v147
  %v218 = vunpack.c.h.b16 %v148
  %v219 = vpack.c.b16 %v218, %v217
  %220 = vrot.lane.b32.xlu0 %v160, 127
  %v221 = vpop.permute.xlu0 %220
  %222 = vrot.lane.b32.xlu0 %v219, 127
  %v223 = vpop.permute.xlu0 %222
  %vm224 = vcmask 1039360
  %v225 = vsel %vm224, %v221, %v223
  %v228 = vsel %vm162, %v216, 0
  %230 = vmatprep.subr.bf16.mxu0 0
  %231 = vmatpush1.bf16.msra.mxu0 0
  %232 = vmatprep.subr.bf16.mxu0 0
  %233 = vmatpush1.bf16.msra.mxu0 0
  %234 = vmatprep.subr.bf16.mxu0 0
  %235 = vmatpush1.bf16.msra.mxu0 0
  %236 = vmatprep.subr.bf16.mxu0 0
  %237 = vmatpush1.bf16.msra.mxu0 0
  %238 = vmatprep.subr.bf16.mxu0 0
  %239 = vmatpush1.bf16.msra.mxu0 0
  %240 = vmatprep.subr.bf16.mxu0 0
  %241 = vmatpush1.bf16.msra.mxu0 0
  %242 = vmatprep.subr.bf16.mxu0 0
  %243 = vmatpush1.bf16.msra.mxu0 0
  %244 = vmatprep.subr.bf16.mxu0 0
  %245 = vmatpush1.bf16.msra.mxu0 %v225
  %246 = vmatprep.subr.bf16.mxu0 0
  %247 = vmatpush2.bf16.msra.mxu0 0
  %248 = vmatprep.subr.bf16.mxu0 0
  %249 = vmatpush2.bf16.msra.mxu0 0
  %250 = vmatprep.subr.bf16.mxu0 0
  %251 = vmatpush2.bf16.msra.mxu0 0
  %252 = vmatprep.subr.bf16.mxu0 0
  %253 = vmatpush2.bf16.msra.mxu0 0
  %254 = vmatprep.subr.bf16.mxu0 0
  %255 = vmatpush2.bf16.msra.mxu0 0
  %256 = vmatprep.subr.bf16.mxu0 0
  %257 = vmatpush2.bf16.msra.mxu0 0
  %258 = vmatprep.subr.bf16.mxu0 0
  %259 = vmatpush2.bf16.msra.mxu0 0
  %260 = vmatprep.subr.bf16.mxu0 0
  %261 = vmatpush2.bf16.msra.mxu0 0
  %262 = vmatprep.mubr.bf16.mxu0 0
  %263 = vmatmul.mubr.bf16.gmra.mxu0 %v228
  %v264 = vpop.f32.mrf.mxu0
  %v265 = vadd.f32 0.0, %v264
  %v266 = vpop.f32.mrf.mxu0
  %v267 = vpop.f32.mrf.mxu0
  %v268 = vadd.f32 0.0, %v267
  %v269 = vpop.f32.mrf.mxu0
  %270 = vdwg.mxu0
  %v271 = vld [vmem:[#allocation4] sm:$0xff]
  %v272 = vld [vmem:[#allocation4 + $0x8] sm:$0xff]
  %v273 = vadd.f32 %v271, %v265
  %v274 = vadd.f32 %v272, %v268
  %275 = vst [vmem:[#allocation4] sm:$0xff] %v273
  %276 = vst [vmem:[#allocation4 + $0x8] sm:$0xff] %v274
  %s277 = scalar_lea.vmem %s0, 16
  %v278 = vld [vmem:[%s277] sm:$0xf]
  %v279 = vld [vmem:[%s277 + $0x4] sm:$0xf]
  %v282 = vunpack.c.l.b16 %v278
  %v283 = vunpack.c.l.b16 %v279
  %v284 = vpack.c.b16 %v283, %v282
  %285 = vrot.lane.b32.xlu0 %v160, 126
  %v286 = vpop.permute.xlu0 %285
  %287 = vrot.lane.b32.xlu0 %v219, 126
  %v288 = vpop.permute.xlu0 %287
  %vm289 = vcmask 1031168
  %v290 = vsel %vm289, %v286, %v288
  %v293 = vsel %vm162, %v284, 0
  %295 = vmatprep.subr.bf16.mxu0 0
  %296 = vmatpush1.bf16.msra.mxu0 0
  %297 = vmatprep.subr.bf16.mxu0 0
  %298 = vmatpush1.bf16.msra.mxu0 0
  %299 = vmatprep.subr.bf16.mxu0 0
  %300 = vmatpush1.bf16.msra.mxu0 0
  %301 = vmatprep.subr.bf16.mxu0 0
  %302 = vmatpush1.bf16.msra.mxu0 0
  %303 = vmatprep.subr.bf16.mxu0 0
  %304 = vmatpush1.bf16.msra.mxu0 0
  %305 = vmatprep.subr.bf16.mxu0 0
  %306 = vmatpush1.bf16.msra.mxu0 0
  %307 = vmatprep.subr.bf16.mxu0 0
  %308 = vmatpush1.bf16.msra.mxu0 0
  %309 = vmatprep.subr.bf16.mxu0 0
  %310 = vmatpush1.bf16.msra.mxu0 %v290
  %311 = vmatprep.subr.bf16.mxu0 0
  %312 = vmatpush2.bf16.msra.mxu0 0
  %313 = vmatprep.subr.bf16.mxu0 0
  %314 = vmatpush2.bf16.msra.mxu0 0
  %315 = vmatprep.subr.bf16.mxu0 0
  %316 = vmatpush2.bf16.msra.mxu0 0
  %317 = vmatprep.subr.bf16.mxu0 0
  %318 = vmatpush2.bf16.msra.mxu0 0
  %319 = vmatprep.subr.bf16.mxu0 0
  %320 = vmatpush2.bf16.msra.mxu0 0
  %321 = vmatprep.subr.bf16.mxu0 0
  %322 = vmatpush2.bf16.msra.mxu0 0
  %323 = vmatprep.subr.bf16.mxu0 0
  %324 = vmatpush2.bf16.msra.mxu0 0
  %325 = vmatprep.subr.bf16.mxu0 0
  %326 = vmatpush2.bf16.msra.mxu0 0
  %327 = vmatprep.mubr.bf16.mxu0 0
  %328 = vmatmul.mubr.bf16.gmra.mxu0 %v293
  %v329 = vpop.f32.mrf.mxu0
  %v330 = vadd.f32 0.0, %v329
  %v331 = vpop.f32.mrf.mxu0
  %v332 = vpop.f32.mrf.mxu0
  %v333 = vadd.f32 0.0, %v332
  %v334 = vpop.f32.mrf.mxu0
  %335 = vdwg.mxu0
  %v336 = vld [vmem:[#allocation4] sm:$0xff]
  %v337 = vld [vmem:[#allocation4 + $0x8] sm:$0xff]
  %v338 = vadd.f32 %v336, %v330
  %v339 = vadd.f32 %v337, %v333
  %340 = vst [vmem:[#allocation4] sm:$0xff] %v338
  %341 = vst [vmem:[#allocation4 + $0x8] sm:$0xff] %v339
  %s342 = scalar_lea.vmem %s0, 24
  %v343 = vld [vmem:[%s342] sm:$0xf]
  %v344 = vld [vmem:[%s342 + $0x4] sm:$0xf]
  %v347 = vunpack.c.l.b16 %v343
  %v348 = vunpack.c.l.b16 %v344
  %v349 = vpack.c.b16 %v348, %v347
  %350 = vrot.lane.b32.xlu0 %v160, 125
  %v351 = vpop.permute.xlu0 %350
  %352 = vrot.lane.b32.xlu0 %v219, 125
  %v353 = vpop.permute.xlu0 %352
  %vm354 = vcmask 1022976
  %v355 = vsel %vm354, %v351, %v353
  %v358 = vsel %vm162, %v349, 0
  %360 = vmatprep.subr.bf16.mxu0 0
  %361 = vmatpush1.bf16.msra.mxu0 0
  %362 = vmatprep.subr.bf16.mxu0 0
  %363 = vmatpush1.bf16.msra.mxu0 0
  %364 = vmatprep.subr.bf16.mxu0 0
  %365 = vmatpush1.bf16.msra.mxu0 0
  %366 = vmatprep.subr.bf16.mxu0 0
  %367 = vmatpush1.bf16.msra.mxu0 0
  %368 = vmatprep.subr.bf16.mxu0 0
  %369 = vmatpush1.bf16.msra.mxu0 0
  %370 = vmatprep.subr.bf16.mxu0 0
  %371 = vmatpush1.bf16.msra.mxu0 0
  %372 = vmatprep.subr.bf16.mxu0 0
  %373 = vmatpush1.bf16.msra.mxu0 0
  %374 = vmatprep.subr.bf16.mxu0 0
  %375 = vmatpush1.bf16.msra.mxu0 %v355
  %376 = vmatprep.subr.bf16.mxu0 0
  %377 = vmatpush2.bf16.msra.mxu0 0
  %378 = vmatprep.subr.bf16.mxu0 0
  %379 = vmatpush2.bf16.msra.mxu0 0
  %380 = vmatprep.subr.bf16.mxu0 0
  %381 = vmatpush2.bf16.msra.mxu0 0
  %382 = vmatprep.subr.bf16.mxu0 0
  %383 = vmatpush2.bf16.msra.mxu0 0
  %384 = vmatprep.subr.bf16.mxu0 0
  %385 = vmatpush2.bf16.msra.mxu0 0
  %386 = vmatprep.subr.bf16.mxu0 0
  %387 = vmatpush2.bf16.msra.mxu0 0
  %388 = vmatprep.subr.bf16.mxu0 0
  %389 = vmatpush2.bf16.msra.mxu0 0
  %390 = vmatprep.subr.bf16.mxu0 0
  %391 = vmatpush2.bf16.msra.mxu0 0
  %392 = vmatprep.mubr.bf16.mxu0 0
  %393 = vmatmul.mubr.bf16.gmra.mxu0 %v358
  %v394 = vpop.f32.mrf.mxu0
  %v395 = vadd.f32 0.0, %v394
  %v396 = vpop.f32.mrf.mxu0
  %v397 = vpop.f32.mrf.mxu0
  %v398 = vadd.f32 0.0, %v397
  %v399 = vpop.f32.mrf.mxu0
  %400 = vdwg.mxu0
  %v401 = vld [vmem:[#allocation4] sm:$0xff]
  %v402 = vld [vmem:[#allocation4 + $0x8] sm:$0xff]
  %v403 = vadd.f32 %v401, %v395
  %v404 = vadd.f32 %v402, %v398
  %405 = vst [vmem:[#allocation4] sm:$0xff] %v403
  %406 = vst [vmem:[#allocation4 + $0x8] sm:$0xff] %v404
  %s407 = scalar_lea.vmem %s0, 32
  %v408 = vld [vmem:[%s407] sm:$0xf]
  %v409 = vld [vmem:[%s407 + $0x4] sm:$0xf]
  %v412 = vunpack.c.l.b16 %v408
  %v413 = vunpack.c.l.b16 %v409
  %v414 = vpack.c.b16 %v413, %v412
  %415 = vrot.lane.b32.xlu0 %v160, 121
  %v416 = vpop.permute.xlu0 %415
  %417 = vrot.lane.b32.xlu0 %v219, 121
  %v418 = vpop.permute.xlu0 %417
  %vm419 = vcmask 990208
  %v420 = vsel %vm419, %v416, %v418
  %v423 = vsel %vm162, %v414, 0
  %425 = vmatprep.subr.bf16.mxu0 0
  %426 = vmatpush1.bf16.msra.mxu0 0
  %427 = vmatprep.subr.bf16.mxu0 0
  %428 = vmatpush1.bf16.msra.mxu0 0
  %429 = vmatprep.subr.bf16.mxu0 0
  %430 = vmatpush1.bf16.msra.mxu0 0
  %431 = vmatprep.subr.bf16.mxu0 0
  %432 = vmatpush1.bf16.msra.mxu0 0
  %433 = vmatprep.subr.bf16.mxu0 0
  %434 = vmatpush1.bf16.msra.mxu0 0
  %435 = vmatprep.subr.bf16.mxu0 0
  %436 = vmatpush1.bf16.msra.mxu0 0
  %437 = vmatprep.subr.bf16.mxu0 0
  %438 = vmatpush1.bf16.msra.mxu0 0
  %439 = vmatprep.subr.bf16.mxu0 0
  %440 = vmatpush1.bf16.msra.mxu0 %v420
  %441 = vmatprep.subr.bf16.mxu0 0
  %442 = vmatpush2.bf16.msra.mxu0 0
  %443 = vmatprep.subr.bf16.mxu0 0
  %444 = vmatpush2.bf16.msra.mxu0 0
  %445 = vmatprep.subr.bf16.mxu0 0
  %446 = vmatpush2.bf16.msra.mxu0 0
  %447 = vmatprep.subr.bf16.mxu0 0
  %448 = vmatpush2.bf16.msra.mxu0 0
  %449 = vmatprep.subr.bf16.mxu0 0
  %450 = vmatpush2.bf16.msra.mxu0 0
  %451 = vmatprep.subr.bf16.mxu0 0
  %452 = vmatpush2.bf16.msra.mxu0 0
  %453 = vmatprep.subr.bf16.mxu0 0
  %454 = vmatpush2.bf16.msra.mxu0 0
  %455 = vmatprep.subr.bf16.mxu0 0
  %456 = vmatpush2.bf16.msra.mxu0 0
  %457 = vmatprep.mubr.bf16.mxu0 0
  %458 = vmatmul.mubr.bf16.gmra.mxu0 %v423
  %v459 = vpop.f32.mrf.mxu0
  %v460 = vadd.f32 0.0, %v459
  %v461 = vpop.f32.mrf.mxu0
  %v462 = vpop.f32.mrf.mxu0
  %v463 = vadd.f32 0.0, %v462
  %v464 = vpop.f32.mrf.mxu0
  %465 = vdwg.mxu0
  %v466 = vld [vmem:[#allocation4] sm:$0xff]
  %v467 = vld [vmem:[#allocation4 + $0x8] sm:$0xff]
  %v468 = vadd.f32 %v466, %v460
  %v469 = vadd.f32 %v467, %v463
  %470 = vst [vmem:[#allocation4] sm:$0xff] %v468
  %471 = vst [vmem:[#allocation4 + $0x8] sm:$0xff] %v469
  %s472 = scalar_lea.vmem %s0, 40
  %v473 = vld [vmem:[%s472] sm:$0xf]
  %v474 = vld [vmem:[%s472 + $0x4] sm:$0xf]
  %v477 = vunpack.c.l.b16 %v473
  %v478 = vunpack.c.l.b16 %v474
  %v479 = vpack.c.b16 %v478, %v477
  %480 = vrot.lane.b32.xlu0 %v160, 120
  %v481 = vpop.permute.xlu0 %480
  %482 = vrot.lane.b32.xlu0 %v219, 120
  %v483 = vpop.permute.xlu0 %482
  %vm484 = vcmask 982016
  %v485 = vsel %vm484, %v481, %v483
  %v488 = vsel %vm162, %v479, 0
  %490 = vmatprep.subr.bf16.mxu0 0
  %491 = vmatpush1.bf16.msra.mxu0 0
  %492 = vmatprep.subr.bf16.mxu0 0
  %493 = vmatpush1.bf16.msra.mxu0 0
  %494 = vmatprep.subr.bf16.mxu0 0
  %495 = vmatpush1.bf16.msra.mxu0 0
  %496 = vmatprep.subr.bf16.mxu0 0
  %497 = vmatpush1.bf16.msra.mxu0 0
  %498 = vmatprep.subr.bf16.mxu0 0
  %499 = vmatpush1.bf16.msra.mxu0 0
  %500 = vmatprep.subr.bf16.mxu0 0
  %501 = vmatpush1.bf16.msra.mxu0 0
  %502 = vmatprep.subr.bf16.mxu0 0
  %503 = vmatpush1.bf16.msra.mxu0 0
  %504 = vmatprep.subr.bf16.mxu0 0
  %505 = vmatpush1.bf16.msra.mxu0 %v485
  %506 = vmatprep.subr.bf16.mxu0 0
  %507 = vmatpush2.bf16.msra.mxu0 0
  %508 = vmatprep.subr.bf16.mxu0 0
  %509 = vmatpush2.bf16.msra.mxu0 0
  %510 = vmatprep.subr.bf16.mxu0 0
  %511 = vmatpush2.bf16.msra.mxu0 0
  %512 = vmatprep.subr.bf16.mxu0 0
  %513 = vmatpush2.bf16.msra.mxu0 0
  %514 = vmatprep.subr.bf16.mxu0 0
  %515 = vmatpush2.bf16.msra.mxu0 0
  %516 = vmatprep.subr.bf16.mxu0 0
  %517 = vmatpush2.bf16.msra.mxu0 0
  %518 = vmatprep.subr.bf16.mxu0 0
  %519 = vmatpush2.bf16.msra.mxu0 0
  %520 = vmatprep.subr.bf16.mxu0 0
  %521 = vmatpush2.bf16.msra.mxu0 0
  %522 = vmatprep.mubr.bf16.mxu0 0
  %523 = vmatmul.mubr.bf16.gmra.mxu0 %v488
  %v524 = vpop.f32.mrf.mxu0
  %v525 = vadd.f32 0.0, %v524
  %v526 = vpop.f32.mrf.mxu0
  %v527 = vpop.f32.mrf.mxu0
  %v528 = vadd.f32 0.0, %v527
  %v529 = vpop.f32.mrf.mxu0
  %530 = vdwg.mxu0
  %v531 = vld [vmem:[#allocation4] sm:$0xff]
  %v532 = vld [vmem:[#allocation4 + $0x8] sm:$0xff]
  %v533 = vadd.f32 %v531, %v525
  %v534 = vadd.f32 %v532, %v528
  %535 = vst [vmem:[#allocation4] sm:$0xff] %v533
  %536 = vst [vmem:[#allocation4 + $0x8] sm:$0xff] %v534
  %s537 = scalar_lea.vmem %s0, 48
  %v538 = vld [vmem:[%s537] sm:$0xf]
  %v539 = vld [vmem:[%s537 + $0x4] sm:$0xf]
  %v542 = vunpack.c.l.b16 %v538
  %v543 = vunpack.c.l.b16 %v539
  %v544 = vpack.c.b16 %v543, %v542
  %545 = vrot.lane.b32.xlu0 %v160, 119
  %v546 = vpop.permute.xlu0 %545
  %547 = vrot.lane.b32.xlu0 %v219, 119
  %v548 = vpop.permute.xlu0 %547
  %vm549 = vcmask 973824
  %v550 = vsel %vm549, %v546, %v548
  %v553 = vsel %vm162, %v544, 0
  %555 = vmatprep.subr.bf16.mxu0 0
  %556 = vmatpush1.bf16.msra.mxu0 0
  %557 = vmatprep.subr.bf16.mxu0 0
  %558 = vmatpush1.bf16.msra.mxu0 0
  %559 = vmatprep.subr.bf16.mxu0 0
  %560 = vmatpush1.bf16.msra.mxu0 0
  %561 = vmatprep.subr.bf16.mxu0 0
  %562 = vmatpush1.bf16.msra.mxu0 0
  %563 = vmatprep.subr.bf16.mxu0 0
  %564 = vmatpush1.bf16.msra.mxu0 0
  %565 = vmatprep.subr.bf16.mxu0 0
  %566 = vmatpush1.bf16.msra.mxu0 0
  %567 = vmatprep.subr.bf16.mxu0 0
  %568 = vmatpush1.bf16.msra.mxu0 0
  %569 = vmatprep.subr.bf16.mxu0 0
  %570 = vmatpush1.bf16.msra.mxu0 %v550
  %571 = vmatprep.subr.bf16.mxu0 0
  %572 = vmatpush2.bf16.msra.mxu0 0
  %573 = vmatprep.subr.bf16.mxu0 0
  %574 = vmatpush2.bf16.msra.mxu0 0
  %575 = vmatprep.subr.bf16.mxu0 0
  %576 = vmatpush2.bf16.msra.mxu0 0
  %577 = vmatprep.subr.bf16.mxu0 0
  %578 = vmatpush2.bf16.msra.mxu0 0
  %579 = vmatprep.subr.bf16.mxu0 0
  %580 = vmatpush2.bf16.msra.mxu0 0
  %581 = vmatprep.subr.bf16.mxu0 0
  %582 = vmatpush2.bf16.msra.mxu0 0
  %583 = vmatprep.subr.bf16.mxu0 0
  %584 = vmatpush2.bf16.msra.mxu0 0
  %585 = vmatprep.subr.bf16.mxu0 0
  %586 = vmatpush2.bf16.msra.mxu0 0
  %587 = vmatprep.mubr.bf16.mxu0 0
  %588 = vmatmul.mubr.bf16.gmra.mxu0 %v553
  %v589 = vpop.f32.mrf.mxu0
  %v590 = vadd.f32 0.0, %v589
  %v591 = vpop.f32.mrf.mxu0
  %v592 = vpop.f32.mrf.mxu0
  %v593 = vadd.f32 0.0, %v592
  %v594 = vpop.f32.mrf.mxu0
  %595 = vdwg.mxu0
  %v596 = vld [vmem:[#allocation4] sm:$0xff]
  %v597 = vld [vmem:[#allocation4 + $0x8] sm:$0xff]
  %v598 = vadd.f32 %v596, %v590
  %v599 = vadd.f32 %v597, %v593
  %600 = vst [vmem:[#allocation4] sm:$0xff] %v598
  %601 = vst [vmem:[#allocation4 + $0x8] sm:$0xff] %v599
  %s602 = scalar_lea.vmem %s0, 56
  %v603 = vld [vmem:[%s602] sm:$0xf]
  %v604 = vld [vmem:[%s602 + $0x4] sm:$0xf]
  %v607 = vunpack.c.l.b16 %v603
  %v608 = vunpack.c.l.b16 %v604
  %v609 = vpack.c.b16 %v608, %v607
  %610 = vrot.lane.b32.xlu0 %v160, 118
  %v611 = vpop.permute.xlu0 %610
  %612 = vrot.lane.b32.xlu0 %v219, 118
  %v613 = vpop.permute.xlu0 %612
  %vm614 = vcmask 965632
  %v615 = vsel %vm614, %v611, %v613
  %v618 = vsel %vm162, %v609, 0
  %620 = vmatprep.subr.bf16.mxu0 0
  %621 = vmatpush1.bf16.msra.mxu0 0
  %622 = vmatprep.subr.bf16.mxu0 0
  %623 = vmatpush1.bf16.msra.mxu0 0
  %624 = vmatprep.subr.bf16.mxu0 0
  %625 = vmatpush1.bf16.msra.mxu0 0
  %626 = vmatprep.subr.bf16.mxu0 0
  %627 = vmatpush1.bf16.msra.mxu0 0
  %628 = vmatprep.subr.bf16.mxu0 0
  %629 = vmatpush1.bf16.msra.mxu0 0
  %630 = vmatprep.subr.bf16.mxu0 0
  %631 = vmatpush1.bf16.msra.mxu0 0
  %632 = vmatprep.subr.bf16.mxu0 0
  %633 = vmatpush1.bf16.msra.mxu0 0
  %634 = vmatprep.subr.bf16.mxu0 0
  %635 = vmatpush1.bf16.msra.mxu0 %v615
  %636 = vmatprep.subr.bf16.mxu0 0
  %637 = vmatpush2.bf16.msra.mxu0 0
  %638 = vmatprep.subr.bf16.mxu0 0
  %639 = vmatpush2.bf16.msra.mxu0 0
  %640 = vmatprep.subr.bf16.mxu0 0
  %641 = vmatpush2.bf16.msra.mxu0 0
  %642 = vmatprep.subr.bf16.mxu0 0
  %643 = vmatpush2.bf16.msra.mxu0 0
  %644 = vmatprep.subr.bf16.mxu0 0
  %645 = vmatpush2.bf16.msra.mxu0 0
  %646 = vmatprep.subr.bf16.mxu0 0
  %647 = vmatpush2.bf16.msra.mxu0 0
  %648 = vmatprep.subr.bf16.mxu0 0
  %649 = vmatpush2.bf16.msra.mxu0 0
  %650 = vmatprep.subr.bf16.mxu0 0
  %651 = vmatpush2.bf16.msra.mxu0 0
  %652 = vmatprep.mubr.bf16.mxu0 0
  %653 = vmatmul.mubr.bf16.gmra.mxu0 %v618
  %v654 = vpop.f32.mrf.mxu0
  %v655 = vadd.f32 0.0, %v654
  %v656 = vpop.f32.mrf.mxu0
  %v657 = vpop.f32.mrf.mxu0
  %v658 = vadd.f32 0.0, %v657
  %v659 = vpop.f32.mrf.mxu0
  %660 = vdwg.mxu0
  %v661 = vld [vmem:[#allocation4] sm:$0xff]
  %v662 = vld [vmem:[#allocation4 + $0x8] sm:$0xff]
  %v663 = vadd.f32 %v661, %v655
  %v664 = vadd.f32 %v662, %v658
  %665 = vst [vmem:[#allocation4] sm:$0xff] %v663
  %666 = vst [vmem:[#allocation4 + $0x8] sm:$0xff] %v664
  %s667 = scalar_lea.vmem %s0, 64
  %v668 = vld [vmem:[%s667] sm:$0xf]
  %v669 = vld [vmem:[%s667 + $0x4] sm:$0xf]
  %v672 = vunpack.c.l.b16 %v668
  %v673 = vunpack.c.l.b16 %v669
  %v674 = vpack.c.b16 %v673, %v672
  %675 = vrot.lane.b32.xlu0 %v160, 114
  %v676 = vpop.permute.xlu0 %675
  %677 = vrot.lane.b32.xlu0 %v219, 114
  %v678 = vpop.permute.xlu0 %677
  %vm679 = vcmask 932864
  %v680 = vsel %vm679, %v676, %v678
  %v683 = vsel %vm162, %v674, 0
  %685 = vmatprep.subr.bf16.mxu0 0
  %686 = vmatpush1.bf16.msra.mxu0 0
  %687 = vmatprep.subr.bf16.mxu0 0
  %688 = vmatpush1.bf16.msra.mxu0 0
  %689 = vmatprep.subr.bf16.mxu0 0
  %690 = vmatpush1.bf16.msra.mxu0 0
  %691 = vmatprep.subr.bf16.mxu0 0
  %692 = vmatpush1.bf16.msra.mxu0 0
  %693 = vmatprep.subr.bf16.mxu0 0
  %694 = vmatpush1.bf16.msra.mxu0 0
  %695 = vmatprep.subr.bf16.mxu0 0
  %696 = vmatpush1.bf16.msra.mxu0 0
  %697 = vmatprep.subr.bf16.mxu0 0
  %698 = vmatpush1.bf16.msra.mxu0 0
  %699 = vmatprep.subr.bf16.mxu0 0
  %700 = vmatpush1.bf16.msra.mxu0 %v680
  %701 = vmatprep.subr.bf16.mxu0 0
  %702 = vmatpush2.bf16.msra.mxu0 0
  %703 = vmatprep.subr.bf16.mxu0 0
  %704 = vmatpush2.bf16.msra.mxu0 0
  %705 = vmatprep.subr.bf16.mxu0 0
  %706 = vmatpush2.bf16.msra.mxu0 0
  %707 = vmatprep.subr.bf16.mxu0 0
  %708 = vmatpush2.bf16.msra.mxu0 0
  %709 = vmatprep.subr.bf16.mxu0 0
  %710 = vmatpush2.bf16.msra.mxu0 0
  %711 = vmatprep.subr.bf16.mxu0 0
  %712 = vmatpush2.bf16.msra.mxu0 0
  %713 = vmatprep.subr.bf16.mxu0 0
  %714 = vmatpush2.bf16.msra.mxu0 0
  %715 = vmatprep.subr.bf16.mxu0 0
  %716 = vmatpush2.bf16.msra.mxu0 0
  %717 = vmatprep.mubr.bf16.mxu0 0
  %718 = vmatmul.mubr.bf16.gmra.mxu0 %v683
  %v719 = vpop.f32.mrf.mxu0
  %v720 = vadd.f32 0.0, %v719
  %v721 = vpop.f32.mrf.mxu0
  %v722 = vpop.f32.mrf.mxu0
  %v723 = vadd.f32 0.0, %v722
  %v724 = vpop.f32.mrf.mxu0
  %725 = vdwg.mxu0
  %v726 = vld [vmem:[#allocation4] sm:$0xff]
  %v727 = vld [vmem:[#allocation4 + $0x8] sm:$0xff]
  %v728 = vadd.f32 %v726, %v720
  %v729 = vadd.f32 %v727, %v723
  %730 = vst [vmem:[#allocation4] sm:$0xff] %v728
  %731 = vst [vmem:[#allocation4 + $0x8] sm:$0xff] %v729
  %s732 = scalar_lea.vmem %s0, 72
  %v733 = vld [vmem:[%s732] sm:$0xf]
  %v734 = vld [vmem:[%s732 + $0x4] sm:$0xf]
  %v737 = vunpack.c.l.b16 %v733
  %v738 = vunpack.c.l.b16 %v734
  %v739 = vpack.c.b16 %v738, %v737
  %740 = vrot.lane.b32.xlu0 %v160, 113
  %v741 = vpop.permute.xlu0 %740
  %742 = vrot.lane.b32.xlu0 %v219, 113
  %v743 = vpop.permute.xlu0 %742
  %vm744 = vcmask 924672
  %v745 = vsel %vm744, %v741, %v743
  %v748 = vsel %vm162, %v739, 0
  %750 = vmatprep.subr.bf16.mxu0 0
  %751 = vmatpush1.bf16.msra.mxu0 0
  %752 = vmatprep.subr.bf16.mxu0 0
  %753 = vmatpush1.bf16.msra.mxu0 0
  %754 = vmatprep.subr.bf16.mxu0 0
  %755 = vmatpush1.bf16.msra.mxu0 0
  %756 = vmatprep.subr.bf16.mxu0 0
  %757 = vmatpush1.bf16.msra.mxu0 0
  %758 = vmatprep.subr.bf16.mxu0 0
  %759 = vmatpush1.bf16.msra.mxu0 0
  %760 = vmatprep.subr.bf16.mxu0 0
  %761 = vmatpush1.bf16.msra.mxu0 0
  %762 = vmatprep.subr.bf16.mxu0 0
  %763 = vmatpush1.bf16.msra.mxu0 0
  %764 = vmatprep.subr.bf16.mxu0 0
  %765 = vmatpush1.bf16.msra.mxu0 %v745
  %766 = vmatprep.subr.bf16.mxu0 0
  %767 = vmatpush2.bf16.msra.mxu0 0
  %768 = vmatprep.subr.bf16.mxu0 0
  %769 = vmatpush2.bf16.msra.mxu0 0
  %770 = vmatprep.subr.bf16.mxu0 0
  %771 = vmatpush2.bf16.msra.mxu0 0
  %772 = vmatprep.subr.bf16.mxu0 0
  %773 = vmatpush2.bf16.msra.mxu0 0
  %774 = vmatprep.subr.bf16.mxu0 0
  %775 = vmatpush2.bf16.msra.mxu0 0
  %776 = vmatprep.subr.bf16.mxu0 0
  %777 = vmatpush2.bf16.msra.mxu0 0
  %778 = vmatprep.subr.bf16.mxu0 0
  %779 = vmatpush2.bf16.msra.mxu0 0
  %780 = vmatprep.subr.bf16.mxu0 0
  %781 = vmatpush2.bf16.msra.mxu0 0
  %782 = vmatprep.mubr.bf16.mxu0 0
  %783 = vmatmul.mubr.bf16.gmra.mxu0 %v748
  %v784 = vpop.f32.mrf.mxu0
  %v785 = vadd.f32 0.0, %v784
  %v786 = vpop.f32.mrf.mxu0
  %v787 = vpop.f32.mrf.mxu0
  %v788 = vadd.f32 0.0, %v787
  %v789 = vpop.f32.mrf.mxu0
  %790 = vdwg.mxu0
  %v791 = vld [vmem:[#allocation4] sm:$0xff]
  %v792 = vld [vmem:[#allocation4 + $0x8] sm:$0xff]
  %v793 = vadd.f32 %v791, %v785
  %v794 = vadd.f32 %v792, %v788
  %795 = vst [vmem:[#allocation4] sm:$0xff] %v793
  %796 = vst [vmem:[#allocation4 + $0x8] sm:$0xff] %v794
  %s797 = scalar_lea.vmem %s0, 80
  %v798 = vld [vmem:[%s797] sm:$0xf]
  %v799 = vld [vmem:[%s797 + $0x4] sm:$0xf]
  %v802 = vunpack.c.l.b16 %v798
  %v803 = vunpack.c.l.b16 %v799
  %v804 = vpack.c.b16 %v803, %v802
  %805 = vrot.lane.b32.xlu0 %v160, 112
  %v806 = vpop.permute.xlu0 %805
  %807 = vrot.lane.b32.xlu0 %v219, 112
  %v808 = vpop.permute.xlu0 %807
  %vm809 = vcmask 916480
  %v810 = vsel %vm809, %v806, %v808
  %v813 = vsel %vm162, %v804, 0
  %815 = vmatprep.subr.bf16.mxu0 0
  %816 = vmatpush1.bf16.msra.mxu0 0
  %817 = vmatprep.subr.bf16.mxu0 0
  %818 = vmatpush1.bf16.msra.mxu0 0
  %819 = vmatprep.subr.bf16.mxu0 0
  %820 = vmatpush1.bf16.msra.mxu0 0
  %821 = vmatprep.subr.bf16.mxu0 0
  %822 = vmatpush1.bf16.msra.mxu0 0
  %823 = vmatprep.subr.bf16.mxu0 0
  %824 = vmatpush1.bf16.msra.mxu0 0
  %825 = vmatprep.subr.bf16.mxu0 0
  %826 = vmatpush1.bf16.msra.mxu0 0
  %827 = vmatprep.subr.bf16.mxu0 0
  %828 = vmatpush1.bf16.msra.mxu0 0
  %829 = vmatprep.subr.bf16.mxu0 0
  %830 = vmatpush1.bf16.msra.mxu0 %v810
  %831 = vmatprep.subr.bf16.mxu0 0
  %832 = vmatpush2.bf16.msra.mxu0 0
  %833 = vmatprep.subr.bf16.mxu0 0
  %834 = vmatpush2.bf16.msra.mxu0 0
  %835 = vmatprep.subr.bf16.mxu0 0
  %836 = vmatpush2.bf16.msra.mxu0 0
  %837 = vmatprep.subr.bf16.mxu0 0
  %838 = vmatpush2.bf16.msra.mxu0 0
  %839 = vmatprep.subr.bf16.mxu0 0
  %840 = vmatpush2.bf16.msra.mxu0 0
  %841 = vmatprep.subr.bf16.mxu0 0
  %842 = vmatpush2.bf16.msra.mxu0 0
  %843 = vmatprep.subr.bf16.mxu0 0
  %844 = vmatpush2.bf16.msra.mxu0 0
  %845 = vmatprep.subr.bf16.mxu0 0
  %846 = vmatpush2.bf16.msra.mxu0 0
  %847 = vmatprep.mubr.bf16.mxu0 0
  %848 = vmatmul.mubr.bf16.gmra.mxu0 %v813
  %v849 = vpop.f32.mrf.mxu0
  %v850 = vadd.f32 0.0, %v849
  %v851 = vpop.f32.mrf.mxu0
  %v852 = vpop.f32.mrf.mxu0
  %v853 = vadd.f32 0.0, %v852
  %v854 = vpop.f32.mrf.mxu0
  %855 = vdwg.mxu0
  %v856 = vld [vmem:[#allocation4] sm:$0xff]
  %v857 = vld [vmem:[#allocation4 + $0x8] sm:$0xff]
  %v858 = vadd.f32 %v856, %v850
  %v859 = vadd.f32 %v857, %v853
  %860 = vst [vmem:[#allocation4] sm:$0xff] %v858
  %861 = vst [vmem:[#allocation4 + $0x8] sm:$0xff] %v859
  %s862 = scalar_lea.vmem %s0, 88
  %v863 = vld [vmem:[%s862] sm:$0xf]
  %v864 = vld [vmem:[%s862 + $0x4] sm:$0xf]
  %v867 = vunpack.c.l.b16 %v863
  %v868 = vunpack.c.l.b16 %v864
  %v869 = vpack.c.b16 %v868, %v867
  %870 = vrot.lane.b32.xlu0 %v160, 111
  %v871 = vpop.permute.xlu0 %870
  %872 = vrot.lane.b32.xlu0 %v219, 111
  %v873 = vpop.permute.xlu0 %872
  %vm874 = vcmask 908288
  %v875 = vsel %vm874, %v871, %v873
  %v878 = vsel %vm162, %v869, 0
  %880 = vmatprep.subr.bf16.mxu0 0
  %881 = vmatpush1.bf16.msra.mxu0 0
  %882 = vmatprep.subr.bf16.mxu0 0
  %883 = vmatpush1.bf16.msra.mxu0 0
  %884 = vmatprep.subr.bf16.mxu0 0
  %885 = vmatpush1.bf16.msra.mxu0 0
  %886 = vmatprep.subr.bf16.mxu0 0
  %887 = vmatpush1.bf16.msra.mxu0 0
  %888 = vmatprep.subr.bf16.mxu0 0
  %889 = vmatpush1.bf16.msra.mxu0 0
  %890 = vmatprep.subr.bf16.mxu0 0
  %891 = vmatpush1.bf16.msra.mxu0 0
  %892 = vmatprep.subr.bf16.mxu0 0
  %893 = vmatpush1.bf16.msra.mxu0 0
  %894 = vmatprep.subr.bf16.mxu0 0
  %895 = vmatpush1.bf16.msra.mxu0 %v875
  %896 = vmatprep.subr.bf16.mxu0 0
  %897 = vmatpush2.bf16.msra.mxu0 0
  %898 = vmatprep.subr.bf16.mxu0 0
  %899 = vmatpush2.bf16.msra.mxu0 0
  %900 = vmatprep.subr.bf16.mxu0 0
  %901 = vmatpush2.bf16.msra.mxu0 0
  %902 = vmatprep.subr.bf16.mxu0 0
  %903 = vmatpush2.bf16.msra.mxu0 0
  %904 = vmatprep.subr.bf16.mxu0 0
  %905 = vmatpush2.bf16.msra.mxu0 0
  %906 = vmatprep.subr.bf16.mxu0 0
  %907 = vmatpush2.bf16.msra.mxu0 0
  %908 = vmatprep.subr.bf16.mxu0 0
  %909 = vmatpush2.bf16.msra.mxu0 0
  %910 = vmatprep.subr.bf16.mxu0 0
  %911 = vmatpush2.bf16.msra.mxu0 0
  %912 = vmatprep.mubr.bf16.mxu0 0
  %913 = vmatmul.mubr.bf16.gmra.mxu0 %v878
  %v914 = vpop.f32.mrf.mxu0
  %v915 = vadd.f32 0.0, %v914
  %v916 = vpop.f32.mrf.mxu0
  %v917 = vpop.f32.mrf.mxu0
  %v918 = vadd.f32 0.0, %v917
  %v919 = vpop.f32.mrf.mxu0
  %920 = vdwg.mxu0
  %v921 = vld [vmem:[#allocation4] sm:$0xff]
  %v922 = vld [vmem:[#allocation4 + $0x8] sm:$0xff]
  %v923 = vadd.f32 %v921, %v915
  %v924 = vadd.f32 %v922, %v918
  %925 = vst [vmem:[#allocation4] sm:$0xff] %v923
  %926 = vst [vmem:[#allocation4 + $0x8] sm:$0xff] %v924
  %s927 = scalar_lea.vmem %s0, 96
  %v928 = vld [vmem:[%s927] sm:$0xf]
  %v929 = vld [vmem:[%s927 + $0x4] sm:$0xf]
  %v932 = vunpack.c.l.b16 %v928
  %v933 = vunpack.c.l.b16 %v929
  %v934 = vpack.c.b16 %v933, %v932
  %935 = vrot.lane.b32.xlu0 %v160, 107
  %v936 = vpop.permute.xlu0 %935
  %937 = vrot.lane.b32.xlu0 %v219, 107
  %v938 = vpop.permute.xlu0 %937
  %vm939 = vcmask 875520
  %v940 = vsel %vm939, %v936, %v938
  %v943 = vsel %vm162, %v934, 0
  %945 = vmatprep.subr.bf16.mxu0 0
  %946 = vmatpush1.bf16.msra.mxu0 0
  %947 = vmatprep.subr.bf16.mxu0 0
  %948 = vmatpush1.bf16.msra.mxu0 0
  %949 = vmatprep.subr.bf16.mxu0 0
  %950 = vmatpush1.bf16.msra.mxu0 0
  %951 = vmatprep.subr.bf16.mxu0 0
  %952 = vmatpush1.bf16.msra.mxu0 0
  %953 = vmatprep.subr.bf16.mxu0 0
  %954 = vmatpush1.bf16.msra.mxu0 0
  %955 = vmatprep.subr.bf16.mxu0 0
  %956 = vmatpush1.bf16.msra.mxu0 0
  %957 = vmatprep.subr.bf16.mxu0 0
  %958 = vmatpush1.bf16.msra.mxu0 0
  %959 = vmatprep.subr.bf16.mxu0 0
  %960 = vmatpush1.bf16.msra.mxu0 %v940
  %961 = vmatprep.subr.bf16.mxu0 0
  %962 = vmatpush2.bf16.msra.mxu0 0
  %963 = vmatprep.subr.bf16.mxu0 0
  %964 = vmatpush2.bf16.msra.mxu0 0
  %965 = vmatprep.subr.bf16.mxu0 0
  %966 = vmatpush2.bf16.msra.mxu0 0
  %967 = vmatprep.subr.bf16.mxu0 0
  %968 = vmatpush2.bf16.msra.mxu0 0
  %969 = vmatprep.subr.bf16.mxu0 0
  %970 = vmatpush2.bf16.msra.mxu0 0
  %971 = vmatprep.subr.bf16.mxu0 0
  %972 = vmatpush2.bf16.msra.mxu0 0
  %973 = vmatprep.subr.bf16.mxu0 0
  %974 = vmatpush2.bf16.msra.mxu0 0
  %975 = vmatprep.subr.bf16.mxu0 0
  %976 = vmatpush2.bf16.msra.mxu0 0
  %977 = vmatprep.mubr.bf16.mxu0 0
  %978 = vmatmul.mubr.bf16.gmra.mxu0 %v943
  %v979 = vpop.f32.mrf.mxu0
  %v980 = vadd.f32 0.0, %v979
  %v981 = vpop.f32.mrf.mxu0
  %v982 = vpop.f32.mrf.mxu0
  %v983 = vadd.f32 0.0, %v982
  %v984 = vpop.f32.mrf.mxu0
  %985 = vdwg.mxu0
  %v986 = vld [vmem:[#allocation4] sm:$0xff]
  %v987 = vld [vmem:[#allocation4 + $0x8] sm:$0xff]
  %v988 = vadd.f32 %v986, %v980
  %v989 = vadd.f32 %v987, %v983
  %990 = vst [vmem:[#allocation4] sm:$0xff] %v988
  %991 = vst [vmem:[#allocation4 + $0x8] sm:$0xff] %v989
  %s992 = scalar_lea.vmem %s0, 104
  %v993 = vld [vmem:[%s992] sm:$0xf]
  %v994 = vld [vmem:[%s992 + $0x4] sm:$0xf]
  %v997 = vunpack.c.l.b16 %v993
  %v998 = vunpack.c.l.b16 %v994
  %v999 = vpack.c.b16 %v998, %v997
  %1000 = vrot.lane.b32.xlu0 %v160, 106
  %v1001 = vpop.permute.xlu0 %1000
  %1002 = vrot.lane.b32.xlu0 %v219, 106
  %v1003 = vpop.permute.xlu0 %1002
  %vm1004 = vcmask 867328
  %v1005 = vsel %vm1004, %v1001, %v1003
  %v1008 = vsel %vm162, %v999, 0
  %1010 = vmatprep.subr.bf16.mxu0 0
  %1011 = vmatpush1.bf16.msra.mxu0 0
  %1012 = vmatprep.subr.bf16.mxu0 0
  %1013 = vmatpush1.bf16.msra.mxu0 0
  %1014 = vmatprep.subr.bf16.mxu0 0
  %1015 = vmatpush1.bf16.msra.mxu0 0
  %1016 = vmatprep.subr.bf16.mxu0 0
  %1017 = vmatpush1.bf16.msra.mxu0 0
  %1018 = vmatprep.subr.bf16.mxu0 0
  %1019 = vmatpush1.bf16.msra.mxu0 0
  %1020 = vmatprep.subr.bf16.mxu0 0
  %1021 = vmatpush1.bf16.msra.mxu0 0
  %1022 = vmatprep.subr.bf16.mxu0 0
  %1023 = vmatpush1.bf16.msra.mxu0 0
  %1024 = vmatprep.subr.bf16.mxu0 0
  %1025 = vmatpush1.bf16.msra.mxu0 %v1005
  %1026 = vmatprep.subr.bf16.mxu0 0
  %1027 = vmatpush2.bf16.msra.mxu0 0
  %1028 = vmatprep.subr.bf16.mxu0 0
  %1029 = vmatpush2.bf16.msra.mxu0 0
  %1030 = vmatprep.subr.bf16.mxu0 0
  %1031 = vmatpush2.bf16.msra.mxu0 0
  %1032 = vmatprep.subr.bf16.mxu0 0
  %1033 = vmatpush2.bf16.msra.mxu0 0
  %1034 = vmatprep.subr.bf16.mxu0 0
  %1035 = vmatpush2.bf16.msra.mxu0 0
  %1036 = vmatprep.subr.bf16.mxu0 0
  %1037 = vmatpush2.bf16.msra.mxu0 0
  %1038 = vmatprep.subr.bf16.mxu0 0
  %1039 = vmatpush2.bf16.msra.mxu0 0
  %1040 = vmatprep.subr.bf16.mxu0 0
  %1041 = vmatpush2.bf16.msra.mxu0 0
  %1042 = vmatprep.mubr.bf16.mxu0 0
  %1043 = vmatmul.mubr.bf16.gmra.mxu0 %v1008
  %v1044 = vpop.f32.mrf.mxu0
  %v1045 = vadd.f32 0.0, %v1044
  %v1046 = vpop.f32.mrf.mxu0
  %v1047 = vpop.f32.mrf.mxu0
  %v1048 = vadd.f32 0.0, %v1047
  %v1049 = vpop.f32.mrf.mxu0
  %1050 = vdwg.mxu0
  %v1051 = vld [vmem:[#allocation4] sm:$0xff]
  %v1052 = vld [vmem:[#allocation4 + $0x8] sm:$0xff]
  %v1053 = vadd.f32 %v1051, %v1045
  %v1054 = vadd.f32 %v1052, %v1048
  %1055 = vst [vmem:[#allocation4] sm:$0xff] %v1053
  %1056 = vst [vmem:[#allocation4 + $0x8] sm:$0xff] %v1054
  %s1057 = scalar_lea.vmem %s0, 112
  %v1058 = vld [vmem:[%s1057] sm:$0xf]
  %v1059 = vld [vmem:[%s1057 + $0x4] sm:$0xf]
  %v1062 = vunpack.c.l.b16 %v1058
  %v1063 = vunpack.c.l.b16 %v1059
  %v1064 = vpack.c.b16 %v1063, %v1062
  %1065 = vrot.lane.b32.xlu0 %v160, 105
  %v1066 = vpop.permute.xlu0 %1065
  %1067 = vrot.lane.b32.xlu0 %v219, 105
  %v1068 = vpop.permute.xlu0 %1067
  %vm1069 = vcmask 859136
  %v1070 = vsel %vm1069, %v1066, %v1068
  %v1073 = vsel %vm162, %v1064, 0
  %1075 = vmatprep.subr.bf16.mxu0 0
  %1076 = vmatpush1.bf16.msra.mxu0 0
  %1077 = vmatprep.subr.bf16.mxu0 0
  %1078 = vmatpush1.bf16.msra.mxu0 0
  %1079 = vmatprep.subr.bf16.mxu0 0
  %1080 = vmatpush1.bf16.msra.mxu0 0
  %1081 = vmatprep.subr.bf16.mxu0 0
  %1082 = vmatpush1.bf16.msra.mxu0 0
  %1083 = vmatprep.subr.bf16.mxu0 0
  %1084 = vmatpush1.bf16.msra.mxu0 0
  %1085 = vmatprep.subr.bf16.mxu0 0
  %1086 = vmatpush1.bf16.msra.mxu0 0
  %1087 = vmatprep.subr.bf16.mxu0 0
  %1088 = vmatpush1.bf16.msra.mxu0 0
  %1089 = vmatprep.subr.bf16.mxu0 0
  %1090 = vmatpush1.bf16.msra.mxu0 %v1070
  %1091 = vmatprep.subr.bf16.mxu0 0
  %1092 = vmatpush2.bf16.msra.mxu0 0
  %1093 = vmatprep.subr.bf16.mxu0 0
  %1094 = vmatpush2.bf16.msra.mxu0 0
  %1095 = vmatprep.subr.bf16.mxu0 0
  %1096 = vmatpush2.bf16.msra.mxu0 0
  %1097 = vmatprep.subr.bf16.mxu0 0
  %1098 = vmatpush2.bf16.msra.mxu0 0
  %1099 = vmatprep.subr.bf16.mxu0 0
  %1100 = vmatpush2.bf16.msra.mxu0 0
  %1101 = vmatprep.subr.bf16.mxu0 0
  %1102 = vmatpush2.bf16.msra.mxu0 0
  %1103 = vmatprep.subr.bf16.mxu0 0
  %1104 = vmatpush2.bf16.msra.mxu0 0
  %1105 = vmatprep.subr.bf16.mxu0 0
  %1106 = vmatpush2.bf16.msra.mxu0 0
  %1107 = vmatprep.mubr.bf16.mxu0 0
  %1108 = vmatmul.mubr.bf16.gmra.mxu0 %v1073
  %v1109 = vpop.f32.mrf.mxu0
  %v1110 = vadd.f32 0.0, %v1109
  %v1111 = vpop.f32.mrf.mxu0
  %v1112 = vpop.f32.mrf.mxu0
  %v1113 = vadd.f32 0.0, %v1112
  %v1114 = vpop.f32.mrf.mxu0
  %1115 = vdwg.mxu0
  %v1116 = vld [vmem:[#allocation4] sm:$0xff]
  %v1117 = vld [vmem:[#allocation4 + $0x8] sm:$0xff]
  %v1118 = vadd.f32 %v1116, %v1110
  %v1119 = vadd.f32 %v1117, %v1113
  %1120 = vst [vmem:[#allocation4] sm:$0xff] %v1118
  %1121 = vst [vmem:[#allocation4 + $0x8] sm:$0xff] %v1119
  %s1122 = scalar_lea.vmem %s0, 120
  %v1123 = vld [vmem:[%s1122] sm:$0xf]
  %v1124 = vld [vmem:[%s1122 + $0x4] sm:$0xf]
  %v1127 = vunpack.c.l.b16 %v1123
  %v1128 = vunpack.c.l.b16 %v1124
  %v1129 = vpack.c.b16 %v1128, %v1127
  %1130 = vrot.lane.b32.xlu0 %v160, 104
  %v1131 = vpop.permute.xlu0 %1130
  %1132 = vrot.lane.b32.xlu0 %v219, 104
  %v1133 = vpop.permute.xlu0 %1132
  %vm1134 = vcmask 850944
  %v1135 = vsel %vm1134, %v1131, %v1133
  %v1138 = vsel %vm162, %v1129, 0
  %1140 = vmatprep.subr.bf16.mxu0 0
  %1141 = vmatpush1.bf16.msra.mxu0 0
  %1142 = vmatprep.subr.bf16.mxu0 0
  %1143 = vmatpush1.bf16.msra.mxu0 0
  %1144 = vmatprep.subr.bf16.mxu0 0
  %1145 = vmatpush1.bf16.msra.mxu0 0
  %1146 = vmatprep.subr.bf16.mxu0 0
  %1147 = vmatpush1.bf16.msra.mxu0 0
  %1148 = vmatprep.subr.bf16.mxu0 0
  %1149 = vmatpush1.bf16.msra.mxu0 0
  %1150 = vmatprep.subr.bf16.mxu0 0
  %1151 = vmatpush1.bf16.msra.mxu0 0
  %1152 = vmatprep.subr.bf16.mxu0 0
  %1153 = vmatpush1.bf16.msra.mxu0 0
  %1154 = vmatprep.subr.bf16.mxu0 0
  %1155 = vmatpush1.bf16.msra.mxu0 %v1135
  %1156 = vmatprep.subr.bf16.mxu0 0
  %1157 = vmatpush2.bf16.msra.mxu0 0
  %1158 = vmatprep.subr.bf16.mxu0 0
  %1159 = vmatpush2.bf16.msra.mxu0 0
  %1160 = vmatprep.subr.bf16.mxu0 0
  %1161 = vmatpush2.bf16.msra.mxu0 0
  %1162 = vmatprep.subr.bf16.mxu0 0
  %1163 = vmatpush2.bf16.msra.mxu0 0
  %1164 = vmatprep.subr.bf16.mxu0 0
  %1165 = vmatpush2.bf16.msra.mxu0 0
  %1166 = vmatprep.subr.bf16.mxu0 0
  %1167 = vmatpush2.bf16.msra.mxu0 0
  %1168 = vmatprep.subr.bf16.mxu0 0
  %1169 = vmatpush2.bf16.msra.mxu0 0
  %1170 = vmatprep.subr.bf16.mxu0 0
  %1171 = vmatpush2.bf16.msra.mxu0 0
  %1172 = vmatprep.mubr.bf16.mxu0 0
  %1173 = vmatmul.mubr.bf16.gmra.mxu0 %v1138
  %v1174 = vpop.f32.mrf.mxu0
  %v1175 = vadd.f32 0.0, %v1174
  %v1176 = vpop.f32.mrf.mxu0
  %v1177 = vpop.f32.mrf.mxu0
  %v1178 = vadd.f32 0.0, %v1177
  %v1179 = vpop.f32.mrf.mxu0
  %1180 = vdwg.mxu0
  %v1181 = vld [vmem:[#allocation4] sm:$0xff]
  %v1182 = vld [vmem:[#allocation4 + $0x8] sm:$0xff]
  %v1183 = vadd.f32 %v1181, %v1175
  %v1184 = vadd.f32 %v1182, %v1178
  %1185 = vst [vmem:[#allocation4] sm:$0xff] %v1183
  %1186 = vst [vmem:[#allocation4 + $0x8] sm:$0xff] %v1184
  %v1187 = vld [vmem:[#allocation4] sm:$0xff]
  %v1188 = vld [vmem:[#allocation4 + $0x8] sm:$0xff]
  %v1189 = vld [vmem:[%s2] sm:$0x1]
  %v1191 = vlaneseq
  %v1192 = vshrl.u32 %v1191, 7
  %v1193 = vsub.s32 0, %v1192
  %v1194 = vrot.slane %v1189, %v1193
  %v1196 = vmul.f32 %v1187, %v1194
  %v1197 = vmul.f32 %v1188, %v1194
  %1198 = vadd.xlane.f32.xlu0 %v1196
  %v1199 = vpop.xlane.xlu0 %1198
  %1200 = vadd.xlane.f32.xlu0 %v1197
  %v1201 = vpop.xlane.xlu0 %1200
  %v1202 = vmul.f32 %v1199, 0.03125
  %v1203 = vmul.f32 %v1201, 0.03125
  %v1204 = vsub.f32 %v1187, %v1202
  %v1205 = vsub.f32 %v1188, %v1203
  %v1206 = vmul.f32 %v1204, %v1204
  %v1207 = vmul.f32 %v1205, %v1205
  %v1208 = vmul.f32 %v1206, %v1194
  %v1209 = vmul.f32 %v1207, %v1194
  %1210 = vadd.xlane.f32.xlu0 %v1208
  %v1211 = vpop.xlane.xlu0 %1210
  %1212 = vadd.xlane.f32.xlu0 %v1209
  %v1213 = vpop.xlane.xlu0 %1212
  %v1214 = vmul.f32 %v1211, 0.03125
  %v1215 = vmul.f32 %v1213, 0.03125
  %v1216 = vadd.f32 %v1214, 1e-05
  %v1217 = vadd.f32 %v1215, 1e-05
  %v1218 = vrsqrt.pop %v1216
  %v1219 = vrsqrt.pop %v1217
  %v1220 = vmul.f32 %v1204, %v1218
  %v1221 = vmul.f32 %v1205, %v1219
  %vm1222 = vcmp.ge.f32.partialorder %v1220, 0.0
  %vm1223 = vcmp.ge.f32.partialorder %v1221, 0.0
  %v1224 = vmul.f32 %v1220, 0.2
  %v1225 = vmul.f32 %v1221, 0.2
  %v1226 = vsel %vm1222, %v1220, %v1224
  %v1227 = vsel %vm1223, %v1221, %v1225
  %v1228 = vpack.c.bf16 %v1227, %v1226
  %v1230 = vunpack.c.l.b16 %v1228
  %v1231 = vunpack.c.h.b16 %v1228
  %v1232 = vpack.c.b16 %v1230, %v1230
  %v1233 = vpack.c.b16 %v1231, %v1231
  %1236 = vst [vmem:[%s3] sm:$0xf] %v1232
  %1237 = vst [vmem:[%s3 + $0x4] sm:$0xf] %v1233
  // Predicated region
  $region86: #{dcgan_g_resizedconv_forward.3} parent=0 // pred_check
    _
  $region87: #{dcgan_g_resizedconv_forward.3} parent=0 // pred_check_branch
    %1239 = sbr.rel (0) target = $region89
  $region88: #{dcgan_g_resizedconv_forward.3} parent=0 // pred_region
    _
  $region89: #{dcgan_g_resizedconv_forward.3} parent=0 // pred_fallthru
    _
  // Predicated region
  $region90: #{dcgan_g_resizedconv_forward.3} parent=0 // pred_check
    _
  $region91: #{dcgan_g_resizedconv_forward.3} parent=0 // pred_check_branch
    %1241 = sbr.rel (0) target = $region93
  $region92: #{dcgan_g_resizedconv_forward.3} parent=0 // pred_region
    _
  $region93: #{dcgan_g_resizedconv_forward.3} parent=0 // pred_fallthru
    _
  %1242 = vsyncmov [#allocation3]
  %s1243 = vpop.sfrf %1242
  %p1244 = scmp.eq.s32.totalorder %s1243, 0
  %p1245 = pneg %p1244
  %1247 = shalt.err (%p1245)
  %s1248 = scalar_lea.sflag [#allocation3], 1
  %1249 = vsyncmov %s1248
  %s1250 = vpop.sfrf %1249
  %p1251 = scmp.eq.s32.totalorder %s1250, 0
  %p1252 = pneg %p1251
  %1254 = shalt.err (%p1252)

// kernel: dcgan_g_resizedconv_forward.4
$region0: #{dcgan_g_resizedconv_forward.4}
  #allocation0 [shape = 'u32[]', space=smem, size = 0x4, offset = 0x4, fixed_abs, tag = 'smem constant byte address 0x4 - core index']
  #allocation1 [shape = 'u32[144,128]{1,0:T(1,128)}', space=vmem, size = 0x12000, scoped, tag = 'internal scratch']
  #allocation2 [shape = 'bf16[2,16,384]{2,1,0:T(8,128)(2,1)}', space=vmem, size = 0x6000, scoped, tag = 'scratch operand']
  #allocation3 [shape = 's32[2]{0}', space=sflag, size = 0x8, scoped, tag = 'scratch operand']
  #allocation4 [shape = 'f32[16,256]{1,0:T(8,128)}', space=vmem, size = 0x4000, scoped, tag = 'scratch operand']
  #allocation5 [shape = 's32[]', space=sflag, size = 0x4, offset = 0, fixed_abs, tag = 'sflag constant byte address 0x0 - dummy sync flag']
  #allocation6 [shape = 's32[]', space=sflag, size = 0x4, offset = 0, fixed_abs, tag = 'sflag constant byte address 0x0 - dummy sync flag']
  %s0 = inlined_call_operand.vmem [shape: bf16[9,16,16], index: 0, kind: input, shape index: {}]
  %s1 = inlined_call_operand.vmem [shape: bf16[16,384], index: 1, kind: input, shape index: {}]
  %s2 = inlined_call_operand.vmem [shape: f32[1,256], index: 2, kind: input, shape index: {}]
  %s3 = inlined_call_operand.vmem [shape: bf16[16,256], index: 3, kind: output, shape index: {}]
  %s4 = sld [smem:[#allocation0]]
  $region94: #{dcgan_g_resizedconv_forward.4} parent=0
    _
  %s6 = ssub.s32 1, %s4
  %s7 = scalar_select 0, %s6, %s4
  // Predicated region
  $region2: #{dcgan_g_resizedconv_forward.4} parent=0 // pred_check
    _
  $region3: #{dcgan_g_resizedconv_forward.4} parent=0 // pred_check_branch
    %9 = sbr.rel (0) target = $region5
  $region4: #{dcgan_g_resizedconv_forward.4} parent=0 // pred_region
    _
  $region5: #{dcgan_g_resizedconv_forward.4} parent=0 // pred_fallthru
    _
  // Predicated region
  $region6: #{dcgan_g_resizedconv_forward.4} parent=0 // pred_check
    _
  $region7: #{dcgan_g_resizedconv_forward.4} parent=0 // pred_check_branch
    %11 = sbr.rel (0) target = $region9
  $region8: #{dcgan_g_resizedconv_forward.4} parent=0 // pred_region
    _
  $region9: #{dcgan_g_resizedconv_forward.4} parent=0 // pred_fallthru
    _
  %s13 = ssub.s32 0, 0
  %s14 = ssub.s32 0, 0
  %p15 = scmp.ne.s32.totalorder 0, 0
  %p16 = scmp.lt.s32.totalorder 0, 0
  %p17 = pnand %p16, %p15
  %p18 = pneg %p17
  %s19 = sadd.s32 0, 2
  %s20 = scalar_select %p18, %s19, 0
  %p21 = scmp.eq.s32.totalorder 0, 0
  // Predicated region
  $region10: #{dcgan_g_resizedconv_forward.4} parent=0 // pred_check
    %p22 = pneg %p21
  $region11: #{dcgan_g_resizedconv_forward.4} parent=0 // pred_check_branch
    %24 = sbr.rel (%p22) target = $region13
  $region12: #{dcgan_g_resizedconv_forward.4} parent=0 // pred_region
    %s25 = smul.u32 0, 256
    %s26 = sshra.s32 %s25, 7
    %s27 = sand.u32 %s25, 127
    %s28 = smul.addr %s26, 4
    %s29 = scalar_lea.vmem %s1, %s28
    %s30 = smul.u32 %s20, 6
    %s31 = smul.addr %s30, 4
    %s32 = scalar_lea.vmem [#allocation2], %s31
    %s33 = scalar_lea.sflag [#allocation3], %s20
    %p35 = scmp.lt.u32.totalorder 24, 8
    %p36 = pneg %p35
    // Predicated region
    $region14: #{dcgan_g_resizedconv_forward.4} parent=12 // pred_check
      _
    $region15: #{dcgan_g_resizedconv_forward.4} parent=12 // pred_check_branch
      %38 = sbr.rel (%p35) target = $region17
    $region16: #{dcgan_g_resizedconv_forward.4} parent=12 // pred_region
      %s54 = sand.u32 24, 7
      %p55 = scmp.eq.s32.totalorder %s54, 0
      // Predicated region
      $region29: #{dcgan_g_resizedconv_forward.4} parent=16 // pred_check
        %p56 = pneg %p55
      $region30: #{dcgan_g_resizedconv_forward.4} parent=16 // pred_check_branch
        %58 = sbr.rel (%p56) target = $region32
      $region31: #{dcgan_g_resizedconv_forward.4} parent=16 // pred_region
        loop: start=0, step=1, limit=1
        $region33: #{dcgan_g_resizedconv_forward.4} parent=31 // loop_pre_header
          _
        $region34: #{dcgan_g_resizedconv_forward.4} parent=31 // loop_header
          %s60 = sphi 0, %s64
          %p61 = scmp.ge.s32.totalorder %s60, 1
          %s65 = sphi %s29, %s29
          %s66 = sphi %s32, %s32
        $region35: #{dcgan_g_resizedconv_forward.4} parent=31 // loop_header_branch
          %63 = sbr.rel (%p61) target = $region39
        $region36: #{dcgan_g_resizedconv_forward.4} parent=31 // loop_body
          %v67 = vld [vmem:[%s65] sm:$0xff]
          %68 = vst [vmem:[%s66] sm:$0xff] %v67
          %v69 = vld [vmem:[%s65 + $0x8] sm:$0xff]
          %70 = vst [vmem:[%s66 + $0x8] sm:$0xff] %v69
          %v71 = vld [vmem:[%s65 + $0x10] sm:$0xff]
          %72 = vst [vmem:[%s66 + $0x10] sm:$0xff] %v71
        $region37: #{dcgan_g_resizedconv_forward.4} parent=31 // loop_footer
          %s64 = sadd.s32 1, %s60
        $region38: #{dcgan_g_resizedconv_forward.4} parent=31 // loop_footer_branch
          %59 = sbr.rel target = $region34
        $region39: #{dcgan_g_resizedconv_forward.4} parent=31 // loop_exit
          _
      $region32: #{dcgan_g_resizedconv_forward.4} parent=16 // pred_fallthru
        _
      %p73 = pneg %p55
      // Predicated region
      $region40: #{dcgan_g_resizedconv_forward.4} parent=16 // pred_check
        _
      $region41: #{dcgan_g_resizedconv_forward.4} parent=16 // pred_check_branch
        %75 = sbr.rel (%p55) target = $region43
      $region42: #{dcgan_g_resizedconv_forward.4} parent=16 // pred_region
        %s76 = sand.u32 24, 7
      $region43: #{dcgan_g_resizedconv_forward.4} parent=16 // pred_fallthru
        _
    $region17: #{dcgan_g_resizedconv_forward.4} parent=12 // pred_fallthru
      _
    // Predicated region
    $region18: #{dcgan_g_resizedconv_forward.4} parent=12 // pred_check
      %p39 = pneg %p35
    $region19: #{dcgan_g_resizedconv_forward.4} parent=12 // pred_check_branch
      %41 = sbr.rel (%p39) target = $region21
    $region20: #{dcgan_g_resizedconv_forward.4} parent=12 // pred_region
      %s42 = sshll.u32 1, 24
      %s43 = ssub.s32 %s42, 1
      loop: start=0, step=1, limit=1
      $region22: #{dcgan_g_resizedconv_forward.4} parent=20 // loop_pre_header
        _
      $region23: #{dcgan_g_resizedconv_forward.4} parent=20 // loop_header
        %s45 = sphi 0, %s49
        %p46 = scmp.ge.s32.totalorder %s45, 1
        %s50 = sphi %s29, %s29
        %s51 = sphi %s32, %s32
      $region24: #{dcgan_g_resizedconv_forward.4} parent=20 // loop_header_branch
        %48 = sbr.rel (%p46) target = $region28
      $region25: #{dcgan_g_resizedconv_forward.4} parent=20 // loop_body
        %v52 = vld [vmem:[%s50] sm:%s43]
        %53 = vst [vmem:[%s51] sm:%s43] %v52
      $region26: #{dcgan_g_resizedconv_forward.4} parent=20 // loop_footer
        %s49 = sadd.s32 1, %s45
      $region27: #{dcgan_g_resizedconv_forward.4} parent=20 // loop_footer_branch
        %44 = sbr.rel target = $region23
      $region28: #{dcgan_g_resizedconv_forward.4} parent=20 // loop_exit
        _
    $region21: #{dcgan_g_resizedconv_forward.4} parent=12 // pred_fallthru
      _
    // Predicated region
    $region44: #{dcgan_g_resizedconv_forward.4} parent=12 // pred_check
      _
    $region45: #{dcgan_g_resizedconv_forward.4} parent=12 // pred_check_branch
      %79 = sbr.rel (0) target = $region47
    $region46: #{dcgan_g_resizedconv_forward.4} parent=12 // pred_region
      %80 = vsyncadd %s33, 384
    $region47: #{dcgan_g_resizedconv_forward.4} parent=12 // pred_fallthru
      _
  $region13: #{dcgan_g_resizedconv_forward.4} parent=0 // pred_fallthru
    _
  %s81 = smul.u32 %s20, 6
  %s82 = smul.addr %s81, 4
  %s83 = scalar_lea.vmem [#allocation2], %s82
  %s84 = scalar_lea.sflag [#allocation3], %s20
  %s85 = smul.u32 4, 2
  %s86 = smul.u32 %s85, 3
  %s87 = sshll.u32 %s86, 4
  %88 = dma.done %s84, %s87
  %s89 = sadd.s32 0, 1
  %p90 = scmp.lt.s32.totalorder %s89, 1
  // Predicated region
  $region48: #{dcgan_g_resizedconv_forward.4} parent=0 // pred_check
    %p91 = pneg %p90
  $region49: #{dcgan_g_resizedconv_forward.4} parent=0 // pred_check_branch
    %93 = sbr.rel (%p91) target = $region51
  $region50: #{dcgan_g_resizedconv_forward.4} parent=0 // pred_region
    %s94 = ssub.s32 1, %s20
    %s95 = smul.u32 %s89, 256
    %s96 = sshra.s32 %s95, 7
    %s97 = sand.u32 %s95, 127
    %s98 = smul.addr %s96, 4
    %s99 = scalar_lea.vmem %s1, %s98
    %s100 = smul.u32 %s94, 6
    %s101 = smul.addr %s100, 4
    %s102 = scalar_lea.vmem [#allocation2], %s101
    %s103 = scalar_lea.sflag [#allocation3], %s94
    %p105 = scmp.lt.u32.totalorder 24, 8
    %p106 = pneg %p105
    // Predicated region
    $region52: #{dcgan_g_resizedconv_forward.4} parent=50 // pred_check
      _
    $region53: #{dcgan_g_resizedconv_forward.4} parent=50 // pred_check_branch
      %108 = sbr.rel (%p105) target = $region55
    $region54: #{dcgan_g_resizedconv_forward.4} parent=50 // pred_region
      %s124 = sand.u32 24, 7
      %p125 = scmp.eq.s32.totalorder %s124, 0
      // Predicated region
      $region67: #{dcgan_g_resizedconv_forward.4} parent=54 // pred_check
        %p126 = pneg %p125
      $region68: #{dcgan_g_resizedconv_forward.4} parent=54 // pred_check_branch
        %128 = sbr.rel (%p126) target = $region70
      $region69: #{dcgan_g_resizedconv_forward.4} parent=54 // pred_region
        loop: start=0, step=1, limit=1
        $region71: #{dcgan_g_resizedconv_forward.4} parent=69 // loop_pre_header
          _
        $region72: #{dcgan_g_resizedconv_forward.4} parent=69 // loop_header
          %s130 = sphi 0, %s134
          %p131 = scmp.ge.s32.totalorder %s130, 1
          %s135 = sphi %s99, %s99
          %s136 = sphi %s102, %s102
        $region73: #{dcgan_g_resizedconv_forward.4} parent=69 // loop_header_branch
          %133 = sbr.rel (%p131) target = $region77
        $region74: #{dcgan_g_resizedconv_forward.4} parent=69 // loop_body
          %v137 = vld [vmem:[%s135] sm:$0xff]
          %138 = vst [vmem:[%s136] sm:$0xff] %v137
          %v139 = vld [vmem:[%s135 + $0x8] sm:$0xff]
          %140 = vst [vmem:[%s136 + $0x8] sm:$0xff] %v139
          %v141 = vld [vmem:[%s135 + $0x10] sm:$0xff]
          %142 = vst [vmem:[%s136 + $0x10] sm:$0xff] %v141
        $region75: #{dcgan_g_resizedconv_forward.4} parent=69 // loop_footer
          %s134 = sadd.s32 1, %s130
        $region76: #{dcgan_g_resizedconv_forward.4} parent=69 // loop_footer_branch
          %129 = sbr.rel target = $region72
        $region77: #{dcgan_g_resizedconv_forward.4} parent=69 // loop_exit
          _
      $region70: #{dcgan_g_resizedconv_forward.4} parent=54 // pred_fallthru
        _
      %p143 = pneg %p125
      // Predicated region
      $region78: #{dcgan_g_resizedconv_forward.4} parent=54 // pred_check
        _
      $region79: #{dcgan_g_resizedconv_forward.4} parent=54 // pred_check_branch
        %145 = sbr.rel (%p125) target = $region81
      $region80: #{dcgan_g_resizedconv_forward.4} parent=54 // pred_region
        %s146 = sand.u32 24, 7
      $region81: #{dcgan_g_resizedconv_forward.4} parent=54 // pred_fallthru
        _
    $region55: #{dcgan_g_resizedconv_forward.4} parent=50 // pred_fallthru
      _
    // Predicated region
    $region56: #{dcgan_g_resizedconv_forward.4} parent=50 // pred_check
      %p109 = pneg %p105
    $region57: #{dcgan_g_resizedconv_forward.4} parent=50 // pred_check_branch
      %111 = sbr.rel (%p109) target = $region59
    $region58: #{dcgan_g_resizedconv_forward.4} parent=50 // pred_region
      %s112 = sshll.u32 1, 24
      %s113 = ssub.s32 %s112, 1
      loop: start=0, step=1, limit=1
      $region60: #{dcgan_g_resizedconv_forward.4} parent=58 // loop_pre_header
        _
      $region61: #{dcgan_g_resizedconv_forward.4} parent=58 // loop_header
        %s115 = sphi 0, %s119
        %p116 = scmp.ge.s32.totalorder %s115, 1
        %s120 = sphi %s99, %s99
        %s121 = sphi %s102, %s102
      $region62: #{dcgan_g_resizedconv_forward.4} parent=58 // loop_header_branch
        %118 = sbr.rel (%p116) target = $region66
      $region63: #{dcgan_g_resizedconv_forward.4} parent=58 // loop_body
        %v122 = vld [vmem:[%s120] sm:%s113]
        %123 = vst [vmem:[%s121] sm:%s113] %v122
      $region64: #{dcgan_g_resizedconv_forward.4} parent=58 // loop_footer
        %s119 = sadd.s32 1, %s115
      $region65: #{dcgan_g_resizedconv_forward.4} parent=58 // loop_footer_branch
        %114 = sbr.rel target = $region61
      $region66: #{dcgan_g_resizedconv_forward.4} parent=58 // loop_exit
        _
    $region59: #{dcgan_g_resizedconv_forward.4} parent=50 // pred_fallthru
      _
    // Predicated region
    $region82: #{dcgan_g_resizedconv_forward.4} parent=50 // pred_check
      _
    $region83: #{dcgan_g_resizedconv_forward.4} parent=50 // pred_check_branch
      %149 = sbr.rel (0) target = $region85
    $region84: #{dcgan_g_resizedconv_forward.4} parent=50 // pred_region
      %150 = vsyncadd %s103, 384
    $region85: #{dcgan_g_resizedconv_forward.4} parent=50 // pred_fallthru
      _
  $region51: #{dcgan_g_resizedconv_forward.4} parent=0 // pred_fallthru
    _
  %v151 = vld [vmem:[%s83] sm:$0xff]
  %v152 = vld [vmem:[%s83 + $0x8] sm:$0xf]
  %v153 = vld [vmem:[%s83 + $0xc] sm:$0xff]
  %v154 = vld [vmem:[%s83 + $0x14] sm:$0xf]
  %v155 = vld [vmem:[%s0] sm:$0xf]
  %v156 = vld [vmem:[%s0 + $0x4] sm:$0xf]
  %v159 = vunpack.c.l.b16 %v155
  %v160 = vunpack.c.l.b16 %v156
  %v161 = vpack.c.b16 %v160, %v159
  %v164 = vunpack.c.l.b16 %v151
  %v165 = vunpack.c.h.b16 %v151
  %v166 = vunpack.c.l.b16 %v153
  %v167 = vunpack.c.h.b16 %v153
  %v168 = vpack.c.b16 %v166, %v164
  %v169 = vpack.c.b16 %v167, %v165
  %vm172 = vcmask 130048
  %v174 = vsel %vm172, %v161, 0
  %176 = vmatprep.subr.bf16.mxu0 0
  %177 = vmatpush1.bf16.msra.mxu0 0
  %178 = vmatprep.subr.bf16.mxu0 0
  %179 = vmatpush1.bf16.msra.mxu0 0
  %180 = vmatprep.subr.bf16.mxu0 0
  %181 = vmatpush1.bf16.msra.mxu0 0
  %182 = vmatprep.subr.bf16.mxu0 0
  %183 = vmatpush1.bf16.msra.mxu0 0
  %184 = vmatprep.subr.bf16.mxu0 0
  %185 = vmatpush1.bf16.msra.mxu0 0
  %186 = vmatprep.subr.bf16.mxu0 0
  %187 = vmatpush1.bf16.msra.mxu0 0
  %188 = vmatprep.subr.bf16.mxu0 0
  %189 = vmatpush1.bf16.msra.mxu0 0
  %190 = vmatprep.subr.bf16.mxu0 %v169
  %191 = vmatpush1.bf16.msra.mxu0 %v168
  %192 = vmatprep.subr.bf16.mxu0 0
  %193 = vmatpush2.bf16.msra.mxu0 0
  %194 = vmatprep.subr.bf16.mxu0 0
  %195 = vmatpush2.bf16.msra.mxu0 0
  %196 = vmatprep.subr.bf16.mxu0 0
  %197 = vmatpush2.bf16.msra.mxu0 0
  %198 = vmatprep.subr.bf16.mxu0 0
  %199 = vmatpush2.bf16.msra.mxu0 0
  %200 = vmatprep.subr.bf16.mxu0 0
  %201 = vmatpush2.bf16.msra.mxu0 0
  %202 = vmatprep.subr.bf16.mxu0 0
  %203 = vmatpush2.bf16.msra.mxu0 0
  %204 = vmatprep.subr.bf16.mxu0 0
  %205 = vmatpush2.bf16.msra.mxu0 0
  %206 = vmatprep.subr.bf16.mxu0 0
  %207 = vmatpush2.bf16.msra.mxu0 0
  %208 = vmatprep.mubr.bf16.mxu0 0
  %209 = vmatmul.mubr.bf16.gmra.mxu0 %v174
  %v210 = vpop.f32.mrf.mxu0
  %v211 = vadd.f32 0.0, %v210
  %v212 = vpop.f32.mrf.mxu0
  %v213 = vadd.f32 0.0, %v212
  %v214 = vpop.f32.mrf.mxu0
  %v215 = vadd.f32 0.0, %v214
  %v216 = vpop.f32.mrf.mxu0
  %v217 = vadd.f32 0.0, %v216
  %218 = vdwg.mxu0
  %219 = vst [vmem:[#allocation4] sm:$0xff] %v211
  %220 = vst [vmem:[#allocation4 + $0x8] sm:$0xff] %v213
  %221 = vst [vmem:[#allocation4 + $0x10] sm:$0xff] %v215
  %222 = vst [vmem:[#allocation4 + $0x18] sm:$0xff] %v217
  %s223 = scalar_lea.vmem %s0, 8
  %v224 = vld [vmem:[%s223] sm:$0xf]
  %v225 = vld [vmem:[%s223 + $0x4] sm:$0xf]
  %v228 = vunpack.c.l.b16 %v224
  %v229 = vunpack.c.l.b16 %v225
  %v230 = vpack.c.b16 %v229, %v228
  %v233 = vunpack.c.l.b16 %v152
  %v234 = vunpack.c.l.b16 %v154
  %v235 = vpack.c.b16 %v234, %v233
  %236 = vrot.lane.b32.xlu0 %v168, 127
  %v237 = vpop.permute.xlu0 %236
  %238 = vrot.lane.b32.xlu0 %v169, 127
  %v239 = vpop.permute.xlu0 %238
  %240 = vrot.lane.b32.xlu0 %v235, 127
  %v241 = vpop.permute.xlu0 %240
  %vm242 = vcmask 1039360
  %v243 = vsel %vm242, %v237, %v239
  %v244 = vsel %vm242, %v239, %v241
  %v248 = vsel %vm172, %v230, 0
  %250 = vmatprep.subr.bf16.mxu0 0
  %251 = vmatpush1.bf16.msra.mxu0 0
  %252 = vmatprep.subr.bf16.mxu0 0
  %253 = vmatpush1.bf16.msra.mxu0 0
  %254 = vmatprep.subr.bf16.mxu0 0
  %255 = vmatpush1.bf16.msra.mxu0 0
  %256 = vmatprep.subr.bf16.mxu0 0
  %257 = vmatpush1.bf16.msra.mxu0 0
  %258 = vmatprep.subr.bf16.mxu0 0
  %259 = vmatpush1.bf16.msra.mxu0 0
  %260 = vmatprep.subr.bf16.mxu0 0
  %261 = vmatpush1.bf16.msra.mxu0 0
  %262 = vmatprep.subr.bf16.mxu0 0
  %263 = vmatpush1.bf16.msra.mxu0 0
  %264 = vmatprep.subr.bf16.mxu0 %v244
  %265 = vmatpush1.bf16.msra.mxu0 %v243
  %266 = vmatprep.subr.bf16.mxu0 0
  %267 = vmatpush2.bf16.msra.mxu0 0
  %268 = vmatprep.subr.bf16.mxu0 0
  %269 = vmatpush2.bf16.msra.mxu0 0
  %270 = vmatprep.subr.bf16.mxu0 0
  %271 = vmatpush2.bf16.msra.mxu0 0
  %272 = vmatprep.subr.bf16.mxu0 0
  %273 = vmatpush2.bf16.msra.mxu0 0
  %274 = vmatprep.subr.bf16.mxu0 0
  %275 = vmatpush2.bf16.msra.mxu0 0
  %276 = vmatprep.subr.bf16.mxu0 0
  %277 = vmatpush2.bf16.msra.mxu0 0
  %278 = vmatprep.subr.bf16.mxu0 0
  %279 = vmatpush2.bf16.msra.mxu0 0
  %280 = vmatprep.subr.bf16.mxu0 0
  %281 = vmatpush2.bf16.msra.mxu0 0
  %282 = vmatprep.mubr.bf16.mxu0 0
  %283 = vmatmul.mubr.bf16.gmra.mxu0 %v248
  %v284 = vpop.f32.mrf.mxu0
  %v285 = vadd.f32 0.0, %v284
  %v286 = vpop.f32.mrf.mxu0
  %v287 = vadd.f32 0.0, %v286
  %v288 = vpop.f32.mrf.mxu0
  %v289 = vadd.f32 0.0, %v288
  %v290 = vpop.f32.mrf.mxu0
  %v291 = vadd.f32 0.0, %v290
  %292 = vdwg.mxu0
  %v293 = vld [vmem:[#allocation4] sm:$0xff]
  %v294 = vld [vmem:[#allocation4 + $0x8] sm:$0xff]
  %v295 = vld [vmem:[#allocation4 + $0x10] sm:$0xff]
  %v296 = vld [vmem:[#allocation4 + $0x18] sm:$0xff]
  %v297 = vadd.f32 %v293, %v285
  %v298 = vadd.f32 %v294, %v287
  %v299 = vadd.f32 %v295, %v289
  %v300 = vadd.f32 %v296, %v291
  %301 = vst [vmem:[#allocation4] sm:$0xff] %v297
  %302 = vst [vmem:[#allocation4 + $0x8] sm:$0xff] %v298
  %303 = vst [vmem:[#allocation4 + $0x10] sm:$0xff] %v299
  %304 = vst [vmem:[#allocation4 + $0x18] sm:$0xff] %v300
  %s305 = scalar_lea.vmem %s0, 16
  %v306 = vld [vmem:[%s305] sm:$0xf]
  %v307 = vld [vmem:[%s305 + $0x4] sm:$0xf]
  %v310 = vunpack.c.l.b16 %v306
  %v311 = vunpack.c.l.b16 %v307
  %v312 = vpack.c.b16 %v311, %v310
  %313 = vrot.lane.b32.xlu0 %v168, 126
  %v314 = vpop.permute.xlu0 %313
  %315 = vrot.lane.b32.xlu0 %v169, 126
  %v316 = vpop.permute.xlu0 %315
  %317 = vrot.lane.b32.xlu0 %v235, 126
  %v318 = vpop.permute.xlu0 %317
  %vm319 = vcmask 1031168
  %v320 = vsel %vm319, %v314, %v316
  %v321 = vsel %vm319, %v316, %v318
  %v325 = vsel %vm172, %v312, 0
  %327 = vmatprep.subr.bf16.mxu0 0
  %328 = vmatpush1.bf16.msra.mxu0 0
  %329 = vmatprep.subr.bf16.mxu0 0
  %330 = vmatpush1.bf16.msra.mxu0 0
  %331 = vmatprep.subr.bf16.mxu0 0
  %332 = vmatpush1.bf16.msra.mxu0 0
  %333 = vmatprep.subr.bf16.mxu0 0
  %334 = vmatpush1.bf16.msra.mxu0 0
  %335 = vmatprep.subr.bf16.mxu0 0
  %336 = vmatpush1.bf16.msra.mxu0 0
  %337 = vmatprep.subr.bf16.mxu0 0
  %338 = vmatpush1.bf16.msra.mxu0 0
  %339 = vmatprep.subr.bf16.mxu0 0
  %340 = vmatpush1.bf16.msra.mxu0 0
  %341 = vmatprep.subr.bf16.mxu0 %v321
  %342 = vmatpush1.bf16.msra.mxu0 %v320
  %343 = vmatprep.subr.bf16.mxu0 0
  %344 = vmatpush2.bf16.msra.mxu0 0
  %345 = vmatprep.subr.bf16.mxu0 0
  %346 = vmatpush2.bf16.msra.mxu0 0
  %347 = vmatprep.subr.bf16.mxu0 0
  %348 = vmatpush2.bf16.msra.mxu0 0
  %349 = vmatprep.subr.bf16.mxu0 0
  %350 = vmatpush2.bf16.msra.mxu0 0
  %351 = vmatprep.subr.bf16.mxu0 0
  %352 = vmatpush2.bf16.msra.mxu0 0
  %353 = vmatprep.subr.bf16.mxu0 0
  %354 = vmatpush2.bf16.msra.mxu0 0
  %355 = vmatprep.subr.bf16.mxu0 0
  %356 = vmatpush2.bf16.msra.mxu0 0
  %357 = vmatprep.subr.bf16.mxu0 0
  %358 = vmatpush2.bf16.msra.mxu0 0
  %359 = vmatprep.mubr.bf16.mxu0 0
  %360 = vmatmul.mubr.bf16.gmra.mxu0 %v325
  %v361 = vpop.f32.mrf.mxu0
  %v362 = vadd.f32 0.0, %v361
  %v363 = vpop.f32.mrf.mxu0
  %v364 = vadd.f32 0.0, %v363
  %v365 = vpop.f32.mrf.mxu0
  %v366 = vadd.f32 0.0, %v365
  %v367 = vpop.f32.mrf.mxu0
  %v368 = vadd.f32 0.0, %v367
  %369 = vdwg.mxu0
  %v370 = vld [vmem:[#allocation4] sm:$0xff]
  %v371 = vld [vmem:[#allocation4 + $0x8] sm:$0xff]
  %v372 = vld [vmem:[#allocation4 + $0x10] sm:$0xff]
  %v373 = vld [vmem:[#allocation4 + $0x18] sm:$0xff]
  %v374 = vadd.f32 %v370, %v362
  %v375 = vadd.f32 %v371, %v364
  %v376 = vadd.f32 %v372, %v366
  %v377 = vadd.f32 %v373, %v368
  %378 = vst [vmem:[#allocation4] sm:$0xff] %v374
  %379 = vst [vmem:[#allocation4 + $0x8] sm:$0xff] %v375
  %380 = vst [vmem:[#allocation4 + $0x10] sm:$0xff] %v376
  %381 = vst [vmem:[#allocation4 + $0x18] sm:$0xff] %v377
  %s382 = scalar_lea.vmem %s0, 24
  %v383 = vld [vmem:[%s382] sm:$0xf]
  %v384 = vld [vmem:[%s382 + $0x4] sm:$0xf]
  %v387 = vunpack.c.l.b16 %v383
  %v388 = vunpack.c.l.b16 %v384
  %v389 = vpack.c.b16 %v388, %v387
  %390 = vrot.lane.b32.xlu0 %v168, 118
  %v391 = vpop.permute.xlu0 %390
  %392 = vrot.lane.b32.xlu0 %v169, 118
  %v393 = vpop.permute.xlu0 %392
  %394 = vrot.lane.b32.xlu0 %v235, 118
  %v395 = vpop.permute.xlu0 %394
  %vm396 = vcmask 965632
  %v397 = vsel %vm396, %v391, %v393
  %v398 = vsel %vm396, %v393, %v395
  %v402 = vsel %vm172, %v389, 0
  %404 = vmatprep.subr.bf16.mxu0 0
  %405 = vmatpush1.bf16.msra.mxu0 0
  %406 = vmatprep.subr.bf16.mxu0 0
  %407 = vmatpush1.bf16.msra.mxu0 0
  %408 = vmatprep.subr.bf16.mxu0 0
  %409 = vmatpush1.bf16.msra.mxu0 0
  %410 = vmatprep.subr.bf16.mxu0 0
  %411 = vmatpush1.bf16.msra.mxu0 0
  %412 = vmatprep.subr.bf16.mxu0 0
  %413 = vmatpush1.bf16.msra.mxu0 0
  %414 = vmatprep.subr.bf16.mxu0 0
  %415 = vmatpush1.bf16.msra.mxu0 0
  %416 = vmatprep.subr.bf16.mxu0 0
  %417 = vmatpush1.bf16.msra.mxu0 0
  %418 = vmatprep.subr.bf16.mxu0 %v398
  %419 = vmatpush1.bf16.msra.mxu0 %v397
  %420 = vmatprep.subr.bf16.mxu0 0
  %421 = vmatpush2.bf16.msra.mxu0 0
  %422 = vmatprep.subr.bf16.mxu0 0
  %423 = vmatpush2.bf16.msra.mxu0 0
  %424 = vmatprep.subr.bf16.mxu0 0
  %425 = vmatpush2.bf16.msra.mxu0 0
  %426 = vmatprep.subr.bf16.mxu0 0
  %427 = vmatpush2.bf16.msra.mxu0 0
  %428 = vmatprep.subr.bf16.mxu0 0
  %429 = vmatpush2.bf16.msra.mxu0 0
  %430 = vmatprep.subr.bf16.mxu0 0
  %431 = vmatpush2.bf16.msra.mxu0 0
  %432 = vmatprep.subr.bf16.mxu0 0
  %433 = vmatpush2.bf16.msra.mxu0 0
  %434 = vmatprep.subr.bf16.mxu0 0
  %435 = vmatpush2.bf16.msra.mxu0 0
  %436 = vmatprep.mubr.bf16.mxu0 0
  %437 = vmatmul.mubr.bf16.gmra.mxu0 %v402
  %v438 = vpop.f32.mrf.mxu0
  %v439 = vadd.f32 0.0, %v438
  %v440 = vpop.f32.mrf.mxu0
  %v441 = vadd.f32 0.0, %v440
  %v442 = vpop.f32.mrf.mxu0
  %v443 = vadd.f32 0.0, %v442
  %v444 = vpop.f32.mrf.mxu0
  %v445 = vadd.f32 0.0, %v444
  %446 = vdwg.mxu0
  %v447 = vld [vmem:[#allocation4] sm:$0xff]
  %v448 = vld [vmem:[#allocation4 + $0x8] sm:$0xff]
  %v449 = vld [vmem:[#allocation4 + $0x10] sm:$0xff]
  %v450 = vld [vmem:[#allocation4 + $0x18] sm:$0xff]
  %v451 = vadd.f32 %v447, %v439
  %v452 = vadd.f32 %v448, %v441
  %v453 = vadd.f32 %v449, %v443
  %v454 = vadd.f32 %v450, %v445
  %455 = vst [vmem:[#allocation4] sm:$0xff] %v451
  %456 = vst [vmem:[#allocation4 + $0x8] sm:$0xff] %v452
  %457 = vst [vmem:[#allocation4 + $0x10] sm:$0xff] %v453
  %458 = vst [vmem:[#allocation4 + $0x18] sm:$0xff] %v454
  %s459 = scalar_lea.vmem %s0, 32
  %v460 = vld [vmem:[%s459] sm:$0xf]
  %v461 = vld [vmem:[%s459 + $0x4] sm:$0xf]
  %v464 = vunpack.c.l.b16 %v460
  %v465 = vunpack.c.l.b16 %v461
  %v466 = vpack.c.b16 %v465, %v464
  %467 = vrot.lane.b32.xlu0 %v168, 117
  %v468 = vpop.permute.xlu0 %467
  %469 = vrot.lane.b32.xlu0 %v169, 117
  %v470 = vpop.permute.xlu0 %469
  %471 = vrot.lane.b32.xlu0 %v235, 117
  %v472 = vpop.permute.xlu0 %471
  %vm473 = vcmask 957440
  %v474 = vsel %vm473, %v468, %v470
  %v475 = vsel %vm473, %v470, %v472
  %v479 = vsel %vm172, %v466, 0
  %481 = vmatprep.subr.bf16.mxu0 0
  %482 = vmatpush1.bf16.msra.mxu0 0
  %483 = vmatprep.subr.bf16.mxu0 0
  %484 = vmatpush1.bf16.msra.mxu0 0
  %485 = vmatprep.subr.bf16.mxu0 0
  %486 = vmatpush1.bf16.msra.mxu0 0
  %487 = vmatprep.subr.bf16.mxu0 0
  %488 = vmatpush1.bf16.msra.mxu0 0
  %489 = vmatprep.subr.bf16.mxu0 0
  %490 = vmatpush1.bf16.msra.mxu0 0
  %491 = vmatprep.subr.bf16.mxu0 0
  %492 = vmatpush1.bf16.msra.mxu0 0
  %493 = vmatprep.subr.bf16.mxu0 0
  %494 = vmatpush1.bf16.msra.mxu0 0
  %495 = vmatprep.subr.bf16.mxu0 %v475
  %496 = vmatpush1.bf16.msra.mxu0 %v474
  %497 = vmatprep.subr.bf16.mxu0 0
  %498 = vmatpush2.bf16.msra.mxu0 0
  %499 = vmatprep.subr.bf16.mxu0 0
  %500 = vmatpush2.bf16.msra.mxu0 0
  %501 = vmatprep.subr.bf16.mxu0 0
  %502 = vmatpush2.bf16.msra.mxu0 0
  %503 = vmatprep.subr.bf16.mxu0 0
  %504 = vmatpush2.bf16.msra.mxu0 0
  %505 = vmatprep.subr.bf16.mxu0 0
  %506 = vmatpush2.bf16.msra.mxu0 0
  %507 = vmatprep.subr.bf16.mxu0 0
  %508 = vmatpush2.bf16.msra.mxu0 0
  %509 = vmatprep.subr.bf16.mxu0 0
  %510 = vmatpush2.bf16.msra.mxu0 0
  %511 = vmatprep.subr.bf16.mxu0 0
  %512 = vmatpush2.bf16.msra.mxu0 0
  %513 = vmatprep.mubr.bf16.mxu0 0
  %514 = vmatmul.mubr.bf16.gmra.mxu0 %v479
  %v515 = vpop.f32.mrf.mxu0
  %v516 = vadd.f32 0.0, %v515
  %v517 = vpop.f32.mrf.mxu0
  %v518 = vadd.f32 0.0, %v517
  %v519 = vpop.f32.mrf.mxu0
  %v520 = vadd.f32 0.0, %v519
  %v521 = vpop.f32.mrf.mxu0
  %v522 = vadd.f32 0.0, %v521
  %523 = vdwg.mxu0
  %v524 = vld [vmem:[#allocation4] sm:$0xff]
  %v525 = vld [vmem:[#allocation4 + $0x8] sm:$0xff]
  %v526 = vld [vmem:[#allocation4 + $0x10] sm:$0xff]
  %v527 = vld [vmem:[#allocation4 + $0x18] sm:$0xff]
  %v528 = vadd.f32 %v524, %v516
  %v529 = vadd.f32 %v525, %v518
  %v530 = vadd.f32 %v526, %v520
  %v531 = vadd.f32 %v527, %v522
  %532 = vst [vmem:[#allocation4] sm:$0xff] %v528
  %533 = vst [vmem:[#allocation4 + $0x8] sm:$0xff] %v529
  %534 = vst [vmem:[#allocation4 + $0x10] sm:$0xff] %v530
  %535 = vst [vmem:[#allocation4 + $0x18] sm:$0xff] %v531
  %s536 = scalar_lea.vmem %s0, 40
  %v537 = vld [vmem:[%s536] sm:$0xf]
  %v538 = vld [vmem:[%s536 + $0x4] sm:$0xf]
  %v541 = vunpack.c.l.b16 %v537
  %v542 = vunpack.c.l.b16 %v538
  %v543 = vpack.c.b16 %v542, %v541
  %544 = vrot.lane.b32.xlu0 %v168, 116
  %v545 = vpop.permute.xlu0 %544
  %546 = vrot.lane.b32.xlu0 %v169, 116
  %v547 = vpop.permute.xlu0 %546
  %548 = vrot.lane.b32.xlu0 %v235, 116
  %v549 = vpop.permute.xlu0 %548
  %vm550 = vcmask 949248
  %v551 = vsel %vm550, %v545, %v547
  %v552 = vsel %vm550, %v547, %v549
  %v556 = vsel %vm172, %v543, 0
  %558 = vmatprep.subr.bf16.mxu0 0
  %559 = vmatpush1.bf16.msra.mxu0 0
  %560 = vmatprep.subr.bf16.mxu0 0
  %561 = vmatpush1.bf16.msra.mxu0 0
  %562 = vmatprep.subr.bf16.mxu0 0
  %563 = vmatpush1.bf16.msra.mxu0 0
  %564 = vmatprep.subr.bf16.mxu0 0
  %565 = vmatpush1.bf16.msra.mxu0 0
  %566 = vmatprep.subr.bf16.mxu0 0
  %567 = vmatpush1.bf16.msra.mxu0 0
  %568 = vmatprep.subr.bf16.mxu0 0
  %569 = vmatpush1.bf16.msra.mxu0 0
  %570 = vmatprep.subr.bf16.mxu0 0
  %571 = vmatpush1.bf16.msra.mxu0 0
  %572 = vmatprep.subr.bf16.mxu0 %v552
  %573 = vmatpush1.bf16.msra.mxu0 %v551
  %574 = vmatprep.subr.bf16.mxu0 0
  %575 = vmatpush2.bf16.msra.mxu0 0
  %576 = vmatprep.subr.bf16.mxu0 0
  %577 = vmatpush2.bf16.msra.mxu0 0
  %578 = vmatprep.subr.bf16.mxu0 0
  %579 = vmatpush2.bf16.msra.mxu0 0
  %580 = vmatprep.subr.bf16.mxu0 0
  %581 = vmatpush2.bf16.msra.mxu0 0
  %582 = vmatprep.subr.bf16.mxu0 0
  %583 = vmatpush2.bf16.msra.mxu0 0
  %584 = vmatprep.subr.bf16.mxu0 0
  %585 = vmatpush2.bf16.msra.mxu0 0
  %586 = vmatprep.subr.bf16.mxu0 0
  %587 = vmatpush2.bf16.msra.mxu0 0
  %588 = vmatprep.subr.bf16.mxu0 0
  %589 = vmatpush2.bf16.msra.mxu0 0
  %590 = vmatprep.mubr.bf16.mxu0 0
  %591 = vmatmul.mubr.bf16.gmra.mxu0 %v556
  %v592 = vpop.f32.mrf.mxu0
  %v593 = vadd.f32 0.0, %v592
  %v594 = vpop.f32.mrf.mxu0
  %v595 = vadd.f32 0.0, %v594
  %v596 = vpop.f32.mrf.mxu0
  %v597 = vadd.f32 0.0, %v596
  %v598 = vpop.f32.mrf.mxu0
  %v599 = vadd.f32 0.0, %v598
  %600 = vdwg.mxu0
  %v601 = vld [vmem:[#allocation4] sm:$0xff]
  %v602 = vld [vmem:[#allocation4 + $0x8] sm:$0xff]
  %v603 = vld [vmem:[#allocation4 + $0x10] sm:$0xff]
  %v604 = vld [vmem:[#allocation4 + $0x18] sm:$0xff]
  %v605 = vadd.f32 %v601, %v593
  %v606 = vadd.f32 %v602, %v595
  %v607 = vadd.f32 %v603, %v597
  %v608 = vadd.f32 %v604, %v599
  %609 = vst [vmem:[#allocation4] sm:$0xff] %v605
  %610 = vst [vmem:[#allocation4 + $0x8] sm:$0xff] %v606
  %611 = vst [vmem:[#allocation4 + $0x10] sm:$0xff] %v607
  %612 = vst [vmem:[#allocation4 + $0x18] sm:$0xff] %v608
  %s613 = scalar_lea.vmem %s0, 48
  %v614 = vld [vmem:[%s613] sm:$0xf]
  %v615 = vld [vmem:[%s613 + $0x4] sm:$0xf]
  %v618 = vunpack.c.l.b16 %v614
  %v619 = vunpack.c.l.b16 %v615
  %v620 = vpack.c.b16 %v619, %v618
  %621 = vrot.lane.b32.xlu0 %v168, 108
  %v622 = vpop.permute.xlu0 %621
  %623 = vrot.lane.b32.xlu0 %v169, 108
  %v624 = vpop.permute.xlu0 %623
  %625 = vrot.lane.b32.xlu0 %v235, 108
  %v626 = vpop.permute.xlu0 %625
  %vm627 = vcmask 883712
  %v628 = vsel %vm627, %v622, %v624
  %v629 = vsel %vm627, %v624, %v626
  %v633 = vsel %vm172, %v620, 0
  %635 = vmatprep.subr.bf16.mxu0 0
  %636 = vmatpush1.bf16.msra.mxu0 0
  %637 = vmatprep.subr.bf16.mxu0 0
  %638 = vmatpush1.bf16.msra.mxu0 0
  %639 = vmatprep.subr.bf16.mxu0 0
  %640 = vmatpush1.bf16.msra.mxu0 0
  %641 = vmatprep.subr.bf16.mxu0 0
  %642 = vmatpush1.bf16.msra.mxu0 0
  %643 = vmatprep.subr.bf16.mxu0 0
  %644 = vmatpush1.bf16.msra.mxu0 0
  %645 = vmatprep.subr.bf16.mxu0 0
  %646 = vmatpush1.bf16.msra.mxu0 0
  %647 = vmatprep.subr.bf16.mxu0 0
  %648 = vmatpush1.bf16.msra.mxu0 0
  %649 = vmatprep.subr.bf16.mxu0 %v629
  %650 = vmatpush1.bf16.msra.mxu0 %v628
  %651 = vmatprep.subr.bf16.mxu0 0
  %652 = vmatpush2.bf16.msra.mxu0 0
  %653 = vmatprep.subr.bf16.mxu0 0
  %654 = vmatpush2.bf16.msra.mxu0 0
  %655 = vmatprep.subr.bf16.mxu0 0
  %656 = vmatpush2.bf16.msra.mxu0 0
  %657 = vmatprep.subr.bf16.mxu0 0
  %658 = vmatpush2.bf16.msra.mxu0 0
  %659 = vmatprep.subr.bf16.mxu0 0
  %660 = vmatpush2.bf16.msra.mxu0 0
  %661 = vmatprep.subr.bf16.mxu0 0
  %662 = vmatpush2.bf16.msra.mxu0 0
  %663 = vmatprep.subr.bf16.mxu0 0
  %664 = vmatpush2.bf16.msra.mxu0 0
  %665 = vmatprep.subr.bf16.mxu0 0
  %666 = vmatpush2.bf16.msra.mxu0 0
  %667 = vmatprep.mubr.bf16.mxu0 0
  %668 = vmatmul.mubr.bf16.gmra.mxu0 %v633
  %v669 = vpop.f32.mrf.mxu0
  %v670 = vadd.f32 0.0, %v669
  %v671 = vpop.f32.mrf.mxu0
  %v672 = vadd.f32 0.0, %v671
  %v673 = vpop.f32.mrf.mxu0
  %v674 = vadd.f32 0.0, %v673
  %v675 = vpop.f32.mrf.mxu0
  %v676 = vadd.f32 0.0, %v675
  %677 = vdwg.mxu0
  %v678 = vld [vmem:[#allocation4] sm:$0xff]
  %v679 = vld [vmem:[#allocation4 + $0x8] sm:$0xff]
  %v680 = vld [vmem:[#allocation4 + $0x10] sm:$0xff]
  %v681 = vld [vmem:[#allocation4 + $0x18] sm:$0xff]
  %v682 = vadd.f32 %v678, %v670
  %v683 = vadd.f32 %v679, %v672
  %v684 = vadd.f32 %v680, %v674
  %v685 = vadd.f32 %v681, %v676
  %686 = vst [vmem:[#allocation4] sm:$0xff] %v682
  %687 = vst [vmem:[#allocation4 + $0x8] sm:$0xff] %v683
  %688 = vst [vmem:[#allocation4 + $0x10] sm:$0xff] %v684
  %689 = vst [vmem:[#allocation4 + $0x18] sm:$0xff] %v685
  %s690 = scalar_lea.vmem %s0, 56
  %v691 = vld [vmem:[%s690] sm:$0xf]
  %v692 = vld [vmem:[%s690 + $0x4] sm:$0xf]
  %v695 = vunpack.c.l.b16 %v691
  %v696 = vunpack.c.l.b16 %v692
  %v697 = vpack.c.b16 %v696, %v695
  %698 = vrot.lane.b32.xlu0 %v168, 107
  %v699 = vpop.permute.xlu0 %698
  %700 = vrot.lane.b32.xlu0 %v169, 107
  %v701 = vpop.permute.xlu0 %700
  %702 = vrot.lane.b32.xlu0 %v235, 107
  %v703 = vpop.permute.xlu0 %702
  %vm704 = vcmask 875520
  %v705 = vsel %vm704, %v699, %v701
  %v706 = vsel %vm704, %v701, %v703
  %v710 = vsel %vm172, %v697, 0
  %712 = vmatprep.subr.bf16.mxu0 0
  %713 = vmatpush1.bf16.msra.mxu0 0
  %714 = vmatprep.subr.bf16.mxu0 0
  %715 = vmatpush1.bf16.msra.mxu0 0
  %716 = vmatprep.subr.bf16.mxu0 0
  %717 = vmatpush1.bf16.msra.mxu0 0
  %718 = vmatprep.subr.bf16.mxu0 0
  %719 = vmatpush1.bf16.msra.mxu0 0
  %720 = vmatprep.subr.bf16.mxu0 0
  %721 = vmatpush1.bf16.msra.mxu0 0
  %722 = vmatprep.subr.bf16.mxu0 0
  %723 = vmatpush1.bf16.msra.mxu0 0
  %724 = vmatprep.subr.bf16.mxu0 0
  %725 = vmatpush1.bf16.msra.mxu0 0
  %726 = vmatprep.subr.bf16.mxu0 %v706
  %727 = vmatpush1.bf16.msra.mxu0 %v705
  %728 = vmatprep.subr.bf16.mxu0 0
  %729 = vmatpush2.bf16.msra.mxu0 0
  %730 = vmatprep.subr.bf16.mxu0 0
  %731 = vmatpush2.bf16.msra.mxu0 0
  %732 = vmatprep.subr.bf16.mxu0 0
  %733 = vmatpush2.bf16.msra.mxu0 0
  %734 = vmatprep.subr.bf16.mxu0 0
  %735 = vmatpush2.bf16.msra.mxu0 0
  %736 = vmatprep.subr.bf16.mxu0 0
  %737 = vmatpush2.bf16.msra.mxu0 0
  %738 = vmatprep.subr.bf16.mxu0 0
  %739 = vmatpush2.bf16.msra.mxu0 0
  %740 = vmatprep.subr.bf16.mxu0 0
  %741 = vmatpush2.bf16.msra.mxu0 0
  %742 = vmatprep.subr.bf16.mxu0 0
  %743 = vmatpush2.bf16.msra.mxu0 0
  %744 = vmatprep.mubr.bf16.mxu0 0
  %745 = vmatmul.mubr.bf16.gmra.mxu0 %v710
  %v746 = vpop.f32.mrf.mxu0
  %v747 = vadd.f32 0.0, %v746
  %v748 = vpop.f32.mrf.mxu0
  %v749 = vadd.f32 0.0, %v748
  %v750 = vpop.f32.mrf.mxu0
  %v751 = vadd.f32 0.0, %v750
  %v752 = vpop.f32.mrf.mxu0
  %v753 = vadd.f32 0.0, %v752
  %754 = vdwg.mxu0
  %v755 = vld [vmem:[#allocation4] sm:$0xff]
  %v756 = vld [vmem:[#allocation4 + $0x8] sm:$0xff]
  %v757 = vld [vmem:[#allocation4 + $0x10] sm:$0xff]
  %v758 = vld [vmem:[#allocation4 + $0x18] sm:$0xff]
  %v759 = vadd.f32 %v755, %v747
  %v760 = vadd.f32 %v756, %v749
  %v761 = vadd.f32 %v757, %v751
  %v762 = vadd.f32 %v758, %v753
  %763 = vst [vmem:[#allocation4] sm:$0xff] %v759
  %764 = vst [vmem:[#allocation4 + $0x8] sm:$0xff] %v760
  %765 = vst [vmem:[#allocation4 + $0x10] sm:$0xff] %v761
  %766 = vst [vmem:[#allocation4 + $0x18] sm:$0xff] %v762
  %s767 = scalar_lea.vmem %s0, 64
  %v768 = vld [vmem:[%s767] sm:$0xf]
  %v769 = vld [vmem:[%s767 + $0x4] sm:$0xf]
  %v772 = vunpack.c.l.b16 %v768
  %v773 = vunpack.c.l.b16 %v769
  %v774 = vpack.c.b16 %v773, %v772
  %775 = vrot.lane.b32.xlu0 %v168, 106
  %v776 = vpop.permute.xlu0 %775
  %777 = vrot.lane.b32.xlu0 %v169, 106
  %v778 = vpop.permute.xlu0 %777
  %779 = vrot.lane.b32.xlu0 %v235, 106
  %v780 = vpop.permute.xlu0 %779
  %vm781 = vcmask 867328
  %v782 = vsel %vm781, %v776, %v778
  %v783 = vsel %vm781, %v778, %v780
  %v787 = vsel %vm172, %v774, 0
  %789 = vmatprep.subr.bf16.mxu0 0
  %790 = vmatpush1.bf16.msra.mxu0 0
  %791 = vmatprep.subr.bf16.mxu0 0
  %792 = vmatpush1.bf16.msra.mxu0 0
  %793 = vmatprep.subr.bf16.mxu0 0
  %794 = vmatpush1.bf16.msra.mxu0 0
  %795 = vmatprep.subr.bf16.mxu0 0
  %796 = vmatpush1.bf16.msra.mxu0 0
  %797 = vmatprep.subr.bf16.mxu0 0
  %798 = vmatpush1.bf16.msra.mxu0 0
  %799 = vmatprep.subr.bf16.mxu0 0
  %800 = vmatpush1.bf16.msra.mxu0 0
  %801 = vmatprep.subr.bf16.mxu0 0
  %802 = vmatpush1.bf16.msra.mxu0 0
  %803 = vmatprep.subr.bf16.mxu0 %v783
  %804 = vmatpush1.bf16.msra.mxu0 %v782
  %805 = vmatprep.subr.bf16.mxu0 0
  %806 = vmatpush2.bf16.msra.mxu0 0
  %807 = vmatprep.subr.bf16.mxu0 0
  %808 = vmatpush2.bf16.msra.mxu0 0
  %809 = vmatprep.subr.bf16.mxu0 0
  %810 = vmatpush2.bf16.msra.mxu0 0
  %811 = vmatprep.subr.bf16.mxu0 0
  %812 = vmatpush2.bf16.msra.mxu0 0
  %813 = vmatprep.subr.bf16.mxu0 0
  %814 = vmatpush2.bf16.msra.mxu0 0
  %815 = vmatprep.subr.bf16.mxu0 0
  %816 = vmatpush2.bf16.msra.mxu0 0
  %817 = vmatprep.subr.bf16.mxu0 0
  %818 = vmatpush2.bf16.msra.mxu0 0
  %819 = vmatprep.subr.bf16.mxu0 0
  %820 = vmatpush2.bf16.msra.mxu0 0
  %821 = vmatprep.mubr.bf16.mxu0 0
  %822 = vmatmul.mubr.bf16.gmra.mxu0 %v787
  %v823 = vpop.f32.mrf.mxu0
  %v824 = vadd.f32 0.0, %v823
  %v825 = vpop.f32.mrf.mxu0
  %v826 = vadd.f32 0.0, %v825
  %v827 = vpop.f32.mrf.mxu0
  %v828 = vadd.f32 0.0, %v827
  %v829 = vpop.f32.mrf.mxu0
  %v830 = vadd.f32 0.0, %v829
  %831 = vdwg.mxu0
  %v832 = vld [vmem:[#allocation4] sm:$0xff]
  %v833 = vld [vmem:[#allocation4 + $0x8] sm:$0xff]
  %v834 = vld [vmem:[#allocation4 + $0x10] sm:$0xff]
  %v835 = vld [vmem:[#allocation4 + $0x18] sm:$0xff]
  %v836 = vadd.f32 %v832, %v824
  %v837 = vadd.f32 %v833, %v826
  %v838 = vadd.f32 %v834, %v828
  %v839 = vadd.f32 %v835, %v830
  %840 = vst [vmem:[#allocation4] sm:$0xff] %v836
  %841 = vst [vmem:[#allocation4 + $0x8] sm:$0xff] %v837
  %842 = vst [vmem:[#allocation4 + $0x10] sm:$0xff] %v838
  %843 = vst [vmem:[#allocation4 + $0x18] sm:$0xff] %v839
  %v844 = vld [vmem:[#allocation4] sm:$0xff]
  %v845 = vld [vmem:[#allocation4 + $0x8] sm:$0xff]
  %v846 = vld [vmem:[#allocation4 + $0x10] sm:$0xff]
  %v847 = vld [vmem:[#allocation4 + $0x18] sm:$0xff]
  %v848 = vld [vmem:[%s2] sm:$0x3]
  %v850 = vlaneseq
  %v851 = vshrl.u32 %v850, 7
  %v852 = vsub.s32 0, %v851
  %v853 = vrot.slane %v848, %v852
  %v854 = vlaneseq
  %v855 = vshrl.u32 %v854, 7
  %v856 = vsub.s32 1, %v855
  %v857 = vrot.slane %v848, %v856
  %v860 = vmul.f32 %v844, %v853
  %v861 = vmul.f32 %v845, %v857
  %v862 = vmul.f32 %v846, %v853
  %v863 = vmul.f32 %v847, %v857
  %v864 = vadd.f32 %v860, %v861
  %865 = vadd.xlane.f32.xlu0 %v864
  %v866 = vpop.xlane.xlu0 %865
  %v867 = vadd.f32 %v862, %v863
  %868 = vadd.xlane.f32.xlu0 %v867
  %v869 = vpop.xlane.xlu0 %868
  %v870 = vmul.f32 %v866, 0.0078125
  %v871 = vmul.f32 %v869, 0.0078125
  %v872 = vsub.f32 %v844, %v870
  %v873 = vsub.f32 %v845, %v870
  %v874 = vsub.f32 %v846, %v871
  %v875 = vsub.f32 %v847, %v871
  %v876 = vmul.f32 %v872, %v872
  %v877 = vmul.f32 %v873, %v873
  %v878 = vmul.f32 %v874, %v874
  %v879 = vmul.f32 %v875, %v875
  %v880 = vmul.f32 %v876, %v853
  %v881 = vmul.f32 %v877, %v857
  %v882 = vmul.f32 %v878, %v853
  %v883 = vmul.f32 %v879, %v857
  %v884 = vadd.f32 %v880, %v881
  %885 = vadd.xlane.f32.xlu0 %v884
  %v886 = vpop.xlane.xlu0 %885
  %v887 = vadd.f32 %v882, %v883
  %888 = vadd.xlane.f32.xlu0 %v887
  %v889 = vpop.xlane.xlu0 %888
  %v890 = vmul.f32 %v886, 0.0078125
  %v891 = vmul.f32 %v889, 0.0078125
  %v892 = vadd.f32 %v890, 1e-05
  %v893 = vadd.f32 %v891, 1e-05
  %v894 = vrsqrt.pop %v892
  %v895 = vrsqrt.pop %v893
  %v896 = vmul.f32 %v872, %v894
  %v897 = vmul.f32 %v873, %v894
  %v898 = vmul.f32 %v874, %v895
  %v899 = vmul.f32 %v875, %v895
  %vm900 = vcmp.ge.f32.partialorder %v896, 0.0
  %vm901 = vcmp.ge.f32.partialorder %v897, 0.0
  %vm902 = vcmp.ge.f32.partialorder %v898, 0.0
  %vm903 = vcmp.ge.f32.partialorder %v899, 0.0
  %v904 = vmul.f32 %v896, 0.2
  %v905 = vmul.f32 %v897, 0.2
  %v906 = vmul.f32 %v898, 0.2
  %v907 = vmul.f32 %v899, 0.2
  %v908 = vsel %vm900, %v896, %v904
  %v909 = vsel %vm901, %v897, %v905
  %v910 = vsel %vm902, %v898, %v906
  %v911 = vsel %vm903, %v899, %v907
  %v912 = vpack.c.bf16 %v910, %v908
  %v913 = vpack.c.bf16 %v911, %v909
  %v916 = vunpack.c.l.b16 %v912
  %v917 = vunpack.c.l.b16 %v913
  %v918 = vunpack.c.h.b16 %v912
  %v919 = vunpack.c.h.b16 %v913
  %v920 = vpack.c.b16 %v917, %v916
  %v921 = vpack.c.b16 %v919, %v918
  %924 = vst [vmem:[%s3] sm:$0xff] %v920
  %925 = vst [vmem:[%s3 + $0x8] sm:$0xff] %v921
  // Predicated region
  $region86: #{dcgan_g_resizedconv_forward.4} parent=0 // pred_check
    _
  $region87: #{dcgan_g_resizedconv_forward.4} parent=0 // pred_check_branch
    %927 = sbr.rel (0) target = $region89
  $region88: #{dcgan_g_resizedconv_forward.4} parent=0 // pred_region
    _
  $region89: #{dcgan_g_resizedconv_forward.4} parent=0 // pred_fallthru
    _
  // Predicated region
  $region90: #{dcgan_g_resizedconv_forward.4} parent=0 // pred_check
    _
  $region91: #{dcgan_g_resizedconv_forward.4} parent=0 // pred_check_branch
    %929 = sbr.rel (0) target = $region93
  $region92: #{dcgan_g_resizedconv_forward.4} parent=0 // pred_region
    _
  $region93: #{dcgan_g_resizedconv_forward.4} parent=0 // pred_fallthru
    _
  %930 = vsyncmov [#allocation3]
  %s931 = vpop.sfrf %930
  %p932 = scmp.eq.s32.totalorder %s931, 0
  %p933 = pneg %p932
  %935 = shalt.err (%p933)
  %s936 = scalar_lea.sflag [#allocation3], 1
  %937 = vsyncmov %s936
  %s938 = vpop.sfrf %937
  %p939 = scmp.eq.s32.totalorder %s938, 0
  %p940 = pneg %p939
  %942 = shalt.err (%p940)

// kernel: dcgan_g_resizedconv_forward.5
$region0: #{dcgan_g_resizedconv_forward.5}
  #allocation0 [shape = 'u32[]', space=smem, size = 0x4, offset = 0x4, fixed_abs, tag = 'smem constant byte address 0x4 - core index']
  #allocation1 [shape = 'u32[144,128]{1,0:T(1,128)}', space=vmem, size = 0x12000, scoped, tag = 'internal scratch']
  #allocation2 [shape = 'bf16[1,16,896]{2,1,0:T(8,128)(2,1)}', space=vmem, size = 0x7000, scoped, tag = 'scratch operand']
  #allocation3 [shape = 's32[1]{0}', space=sflag, size = 0x4, scoped, tag = 'scratch operand']
  #allocation4 [shape = 'f32[16,768]{1,0:T(8,128)}', space=vmem, size = 0xc000, scoped, tag = 'scratch operand']
  #allocation5 [shape = 's32[]', space=sflag, size = 0x4, offset = 0, fixed_abs, tag = 'sflag constant byte address 0x0 - dummy sync flag']
  %s0 = inlined_call_operand.vmem [shape: bf16[9,16,16], index: 0, kind: input, shape index: {}]
  %s1 = inlined_call_operand.vmem [shape: bf16[16,896], index: 1, kind: input, shape index: {}]
  %s2 = inlined_call_operand.vmem [shape: f32[16,768], index: 2, kind: output, shape index: {}]
  %s3 = sld [smem:[#allocation0]]
  $region48: #{dcgan_g_resizedconv_forward.5} parent=0
    _
  %s5 = ssub.s32 1, %s3
  %s6 = scalar_select 0, %s5, %s3
  // Predicated region
  $region2: #{dcgan_g_resizedconv_forward.5} parent=0 // pred_check
    _
  $region3: #{dcgan_g_resizedconv_forward.5} parent=0 // pred_check_branch
    %8 = sbr.rel (0) target = $region5
  $region4: #{dcgan_g_resizedconv_forward.5} parent=0 // pred_region
    _
  $region5: #{dcgan_g_resizedconv_forward.5} parent=0 // pred_fallthru
    _
  %s10 = smul.u32 0, 768
  %s11 = sshra.s32 %s10, 7
  %s12 = sand.u32 %s10, 127
  %s13 = smul.addr %s11, 4
  %s14 = scalar_lea.vmem %s1, %s13
  %p16 = scmp.lt.u32.totalorder 56, 8
  %p17 = pneg %p16
  // Predicated region
  $region6: #{dcgan_g_resizedconv_forward.5} parent=0 // pred_check
    _
  $region7: #{dcgan_g_resizedconv_forward.5} parent=0 // pred_check_branch
    %19 = sbr.rel (%p16) target = $region9
  $region8: #{dcgan_g_resizedconv_forward.5} parent=0 // pred_region
    %s35 = sand.u32 56, 7
    %p36 = scmp.eq.s32.totalorder %s35, 0
    // Predicated region
    $region21: #{dcgan_g_resizedconv_forward.5} parent=8 // pred_check
      %p37 = pneg %p36
    $region22: #{dcgan_g_resizedconv_forward.5} parent=8 // pred_check_branch
      %39 = sbr.rel (%p37) target = $region24
    $region23: #{dcgan_g_resizedconv_forward.5} parent=8 // pred_region
      loop: start=0, step=1, limit=1
      $region25: #{dcgan_g_resizedconv_forward.5} parent=23 // loop_pre_header
        _
      $region26: #{dcgan_g_resizedconv_forward.5} parent=23 // loop_header
        %s41 = sphi 0, %s45
        %p42 = scmp.ge.s32.totalorder %s41, 1
        %s46 = sphi %s14, %s14
        %s47 = sphi [#allocation2], [#allocation2]
      $region27: #{dcgan_g_resizedconv_forward.5} parent=23 // loop_header_branch
        %44 = sbr.rel (%p42) target = $region31
      $region28: #{dcgan_g_resizedconv_forward.5} parent=23 // loop_body
        %v48 = vld [vmem:[%s46] sm:$0xff]
        %49 = vst [vmem:[%s47] sm:$0xff] %v48
        %v50 = vld [vmem:[%s46 + $0x8] sm:$0xff]
        %51 = vst [vmem:[%s47 + $0x8] sm:$0xff] %v50
        %v52 = vld [vmem:[%s46 + $0x10] sm:$0xff]
        %53 = vst [vmem:[%s47 + $0x10] sm:$0xff] %v52
        %v54 = vld [vmem:[%s46 + $0x18] sm:$0xff]
        %55 = vst [vmem:[%s47 + $0x18] sm:$0xff] %v54
        %v56 = vld [vmem:[%s46 + $0x20] sm:$0xff]
        %57 = vst [vmem:[%s47 + $0x20] sm:$0xff] %v56
        %v58 = vld [vmem:[%s46 + $0x28] sm:$0xff]
        %59 = vst [vmem:[%s47 + $0x28] sm:$0xff] %v58
        %v60 = vld [vmem:[%s46 + $0x30] sm:$0xff]
        %61 = vst [vmem:[%s47 + $0x30] sm:$0xff] %v60
      $region29: #{dcgan_g_resizedconv_forward.5} parent=23 // loop_footer
        %s45 = sadd.s32 1, %s41
      $region30: #{dcgan_g_resizedconv_forward.5} parent=23 // loop_footer_branch
        %40 = sbr.rel target = $region26
      $region31: #{dcgan_g_resizedconv_forward.5} parent=23 // loop_exit
        _
    $region24: #{dcgan_g_resizedconv_forward.5} parent=8 // pred_fallthru
      _
    %p62 = pneg %p36
    // Predicated region
    $region32: #{dcgan_g_resizedconv_forward.5} parent=8 // pred_check
      _
    $region33: #{dcgan_g_resizedconv_forward.5} parent=8 // pred_check_branch
      %64 = sbr.rel (%p36) target = $region35
    $region34: #{dcgan_g_resizedconv_forward.5} parent=8 // pred_region
      %s65 = sand.u32 56, 7
    $region35: #{dcgan_g_resizedconv_forward.5} parent=8 // pred_fallthru
      _
  $region9: #{dcgan_g_resizedconv_forward.5} parent=0 // pred_fallthru
    _
  // Predicated region
  $region10: #{dcgan_g_resizedconv_forward.5} parent=0 // pred_check
    %p20 = pneg %p16
  $region11: #{dcgan_g_resizedconv_forward.5} parent=0 // pred_check_branch
    %22 = sbr.rel (%p20) target = $region13
  $region12: #{dcgan_g_resizedconv_forward.5} parent=0 // pred_region
    %s23 = sshll.u32 1, 56
    %s24 = ssub.s32 %s23, 1
    loop: start=0, step=1, limit=1
    $region14: #{dcgan_g_resizedconv_forward.5} parent=12 // loop_pre_header
      _
    $region15: #{dcgan_g_resizedconv_forward.5} parent=12 // loop_header
      %s26 = sphi 0, %s30
      %p27 = scmp.ge.s32.totalorder %s26, 1
      %s31 = sphi %s14, %s14
      %s32 = sphi [#allocation2], [#allocation2]
    $region16: #{dcgan_g_resizedconv_forward.5} parent=12 // loop_header_branch
      %29 = sbr.rel (%p27) target = $region20
    $region17: #{dcgan_g_resizedconv_forward.5} parent=12 // loop_body
      %v33 = vld [vmem:[%s31] sm:%s24]
      %34 = vst [vmem:[%s32] sm:%s24] %v33
    $region18: #{dcgan_g_resizedconv_forward.5} parent=12 // loop_footer
      %s30 = sadd.s32 1, %s26
    $region19: #{dcgan_g_resizedconv_forward.5} parent=12 // loop_footer_branch
      %25 = sbr.rel target = $region15
    $region20: #{dcgan_g_resizedconv_forward.5} parent=12 // loop_exit
      _
  $region13: #{dcgan_g_resizedconv_forward.5} parent=0 // pred_fallthru
    _
  // Predicated region
  $region36: #{dcgan_g_resizedconv_forward.5} parent=0 // pred_check
    _
  $region37: #{dcgan_g_resizedconv_forward.5} parent=0 // pred_check_branch
    %68 = sbr.rel (0) target = $region39
  $region38: #{dcgan_g_resizedconv_forward.5} parent=0 // pred_region
    %69 = vsyncadd [#allocation3], 896
  $region39: #{dcgan_g_resizedconv_forward.5} parent=0 // pred_fallthru
    _
  %s70 = smul.u32 4, 2
  %s71 = smul.u32 %s70, 7
  %s72 = sshll.u32 %s71, 4
  %73 = dma.done [#allocation3], %s72
  %v74 = vld [vmem:[#allocation2] sm:$0xff]
  %v75 = vld [vmem:[#allocation2 + $0x8] sm:$0xff]
  %v76 = vld [vmem:[#allocation2 + $0x10] sm:$0xff]
  %v77 = vld [vmem:[#allocation2 + $0x18] sm:$0xf]
  %v78 = vld [vmem:[#allocation2 + $0x1c] sm:$0xff]
  %v79 = vld [vmem:[#allocation2 + $0x24] sm:$0xff]
  %v80 = vld [vmem:[#allocation2 + $0x2c] sm:$0xff]
  %v81 = vld [vmem:[#allocation2 + $0x34] sm:$0xf]
  %v82 = vld [vmem:[%s0] sm:$0xf]
  %v83 = vld [vmem:[%s0 + $0x4] sm:$0xf]
  %v86 = vunpack.c.l.b16 %v82
  %v87 = vunpack.c.l.b16 %v83
  %v88 = vpack.c.b16 %v87, %v86
  %v95 = vunpack.c.l.b16 %v74
  %v96 = vunpack.c.h.b16 %v74
  %v97 = vunpack.c.l.b16 %v75
  %v98 = vunpack.c.h.b16 %v75
  %v99 = vunpack.c.l.b16 %v76
  %v100 = vunpack.c.h.b16 %v76
  %v101 = vunpack.c.l.b16 %v78
  %v102 = vunpack.c.h.b16 %v78
  %v103 = vunpack.c.l.b16 %v79
  %v104 = vunpack.c.h.b16 %v79
  %v105 = vunpack.c.l.b16 %v80
  %v106 = vunpack.c.h.b16 %v80
  %v107 = vpack.c.b16 %v101, %v95
  %v108 = vpack.c.b16 %v102, %v96
  %v109 = vpack.c.b16 %v103, %v97
  %v110 = vpack.c.b16 %v104, %v98
  %v111 = vpack.c.b16 %v105, %v99
  %v112 = vpack.c.b16 %v106, %v100
  %vm119 = vcmask 130048
  %v121 = vsel %vm119, %v88, 0
  %123 = vmatprep.subr.bf16.mxu0 0
  %124 = vmatpush1.bf16.msra.mxu0 0
  %125 = vmatprep.subr.bf16.mxu0 0
  %126 = vmatpush1.bf16.msra.mxu0 0
  %127 = vmatprep.subr.bf16.mxu0 0
  %128 = vmatpush1.bf16.msra.mxu0 0
  %129 = vmatprep.subr.bf16.mxu0 0
  %130 = vmatpush1.bf16.msra.mxu0 0
  %131 = vmatprep.subr.bf16.mxu0 0
  %132 = vmatpush1.bf16.msra.mxu0 0
  %133 = vmatprep.subr.bf16.mxu0 0
  %134 = vmatpush1.bf16.msra.mxu0 0
  %135 = vmatprep.subr.bf16.mxu0 0
  %136 = vmatpush1.bf16.msra.mxu0 0
  %137 = vmatprep.subr.bf16.mxu0 %v108
  %138 = vmatpush1.bf16.msra.mxu0 %v107
  %139 = vmatprep.subr.bf16.mxu0 0
  %140 = vmatpush2.bf16.msra.mxu0 0
  %141 = vmatprep.subr.bf16.mxu0 0
  %142 = vmatpush2.bf16.msra.mxu0 0
  %143 = vmatprep.subr.bf16.mxu0 0
  %144 = vmatpush2.bf16.msra.mxu0 0
  %145 = vmatprep.subr.bf16.mxu0 0
  %146 = vmatpush2.bf16.msra.mxu0 0
  %147 = vmatprep.subr.bf16.mxu0 0
  %148 = vmatpush2.bf16.msra.mxu0 0
  %149 = vmatprep.subr.bf16.mxu0 0
  %150 = vmatpush2.bf16.msra.mxu0 0
  %151 = vmatprep.subr.bf16.mxu0 0
  %152 = vmatpush2.bf16.msra.mxu0 0
  %153 = vmatprep.subr.bf16.mxu0 0
  %154 = vmatpush2.bf16.msra.mxu0 0
  %155 = vmatprep.mubr.bf16.mxu0 0
  %156 = vmatmul.mubr.bf16.gmra.mxu0 %v121
  %v157 = vpop.f32.mrf.mxu0
  %v158 = vadd.f32 0.0, %v157
  %v159 = vpop.f32.mrf.mxu0
  %v160 = vadd.f32 0.0, %v159
  %v161 = vpop.f32.mrf.mxu0
  %v162 = vadd.f32 0.0, %v161
  %v163 = vpop.f32.mrf.mxu0
  %v164 = vadd.f32 0.0, %v163
  %165 = vdwg.mxu0
  %166 = vmatprep.subr.bf16.mxu0 0
  %167 = vmatpush1.bf16.msra.mxu0 0
  %168 = vmatprep.subr.bf16.mxu0 0
  %169 = vmatpush1.bf16.msra.mxu0 0
  %170 = vmatprep.subr.bf16.mxu0 0
  %171 = vmatpush1.bf16.msra.mxu0 0
  %172 = vmatprep.subr.bf16.mxu0 0
  %173 = vmatpush1.bf16.msra.mxu0 0
  %174 = vmatprep.subr.bf16.mxu0 0
  %175 = vmatpush1.bf16.msra.mxu0 0
  %176 = vmatprep.subr.bf16.mxu0 0
  %177 = vmatpush1.bf16.msra.mxu0 0
  %178 = vmatprep.subr.bf16.mxu0 0
  %179 = vmatpush1.bf16.msra.mxu0 0
  %180 = vmatprep.subr.bf16.mxu0 %v110
  %181 = vmatpush1.bf16.msra.mxu0 %v109
  %182 = vmatprep.subr.bf16.mxu0 0
  %183 = vmatpush2.bf16.msra.mxu0 0
  %184 = vmatprep.subr.bf16.mxu0 0
  %185 = vmatpush2.bf16.msra.mxu0 0
  %186 = vmatprep.subr.bf16.mxu0 0
  %187 = vmatpush2.bf16.msra.mxu0 0
  %188 = vmatprep.subr.bf16.mxu0 0
  %189 = vmatpush2.bf16.msra.mxu0 0
  %190 = vmatprep.subr.bf16.mxu0 0
  %191 = vmatpush2.bf16.msra.mxu0 0
  %192 = vmatprep.subr.bf16.mxu0 0
  %193 = vmatpush2.bf16.msra.mxu0 0
  %194 = vmatprep.subr.bf16.mxu0 0
  %195 = vmatpush2.bf16.msra.mxu0 0
  %196 = vmatprep.subr.bf16.mxu0 0
  %197 = vmatpush2.bf16.msra.mxu0 0
  %198 = vmatprep.mubr.bf16.mxu0 0
  %199 = vmatmul.mubr.bf16.gmra.mxu0 %v121
  %v200 = vpop.f32.mrf.mxu0
  %v201 = vadd.f32 0.0, %v200
  %v202 = vpop.f32.mrf.mxu0
  %v203 = vadd.f32 0.0, %v202
  %v204 = vpop.f32.mrf.mxu0
  %v205 = vadd.f32 0.0, %v204
  %v206 = vpop.f32.mrf.mxu0
  %v207 = vadd.f32 0.0, %v206
  %208 = vdwg.mxu0
  %209 = vmatprep.subr.bf16.mxu0 0
  %210 = vmatpush1.bf16.msra.mxu0 0
  %211 = vmatprep.subr.bf16.mxu0 0
  %212 = vmatpush1.bf16.msra.mxu0 0
  %213 = vmatprep.subr.bf16.mxu0 0
  %214 = vmatpush1.bf16.msra.mxu0 0
  %215 = vmatprep.subr.bf16.mxu0 0
  %216 = vmatpush1.bf16.msra.mxu0 0
  %217 = vmatprep.subr.bf16.mxu0 0
  %218 = vmatpush1.bf16.msra.mxu0 0
  %219 = vmatprep.subr.bf16.mxu0 0
  %220 = vmatpush1.bf16.msra.mxu0 0
  %221 = vmatprep.subr.bf16.mxu0 0
  %222 = vmatpush1.bf16.msra.mxu0 0
  %223 = vmatprep.subr.bf16.mxu0 %v112
  %224 = vmatpush1.bf16.msra.mxu0 %v111
  %225 = vmatprep.subr.bf16.mxu0 0
  %226 = vmatpush2.bf16.msra.mxu0 0
  %227 = vmatprep.subr.bf16.mxu0 0
  %228 = vmatpush2.bf16.msra.mxu0 0
  %229 = vmatprep.subr.bf16.mxu0 0
  %230 = vmatpush2.bf16.msra.mxu0 0
  %231 = vmatprep.subr.bf16.mxu0 0
  %232 = vmatpush2.bf16.msra.mxu0 0
  %233 = vmatprep.subr.bf16.mxu0 0
  %234 = vmatpush2.bf16.msra.mxu0 0
  %235 = vmatprep.subr.bf16.mxu0 0
  %236 = vmatpush2.bf16.msra.mxu0 0
  %237 = vmatprep.subr.bf16.mxu0 0
  %238 = vmatpush2.bf16.msra.mxu0 0
  %239 = vmatprep.subr.bf16.mxu0 0
  %240 = vmatpush2.bf16.msra.mxu0 0
  %241 = vmatprep.mubr.bf16.mxu0 0
  %242 = vmatmul.mubr.bf16.gmra.mxu0 %v121
  %v243 = vpop.f32.mrf.mxu0
  %v244 = vadd.f32 0.0, %v243
  %v245 = vpop.f32.mrf.mxu0
  %v246 = vadd.f32 0.0, %v245
  %v247 = vpop.f32.mrf.mxu0
  %v248 = vadd.f32 0.0, %v247
  %v249 = vpop.f32.mrf.mxu0
  %v250 = vadd.f32 0.0, %v249
  %251 = vdwg.mxu0
  %252 = vst [vmem:[#allocation4] sm:$0xff] %v158
  %253 = vst [vmem:[#allocation4 + $0x8] sm:$0xff] %v160
  %254 = vst [vmem:[#allocation4 + $0x10] sm:$0xff] %v201
  %255 = vst [vmem:[#allocation4 + $0x18] sm:$0xff] %v203
  %256 = vst [vmem:[#allocation4 + $0x20] sm:$0xff] %v244
  %257 = vst [vmem:[#allocation4 + $0x28] sm:$0xff] %v246
  %258 = vst [vmem:[#allocation4 + $0x30] sm:$0xff] %v162
  %259 = vst [vmem:[#allocation4 + $0x38] sm:$0xff] %v164
  %260 = vst [vmem:[#allocation4 + $0x40] sm:$0xff] %v205
  %261 = vst [vmem:[#allocation4 + $0x48] sm:$0xff] %v207
  %262 = vst [vmem:[#allocation4 + $0x50] sm:$0xff] %v248
  %263 = vst [vmem:[#allocation4 + $0x58] sm:$0xff] %v250
  %s264 = scalar_lea.vmem %s0, 8
  %v265 = vld [vmem:[%s264] sm:$0xf]
  %v266 = vld [vmem:[%s264 + $0x4] sm:$0xf]
  %v269 = vunpack.c.l.b16 %v265
  %v270 = vunpack.c.l.b16 %v266
  %v271 = vpack.c.b16 %v270, %v269
  %v274 = vunpack.c.l.b16 %v77
  %v275 = vunpack.c.l.b16 %v81
  %v276 = vpack.c.b16 %v275, %v274
  %277 = vrot.lane.b32.xlu0 %v107, 127
  %v278 = vpop.permute.xlu0 %277
  %279 = vrot.lane.b32.xlu0 %v108, 127
  %v280 = vpop.permute.xlu0 %279
  %281 = vrot.lane.b32.xlu0 %v109, 127
  %v282 = vpop.permute.xlu0 %281
  %283 = vrot.lane.b32.xlu0 %v110, 127
  %v284 = vpop.permute.xlu0 %283
  %285 = vrot.lane.b32.xlu0 %v111, 127
  %v286 = vpop.permute.xlu0 %285
  %287 = vrot.lane.b32.xlu0 %v112, 127
  %v288 = vpop.permute.xlu0 %287
  %289 = vrot.lane.b32.xlu0 %v276, 127
  %v290 = vpop.permute.xlu0 %289
  %vm291 = vcmask 1039360
  %v292 = vsel %vm291, %v278, %v280
  %v293 = vsel %vm291, %v280, %v282
  %v294 = vsel %vm291, %v282, %v284
  %v295 = vsel %vm291, %v284, %v286
  %v296 = vsel %vm291, %v286, %v288
  %v297 = vsel %vm291, %v288, %v290
  %v305 = vsel %vm119, %v271, 0
  %307 = vmatprep.subr.bf16.mxu0 0
  %308 = vmatpush1.bf16.msra.mxu0 0
  %309 = vmatprep.subr.bf16.mxu0 0
  %310 = vmatpush1.bf16.msra.mxu0 0
  %311 = vmatprep.subr.bf16.mxu0 0
  %312 = vmatpush1.bf16.msra.mxu0 0
  %313 = vmatprep.subr.bf16.mxu0 0
  %314 = vmatpush1.bf16.msra.mxu0 0
  %315 = vmatprep.subr.bf16.mxu0 0
  %316 = vmatpush1.bf16.msra.mxu0 0
  %317 = vmatprep.subr.bf16.mxu0 0
  %318 = vmatpush1.bf16.msra.mxu0 0
  %319 = vmatprep.subr.bf16.mxu0 0
  %320 = vmatpush1.bf16.msra.mxu0 0
  %321 = vmatprep.subr.bf16.mxu0 %v293
  %322 = vmatpush1.bf16.msra.mxu0 %v292
  %323 = vmatprep.subr.bf16.mxu0 0
  %324 = vmatpush2.bf16.msra.mxu0 0
  %325 = vmatprep.subr.bf16.mxu0 0
  %326 = vmatpush2.bf16.msra.mxu0 0
  %327 = vmatprep.subr.bf16.mxu0 0
  %328 = vmatpush2.bf16.msra.mxu0 0
  %329 = vmatprep.subr.bf16.mxu0 0
  %330 = vmatpush2.bf16.msra.mxu0 0
  %331 = vmatprep.subr.bf16.mxu0 0
  %332 = vmatpush2.bf16.msra.mxu0 0
  %333 = vmatprep.subr.bf16.mxu0 0
  %334 = vmatpush2.bf16.msra.mxu0 0
  %335 = vmatprep.subr.bf16.mxu0 0
  %336 = vmatpush2.bf16.msra.mxu0 0
  %337 = vmatprep.subr.bf16.mxu0 0
  %338 = vmatpush2.bf16.msra.mxu0 0
  %339 = vmatprep.mubr.bf16.mxu0 0
  %340 = vmatmul.mubr.bf16.gmra.mxu0 %v305
  %v341 = vpop.f32.mrf.mxu0
  %v342 = vadd.f32 0.0, %v341
  %v343 = vpop.f32.mrf.mxu0
  %v344 = vadd.f32 0.0, %v343
  %v345 = vpop.f32.mrf.mxu0
  %v346 = vadd.f32 0.0, %v345
  %v347 = vpop.f32.mrf.mxu0
  %v348 = vadd.f32 0.0, %v347
  %349 = vdwg.mxu0
  %350 = vmatprep.subr.bf16.mxu0 0
  %351 = vmatpush1.bf16.msra.mxu0 0
  %352 = vmatprep.subr.bf16.mxu0 0
  %353 = vmatpush1.bf16.msra.mxu0 0
  %354 = vmatprep.subr.bf16.mxu0 0
  %355 = vmatpush1.bf16.msra.mxu0 0
  %356 = vmatprep.subr.bf16.mxu0 0
  %357 = vmatpush1.bf16.msra.mxu0 0
  %358 = vmatprep.subr.bf16.mxu0 0
  %359 = vmatpush1.bf16.msra.mxu0 0
  %360 = vmatprep.subr.bf16.mxu0 0
  %361 = vmatpush1.bf16.msra.mxu0 0
  %362 = vmatprep.subr.bf16.mxu0 0
  %363 = vmatpush1.bf16.msra.mxu0 0
  %364 = vmatprep.subr.bf16.mxu0 %v295
  %365 = vmatpush1.bf16.msra.mxu0 %v294
  %366 = vmatprep.subr.bf16.mxu0 0
  %367 = vmatpush2.bf16.msra.mxu0 0
  %368 = vmatprep.subr.bf16.mxu0 0
  %369 = vmatpush2.bf16.msra.mxu0 0
  %370 = vmatprep.subr.bf16.mxu0 0
  %371 = vmatpush2.bf16.msra.mxu0 0
  %372 = vmatprep.subr.bf16.mxu0 0
  %373 = vmatpush2.bf16.msra.mxu0 0
  %374 = vmatprep.subr.bf16.mxu0 0
  %375 = vmatpush2.bf16.msra.mxu0 0
  %376 = vmatprep.subr.bf16.mxu0 0
  %377 = vmatpush2.bf16.msra.mxu0 0
  %378 = vmatprep.subr.bf16.mxu0 0
  %379 = vmatpush2.bf16.msra.mxu0 0
  %380 = vmatprep.subr.bf16.mxu0 0
  %381 = vmatpush2.bf16.msra.mxu0 0
  %382 = vmatprep.mubr.bf16.mxu0 0
  %383 = vmatmul.mubr.bf16.gmra.mxu0 %v305
  %v384 = vpop.f32.mrf.mxu0
  %v385 = vadd.f32 0.0, %v384
  %v386 = vpop.f32.mrf.mxu0
  %v387 = vadd.f32 0.0, %v386
  %v388 = vpop.f32.mrf.mxu0
  %v389 = vadd.f32 0.0, %v388
  %v390 = vpop.f32.mrf.mxu0
  %v391 = vadd.f32 0.0, %v390
  %392 = vdwg.mxu0
  %393 = vmatprep.subr.bf16.mxu0 0
  %394 = vmatpush1.bf16.msra.mxu0 0
  %395 = vmatprep.subr.bf16.mxu0 0
  %396 = vmatpush1.bf16.msra.mxu0 0
  %397 = vmatprep.subr.bf16.mxu0 0
  %398 = vmatpush1.bf16.msra.mxu0 0
  %399 = vmatprep.subr.bf16.mxu0 0
  %400 = vmatpush1.bf16.msra.mxu0 0
  %401 = vmatprep.subr.bf16.mxu0 0
  %402 = vmatpush1.bf16.msra.mxu0 0
  %403 = vmatprep.subr.bf16.mxu0 0
  %404 = vmatpush1.bf16.msra.mxu0 0
  %405 = vmatprep.subr.bf16.mxu0 0
  %406 = vmatpush1.bf16.msra.mxu0 0
  %407 = vmatprep.subr.bf16.mxu0 %v297
  %408 = vmatpush1.bf16.msra.mxu0 %v296
  %409 = vmatprep.subr.bf16.mxu0 0
  %410 = vmatpush2.bf16.msra.mxu0 0
  %411 = vmatprep.subr.bf16.mxu0 0
  %412 = vmatpush2.bf16.msra.mxu0 0
  %413 = vmatprep.subr.bf16.mxu0 0
  %414 = vmatpush2.bf16.msra.mxu0 0
  %415 = vmatprep.subr.bf16.mxu0 0
  %416 = vmatpush2.bf16.msra.mxu0 0
  %417 = vmatprep.subr.bf16.mxu0 0
  %418 = vmatpush2.bf16.msra.mxu0 0
  %419 = vmatprep.subr.bf16.mxu0 0
  %420 = vmatpush2.bf16.msra.mxu0 0
  %421 = vmatprep.subr.bf16.mxu0 0
  %422 = vmatpush2.bf16.msra.mxu0 0
  %423 = vmatprep.subr.bf16.mxu0 0
  %424 = vmatpush2.bf16.msra.mxu0 0
  %425 = vmatprep.mubr.bf16.mxu0 0
  %426 = vmatmul.mubr.bf16.gmra.mxu0 %v305
  %v427 = vpop.f32.mrf.mxu0
  %v428 = vadd.f32 0.0, %v427
  %v429 = vpop.f32.mrf.mxu0
  %v430 = vadd.f32 0.0, %v429
  %v431 = vpop.f32.mrf.mxu0
  %v432 = vadd.f32 0.0, %v431
  %v433 = vpop.f32.mrf.mxu0
  %v434 = vadd.f32 0.0, %v433
  %435 = vdwg.mxu0
  %v436 = vld [vmem:[#allocation4] sm:$0xff]
  %v437 = vld [vmem:[#allocation4 + $0x8] sm:$0xff]
  %v438 = vld [vmem:[#allocation4 + $0x10] sm:$0xff]
  %v439 = vld [vmem:[#allocation4 + $0x18] sm:$0xff]
  %v440 = vld [vmem:[#allocation4 + $0x20] sm:$0xff]
  %v441 = vld [vmem:[#allocation4 + $0x28] sm:$0xff]
  %v442 = vld [vmem:[#allocation4 + $0x30] sm:$0xff]
  %v443 = vld [vmem:[#allocation4 + $0x38] sm:$0xff]
  %v444 = vld [vmem:[#allocation4 + $0x40] sm:$0xff]
  %v445 = vld [vmem:[#allocation4 + $0x48] sm:$0xff]
  %v446 = vld [vmem:[#allocation4 + $0x50] sm:$0xff]
  %v447 = vld [vmem:[#allocation4 + $0x58] sm:$0xff]
  %v448 = vadd.f32 %v436, %v342
  %v449 = vadd.f32 %v437, %v344
  %v450 = vadd.f32 %v438, %v385
  %v451 = vadd.f32 %v439, %v387
  %v452 = vadd.f32 %v440, %v428
  %v453 = vadd.f32 %v441, %v430
  %v454 = vadd.f32 %v442, %v346
  %v455 = vadd.f32 %v443, %v348
  %v456 = vadd.f32 %v444, %v389
  %v457 = vadd.f32 %v445, %v391
  %v458 = vadd.f32 %v446, %v432
  %v459 = vadd.f32 %v447, %v434
  %460 = vst [vmem:[#allocation4] sm:$0xff] %v448
  %461 = vst [vmem:[#allocation4 + $0x8] sm:$0xff] %v449
  %462 = vst [vmem:[#allocation4 + $0x10] sm:$0xff] %v450
  %463 = vst [vmem:[#allocation4 + $0x18] sm:$0xff] %v451
  %464 = vst [vmem:[#allocation4 + $0x20] sm:$0xff] %v452
  %465 = vst [vmem:[#allocation4 + $0x28] sm:$0xff] %v453
  %466 = vst [vmem:[#allocation4 + $0x30] sm:$0xff] %v454
  %467 = vst [vmem:[#allocation4 + $0x38] sm:$0xff] %v455
  %468 = vst [vmem:[#allocation4 + $0x40] sm:$0xff] %v456
  %469 = vst [vmem:[#allocation4 + $0x48] sm:$0xff] %v457
  %470 = vst [vmem:[#allocation4 + $0x50] sm:$0xff] %v458
  %471 = vst [vmem:[#allocation4 + $0x58] sm:$0xff] %v459
  %s472 = scalar_lea.vmem %s0, 16
  %v473 = vld [vmem:[%s472] sm:$0xf]
  %v474 = vld [vmem:[%s472 + $0x4] sm:$0xf]
  %v477 = vunpack.c.l.b16 %v473
  %v478 = vunpack.c.l.b16 %v474
  %v479 = vpack.c.b16 %v478, %v477
  %480 = vrot.lane.b32.xlu0 %v107, 126
  %v481 = vpop.permute.xlu0 %480
  %482 = vrot.lane.b32.xlu0 %v108, 126
  %v483 = vpop.permute.xlu0 %482
  %484 = vrot.lane.b32.xlu0 %v109, 126
  %v485 = vpop.permute.xlu0 %484
  %486 = vrot.lane.b32.xlu0 %v110, 126
  %v487 = vpop.permute.xlu0 %486
  %488 = vrot.lane.b32.xlu0 %v111, 126
  %v489 = vpop.permute.xlu0 %488
  %490 = vrot.lane.b32.xlu0 %v112, 126
  %v491 = vpop.permute.xlu0 %490
  %492 = vrot.lane.b32.xlu0 %v276, 126
  %v493 = vpop.permute.xlu0 %492
  %vm494 = vcmask 1031168
  %v495 = vsel %vm494, %v481, %v483
  %v496 = vsel %vm494, %v483, %v485
  %v497 = vsel %vm494, %v485, %v487
  %v498 = vsel %vm494, %v487, %v489
  %v499 = vsel %vm494, %v489, %v491
  %v500 = vsel %vm494, %v491, %v493
  %v508 = vsel %vm119, %v479, 0
  %510 = vmatprep.subr.bf16.mxu0 0
  %511 = vmatpush1.bf16.msra.mxu0 0
  %512 = vmatprep.subr.bf16.mxu0 0
  %513 = vmatpush1.bf16.msra.mxu0 0
  %514 = vmatprep.subr.bf16.mxu0 0
  %515 = vmatpush1.bf16.msra.mxu0 0
  %516 = vmatprep.subr.bf16.mxu0 0
  %517 = vmatpush1.bf16.msra.mxu0 0
  %518 = vmatprep.subr.bf16.mxu0 0
  %519 = vmatpush1.bf16.msra.mxu0 0
  %520 = vmatprep.subr.bf16.mxu0 0
  %521 = vmatpush1.bf16.msra.mxu0 0
  %522 = vmatprep.subr.bf16.mxu0 0
  %523 = vmatpush1.bf16.msra.mxu0 0
  %524 = vmatprep.subr.bf16.mxu0 %v496
  %525 = vmatpush1.bf16.msra.mxu0 %v495
  %526 = vmatprep.subr.bf16.mxu0 0
  %527 = vmatpush2.bf16.msra.mxu0 0
  %528 = vmatprep.subr.bf16.mxu0 0
  %529 = vmatpush2.bf16.msra.mxu0 0
  %530 = vmatprep.subr.bf16.mxu0 0
  %531 = vmatpush2.bf16.msra.mxu0 0
  %532 = vmatprep.subr.bf16.mxu0 0
  %533 = vmatpush2.bf16.msra.mxu0 0
  %534 = vmatprep.subr.bf16.mxu0 0
  %535 = vmatpush2.bf16.msra.mxu0 0
  %536 = vmatprep.subr.bf16.mxu0 0
  %537 = vmatpush2.bf16.msra.mxu0 0
  %538 = vmatprep.subr.bf16.mxu0 0
  %539 = vmatpush2.bf16.msra.mxu0 0
  %540 = vmatprep.subr.bf16.mxu0 0
  %541 = vmatpush2.bf16.msra.mxu0 0
  %542 = vmatprep.mubr.bf16.mxu0 0
  %543 = vmatmul.mubr.bf16.gmra.mxu0 %v508
  %v544 = vpop.f32.mrf.mxu0
  %v545 = vadd.f32 0.0, %v544
  %v546 = vpop.f32.mrf.mxu0
  %v547 = vadd.f32 0.0, %v546
  %v548 = vpop.f32.mrf.mxu0
  %v549 = vadd.f32 0.0, %v548
  %v550 = vpop.f32.mrf.mxu0
  %v551 = vadd.f32 0.0, %v550
  %552 = vdwg.mxu0
  %553 = vmatprep.subr.bf16.mxu0 0
  %554 = vmatpush1.bf16.msra.mxu0 0
  %555 = vmatprep.subr.bf16.mxu0 0
  %556 = vmatpush1.bf16.msra.mxu0 0
  %557 = vmatprep.subr.bf16.mxu0 0
  %558 = vmatpush1.bf16.msra.mxu0 0
  %559 = vmatprep.subr.bf16.mxu0 0
  %560 = vmatpush1.bf16.msra.mxu0 0
  %561 = vmatprep.subr.bf16.mxu0 0
  %562 = vmatpush1.bf16.msra.mxu0 0
  %563 = vmatprep.subr.bf16.mxu0 0
  %564 = vmatpush1.bf16.msra.mxu0 0
  %565 = vmatprep.subr.bf16.mxu0 0
  %566 = vmatpush1.bf16.msra.mxu0 0
  %567 = vmatprep.subr.bf16.mxu0 %v498
  %568 = vmatpush1.bf16.msra.mxu0 %v497
  %569 = vmatprep.subr.bf16.mxu0 0
  %570 = vmatpush2.bf16.msra.mxu0 0
  %571 = vmatprep.subr.bf16.mxu0 0
  %572 = vmatpush2.bf16.msra.mxu0 0
  %573 = vmatprep.subr.bf16.mxu0 0
  %574 = vmatpush2.bf16.msra.mxu0 0
  %575 = vmatprep.subr.bf16.mxu0 0
  %576 = vmatpush2.bf16.msra.mxu0 0
  %577 = vmatprep.subr.bf16.mxu0 0
  %578 = vmatpush2.bf16.msra.mxu0 0
  %579 = vmatprep.subr.bf16.mxu0 0
  %580 = vmatpush2.bf16.msra.mxu0 0
  %581 = vmatprep.subr.bf16.mxu0 0
  %582 = vmatpush2.bf16.msra.mxu0 0
  %583 = vmatprep.subr.bf16.mxu0 0
  %584 = vmatpush2.bf16.msra.mxu0 0
  %585 = vmatprep.mubr.bf16.mxu0 0
  %586 = vmatmul.mubr.bf16.gmra.mxu0 %v508
  %v587 = vpop.f32.mrf.mxu0
  %v588 = vadd.f32 0.0, %v587
  %v589 = vpop.f32.mrf.mxu0
  %v590 = vadd.f32 0.0, %v589
  %v591 = vpop.f32.mrf.mxu0
  %v592 = vadd.f32 0.0, %v591
  %v593 = vpop.f32.mrf.mxu0
  %v594 = vadd.f32 0.0, %v593
  %595 = vdwg.mxu0
  %596 = vmatprep.subr.bf16.mxu0 0
  %597 = vmatpush1.bf16.msra.mxu0 0
  %598 = vmatprep.subr.bf16.mxu0 0
  %599 = vmatpush1.bf16.msra.mxu0 0
  %600 = vmatprep.subr.bf16.mxu0 0
  %601 = vmatpush1.bf16.msra.mxu0 0
  %602 = vmatprep.subr.bf16.mxu0 0
  %603 = vmatpush1.bf16.msra.mxu0 0
  %604 = vmatprep.subr.bf16.mxu0 0
  %605 = vmatpush1.bf16.msra.mxu0 0
  %606 = vmatprep.subr.bf16.mxu0 0
  %607 = vmatpush1.bf16.msra.mxu0 0
  %608 = vmatprep.subr.bf16.mxu0 0
  %609 = vmatpush1.bf16.msra.mxu0 0
  %610 = vmatprep.subr.bf16.mxu0 %v500
  %611 = vmatpush1.bf16.msra.mxu0 %v499
  %612 = vmatprep.subr.bf16.mxu0 0
  %613 = vmatpush2.bf16.msra.mxu0 0
  %614 = vmatprep.subr.bf16.mxu0 0
  %615 = vmatpush2.bf16.msra.mxu0 0
  %616 = vmatprep.subr.bf16.mxu0 0
  %617 = vmatpush2.bf16.msra.mxu0 0
  %618 = vmatprep.subr.bf16.mxu0 0
  %619 = vmatpush2.bf16.msra.mxu0 0
  %620 = vmatprep.subr.bf16.mxu0 0
  %621 = vmatpush2.bf16.msra.mxu0 0
  %622 = vmatprep.subr.bf16.mxu0 0
  %623 = vmatpush2.bf16.msra.mxu0 0
  %624 = vmatprep.subr.bf16.mxu0 0
  %625 = vmatpush2.bf16.msra.mxu0 0
  %626 = vmatprep.subr.bf16.mxu0 0
  %627 = vmatpush2.bf16.msra.mxu0 0
  %628 = vmatprep.mubr.bf16.mxu0 0
  %629 = vmatmul.mubr.bf16.gmra.mxu0 %v508
  %v630 = vpop.f32.mrf.mxu0
  %v631 = vadd.f32 0.0, %v630
  %v632 = vpop.f32.mrf.mxu0
  %v633 = vadd.f32 0.0, %v632
  %v634 = vpop.f32.mrf.mxu0
  %v635 = vadd.f32 0.0, %v634
  %v636 = vpop.f32.mrf.mxu0
  %v637 = vadd.f32 0.0, %v636
  %638 = vdwg.mxu0
  %v639 = vld [vmem:[#allocation4] sm:$0xff]
  %v640 = vld [vmem:[#allocation4 + $0x8] sm:$0xff]
  %v641 = vld [vmem:[#allocation4 + $0x10] sm:$0xff]
  %v642 = vld [vmem:[#allocation4 + $0x18] sm:$0xff]
  %v643 = vld [vmem:[#allocation4 + $0x20] sm:$0xff]
  %v644 = vld [vmem:[#allocation4 + $0x28] sm:$0xff]
  %v645 = vld [vmem:[#allocation4 + $0x30] sm:$0xff]
  %v646 = vld [vmem:[#allocation4 + $0x38] sm:$0xff]
  %v647 = vld [vmem:[#allocation4 + $0x40] sm:$0xff]
  %v648 = vld [vmem:[#allocation4 + $0x48] sm:$0xff]
  %v649 = vld [vmem:[#allocation4 + $0x50] sm:$0xff]
  %v650 = vld [vmem:[#allocation4 + $0x58] sm:$0xff]
  %v651 = vadd.f32 %v639, %v545
  %v652 = vadd.f32 %v640, %v547
  %v653 = vadd.f32 %v641, %v588
  %v654 = vadd.f32 %v642, %v590
  %v655 = vadd.f32 %v643, %v631
  %v656 = vadd.f32 %v644, %v633
  %v657 = vadd.f32 %v645, %v549
  %v658 = vadd.f32 %v646, %v551
  %v659 = vadd.f32 %v647, %v592
  %v660 = vadd.f32 %v648, %v594
  %v661 = vadd.f32 %v649, %v635
  %v662 = vadd.f32 %v650, %v637
  %663 = vst [vmem:[#allocation4] sm:$0xff] %v651
  %664 = vst [vmem:[#allocation4 + $0x8] sm:$0xff] %v652
  %665 = vst [vmem:[#allocation4 + $0x10] sm:$0xff] %v653
  %666 = vst [vmem:[#allocation4 + $0x18] sm:$0xff] %v654
  %667 = vst [vmem:[#allocation4 + $0x20] sm:$0xff] %v655
  %668 = vst [vmem:[#allocation4 + $0x28] sm:$0xff] %v656
  %669 = vst [vmem:[#allocation4 + $0x30] sm:$0xff] %v657
  %670 = vst [vmem:[#allocation4 + $0x38] sm:$0xff] %v658
  %671 = vst [vmem:[#allocation4 + $0x40] sm:$0xff] %v659
  %672 = vst [vmem:[#allocation4 + $0x48] sm:$0xff] %v660
  %673 = vst [vmem:[#allocation4 + $0x50] sm:$0xff] %v661
  %674 = vst [vmem:[#allocation4 + $0x58] sm:$0xff] %v662
  %s675 = scalar_lea.vmem %s0, 24
  %v676 = vld [vmem:[%s675] sm:$0xf]
  %v677 = vld [vmem:[%s675 + $0x4] sm:$0xf]
  %v680 = vunpack.c.l.b16 %v676
  %v681 = vunpack.c.l.b16 %v677
  %v682 = vpack.c.b16 %v681, %v680
  %683 = vrot.lane.b32.xlu0 %v107, 110
  %v684 = vpop.permute.xlu0 %683
  %685 = vrot.lane.b32.xlu0 %v108, 110
  %v686 = vpop.permute.xlu0 %685
  %687 = vrot.lane.b32.xlu0 %v109, 110
  %v688 = vpop.permute.xlu0 %687
  %689 = vrot.lane.b32.xlu0 %v110, 110
  %v690 = vpop.permute.xlu0 %689
  %691 = vrot.lane.b32.xlu0 %v111, 110
  %v692 = vpop.permute.xlu0 %691
  %693 = vrot.lane.b32.xlu0 %v112, 110
  %v694 = vpop.permute.xlu0 %693
  %695 = vrot.lane.b32.xlu0 %v276, 110
  %v696 = vpop.permute.xlu0 %695
  %vm697 = vcmask 900096
  %v698 = vsel %vm697, %v684, %v686
  %v699 = vsel %vm697, %v686, %v688
  %v700 = vsel %vm697, %v688, %v690
  %v701 = vsel %vm697, %v690, %v692
  %v702 = vsel %vm697, %v692, %v694
  %v703 = vsel %vm697, %v694, %v696
  %v711 = vsel %vm119, %v682, 0
  %713 = vmatprep.subr.bf16.mxu0 0
  %714 = vmatpush1.bf16.msra.mxu0 0
  %715 = vmatprep.subr.bf16.mxu0 0
  %716 = vmatpush1.bf16.msra.mxu0 0
  %717 = vmatprep.subr.bf16.mxu0 0
  %718 = vmatpush1.bf16.msra.mxu0 0
  %719 = vmatprep.subr.bf16.mxu0 0
  %720 = vmatpush1.bf16.msra.mxu0 0
  %721 = vmatprep.subr.bf16.mxu0 0
  %722 = vmatpush1.bf16.msra.mxu0 0
  %723 = vmatprep.subr.bf16.mxu0 0
  %724 = vmatpush1.bf16.msra.mxu0 0
  %725 = vmatprep.subr.bf16.mxu0 0
  %726 = vmatpush1.bf16.msra.mxu0 0
  %727 = vmatprep.subr.bf16.mxu0 %v699
  %728 = vmatpush1.bf16.msra.mxu0 %v698
  %729 = vmatprep.subr.bf16.mxu0 0
  %730 = vmatpush2.bf16.msra.mxu0 0
  %731 = vmatprep.subr.bf16.mxu0 0
  %732 = vmatpush2.bf16.msra.mxu0 0
  %733 = vmatprep.subr.bf16.mxu0 0
  %734 = vmatpush2.bf16.msra.mxu0 0
  %735 = vmatprep.subr.bf16.mxu0 0
  %736 = vmatpush2.bf16.msra.mxu0 0
  %737 = vmatprep.subr.bf16.mxu0 0
  %738 = vmatpush2.bf16.msra.mxu0 0
  %739 = vmatprep.subr.bf16.mxu0 0
  %740 = vmatpush2.bf16.msra.mxu0 0
  %741 = vmatprep.subr.bf16.mxu0 0
  %742 = vmatpush2.bf16.msra.mxu0 0
  %743 = vmatprep.subr.bf16.mxu0 0
  %744 = vmatpush2.bf16.msra.mxu0 0
  %745 = vmatprep.mubr.bf16.mxu0 0
  %746 = vmatmul.mubr.bf16.gmra.mxu0 %v711
  %v747 = vpop.f32.mrf.mxu0
  %v748 = vadd.f32 0.0, %v747
  %v749 = vpop.f32.mrf.mxu0
  %v750 = vadd.f32 0.0, %v749
  %v751 = vpop.f32.mrf.mxu0
  %v752 = vadd.f32 0.0, %v751
  %v753 = vpop.f32.mrf.mxu0
  %v754 = vadd.f32 0.0, %v753
  %755 = vdwg.mxu0
  %756 = vmatprep.subr.bf16.mxu0 0
  %757 = vmatpush1.bf16.msra.mxu0 0
  %758 = vmatprep.subr.bf16.mxu0 0
  %759 = vmatpush1.bf16.msra.mxu0 0
  %760 = vmatprep.subr.bf16.mxu0 0
  %761 = vmatpush1.bf16.msra.mxu0 0
  %762 = vmatprep.subr.bf16.mxu0 0
  %763 = vmatpush1.bf16.msra.mxu0 0
  %764 = vmatprep.subr.bf16.mxu0 0
  %765 = vmatpush1.bf16.msra.mxu0 0
  %766 = vmatprep.subr.bf16.mxu0 0
  %767 = vmatpush1.bf16.msra.mxu0 0
  %768 = vmatprep.subr.bf16.mxu0 0
  %769 = vmatpush1.bf16.msra.mxu0 0
  %770 = vmatprep.subr.bf16.mxu0 %v701
  %771 = vmatpush1.bf16.msra.mxu0 %v700
  %772 = vmatprep.subr.bf16.mxu0 0
  %773 = vmatpush2.bf16.msra.mxu0 0
  %774 = vmatprep.subr.bf16.mxu0 0
  %775 = vmatpush2.bf16.msra.mxu0 0
  %776 = vmatprep.subr.bf16.mxu0 0
  %777 = vmatpush2.bf16.msra.mxu0 0
  %778 = vmatprep.subr.bf16.mxu0 0
  %779 = vmatpush2.bf16.msra.mxu0 0
  %780 = vmatprep.subr.bf16.mxu0 0
  %781 = vmatpush2.bf16.msra.mxu0 0
  %782 = vmatprep.subr.bf16.mxu0 0
  %783 = vmatpush2.bf16.msra.mxu0 0
  %784 = vmatprep.subr.bf16.mxu0 0
  %785 = vmatpush2.bf16.msra.mxu0 0
  %786 = vmatprep.subr.bf16.mxu0 0
  %787 = vmatpush2.bf16.msra.mxu0 0
  %788 = vmatprep.mubr.bf16.mxu0 0
  %789 = vmatmul.mubr.bf16.gmra.mxu0 %v711
  %v790 = vpop.f32.mrf.mxu0
  %v791 = vadd.f32 0.0, %v790
  %v792 = vpop.f32.mrf.mxu0
  %v793 = vadd.f32 0.0, %v792
  %v794 = vpop.f32.mrf.mxu0
  %v795 = vadd.f32 0.0, %v794
  %v796 = vpop.f32.mrf.mxu0
  %v797 = vadd.f32 0.0, %v796
  %798 = vdwg.mxu0
  %799 = vmatprep.subr.bf16.mxu0 0
  %800 = vmatpush1.bf16.msra.mxu0 0
  %801 = vmatprep.subr.bf16.mxu0 0
  %802 = vmatpush1.bf16.msra.mxu0 0
  %803 = vmatprep.subr.bf16.mxu0 0
  %804 = vmatpush1.bf16.msra.mxu0 0
  %805 = vmatprep.subr.bf16.mxu0 0
  %806 = vmatpush1.bf16.msra.mxu0 0
  %807 = vmatprep.subr.bf16.mxu0 0
  %808 = vmatpush1.bf16.msra.mxu0 0
  %809 = vmatprep.subr.bf16.mxu0 0
  %810 = vmatpush1.bf16.msra.mxu0 0
  %811 = vmatprep.subr.bf16.mxu0 0
  %812 = vmatpush1.bf16.msra.mxu0 0
  %813 = vmatprep.subr.bf16.mxu0 %v703
  %814 = vmatpush1.bf16.msra.mxu0 %v702
  %815 = vmatprep.subr.bf16.mxu0 0
  %816 = vmatpush2.bf16.msra.mxu0 0
  %817 = vmatprep.subr.bf16.mxu0 0
  %818 = vmatpush2.bf16.msra.mxu0 0
  %819 = vmatprep.subr.bf16.mxu0 0
  %820 = vmatpush2.bf16.msra.mxu0 0
  %821 = vmatprep.subr.bf16.mxu0 0
  %822 = vmatpush2.bf16.msra.mxu0 0
  %823 = vmatprep.subr.bf16.mxu0 0
  %824 = vmatpush2.bf16.msra.mxu0 0
  %825 = vmatprep.subr.bf16.mxu0 0
  %826 = vmatpush2.bf16.msra.mxu0 0
  %827 = vmatprep.subr.bf16.mxu0 0
  %828 = vmatpush2.bf16.msra.mxu0 0
  %829 = vmatprep.subr.bf16.mxu0 0
  %830 = vmatpush2.bf16.msra.mxu0 0
  %831 = vmatprep.mubr.bf16.mxu0 0
  %832 = vmatmul.mubr.bf16.gmra.mxu0 %v711
  %v833 = vpop.f32.mrf.mxu0
  %v834 = vadd.f32 0.0, %v833
  %v835 = vpop.f32.mrf.mxu0
  %v836 = vadd.f32 0.0, %v835
  %v837 = vpop.f32.mrf.mxu0
  %v838 = vadd.f32 0.0, %v837
  %v839 = vpop.f32.mrf.mxu0
  %v840 = vadd.f32 0.0, %v839
  %841 = vdwg.mxu0
  %v842 = vld [vmem:[#allocation4] sm:$0xff]
  %v843 = vld [vmem:[#allocation4 + $0x8] sm:$0xff]
  %v844 = vld [vmem:[#allocation4 + $0x10] sm:$0xff]
  %v845 = vld [vmem:[#allocation4 + $0x18] sm:$0xff]
  %v846 = vld [vmem:[#allocation4 + $0x20] sm:$0xff]
  %v847 = vld [vmem:[#allocation4 + $0x28] sm:$0xff]
  %v848 = vld [vmem:[#allocation4 + $0x30] sm:$0xff]
  %v849 = vld [vmem:[#allocation4 + $0x38] sm:$0xff]
  %v850 = vld [vmem:[#allocation4 + $0x40] sm:$0xff]
  %v851 = vld [vmem:[#allocation4 + $0x48] sm:$0xff]
  %v852 = vld [vmem:[#allocation4 + $0x50] sm:$0xff]
  %v853 = vld [vmem:[#allocation4 + $0x58] sm:$0xff]
  %v854 = vadd.f32 %v842, %v748
  %v855 = vadd.f32 %v843, %v750
  %v856 = vadd.f32 %v844, %v791
  %v857 = vadd.f32 %v845, %v793
  %v858 = vadd.f32 %v846, %v834
  %v859 = vadd.f32 %v847, %v836
  %v860 = vadd.f32 %v848, %v752
  %v861 = vadd.f32 %v849, %v754
  %v862 = vadd.f32 %v850, %v795
  %v863 = vadd.f32 %v851, %v797
  %v864 = vadd.f32 %v852, %v838
  %v865 = vadd.f32 %v853, %v840
  %866 = vst [vmem:[#allocation4] sm:$0xff] %v854
  %867 = vst [vmem:[#allocation4 + $0x8] sm:$0xff] %v855
  %868 = vst [vmem:[#allocation4 + $0x10] sm:$0xff] %v856
  %869 = vst [vmem:[#allocation4 + $0x18] sm:$0xff] %v857
  %870 = vst [vmem:[#allocation4 + $0x20] sm:$0xff] %v858
  %871 = vst [vmem:[#allocation4 + $0x28] sm:$0xff] %v859
  %872 = vst [vmem:[#allocation4 + $0x30] sm:$0xff] %v860
  %873 = vst [vmem:[#allocation4 + $0x38] sm:$0xff] %v861
  %874 = vst [vmem:[#allocation4 + $0x40] sm:$0xff] %v862
  %875 = vst [vmem:[#allocation4 + $0x48] sm:$0xff] %v863
  %876 = vst [vmem:[#allocation4 + $0x50] sm:$0xff] %v864
  %877 = vst [vmem:[#allocation4 + $0x58] sm:$0xff] %v865
  %s878 = scalar_lea.vmem %s0, 32
  %v879 = vld [vmem:[%s878] sm:$0xf]
  %v880 = vld [vmem:[%s878 + $0x4] sm:$0xf]
  %v883 = vunpack.c.l.b16 %v879
  %v884 = vunpack.c.l.b16 %v880
  %v885 = vpack.c.b16 %v884, %v883
  %886 = vrot.lane.b32.xlu0 %v107, 109
  %v887 = vpop.permute.xlu0 %886
  %888 = vrot.lane.b32.xlu0 %v108, 109
  %v889 = vpop.permute.xlu0 %888
  %890 = vrot.lane.b32.xlu0 %v109, 109
  %v891 = vpop.permute.xlu0 %890
  %892 = vrot.lane.b32.xlu0 %v110, 109
  %v893 = vpop.permute.xlu0 %892
  %894 = vrot.lane.b32.xlu0 %v111, 109
  %v895 = vpop.permute.xlu0 %894
  %896 = vrot.lane.b32.xlu0 %v112, 109
  %v897 = vpop.permute.xlu0 %896
  %898 = vrot.lane.b32.xlu0 %v276, 109
  %v899 = vpop.permute.xlu0 %898
  %vm900 = vcmask 891904
  %v901 = vsel %vm900, %v887, %v889
  %v902 = vsel %vm900, %v889, %v891
  %v903 = vsel %vm900, %v891, %v893
  %v904 = vsel %vm900, %v893, %v895
  %v905 = vsel %vm900, %v895, %v897
  %v906 = vsel %vm900, %v897, %v899
  %v914 = vsel %vm119, %v885, 0
  %916 = vmatprep.subr.bf16.mxu0 0
  %917 = vmatpush1.bf16.msra.mxu0 0
  %918 = vmatprep.subr.bf16.mxu0 0
  %919 = vmatpush1.bf16.msra.mxu0 0
  %920 = vmatprep.subr.bf16.mxu0 0
  %921 = vmatpush1.bf16.msra.mxu0 0
  %922 = vmatprep.subr.bf16.mxu0 0
  %923 = vmatpush1.bf16.msra.mxu0 0
  %924 = vmatprep.subr.bf16.mxu0 0
  %925 = vmatpush1.bf16.msra.mxu0 0
  %926 = vmatprep.subr.bf16.mxu0 0
  %927 = vmatpush1.bf16.msra.mxu0 0
  %928 = vmatprep.subr.bf16.mxu0 0
  %929 = vmatpush1.bf16.msra.mxu0 0
  %930 = vmatprep.subr.bf16.mxu0 %v902
  %931 = vmatpush1.bf16.msra.mxu0 %v901
  %932 = vmatprep.subr.bf16.mxu0 0
  %933 = vmatpush2.bf16.msra.mxu0 0
  %934 = vmatprep.subr.bf16.mxu0 0
  %935 = vmatpush2.bf16.msra.mxu0 0
  %936 = vmatprep.subr.bf16.mxu0 0
  %937 = vmatpush2.bf16.msra.mxu0 0
  %938 = vmatprep.subr.bf16.mxu0 0
  %939 = vmatpush2.bf16.msra.mxu0 0
  %940 = vmatprep.subr.bf16.mxu0 0
  %941 = vmatpush2.bf16.msra.mxu0 0
  %942 = vmatprep.subr.bf16.mxu0 0
  %943 = vmatpush2.bf16.msra.mxu0 0
  %944 = vmatprep.subr.bf16.mxu0 0
  %945 = vmatpush2.bf16.msra.mxu0 0
  %946 = vmatprep.subr.bf16.mxu0 0
  %947 = vmatpush2.bf16.msra.mxu0 0
  %948 = vmatprep.mubr.bf16.mxu0 0
  %949 = vmatmul.mubr.bf16.gmra.mxu0 %v914
  %v950 = vpop.f32.mrf.mxu0
  %v951 = vadd.f32 0.0, %v950
  %v952 = vpop.f32.mrf.mxu0
  %v953 = vadd.f32 0.0, %v952
  %v954 = vpop.f32.mrf.mxu0
  %v955 = vadd.f32 0.0, %v954
  %v956 = vpop.f32.mrf.mxu0
  %v957 = vadd.f32 0.0, %v956
  %958 = vdwg.mxu0
  %959 = vmatprep.subr.bf16.mxu0 0
  %960 = vmatpush1.bf16.msra.mxu0 0
  %961 = vmatprep.subr.bf16.mxu0 0
  %962 = vmatpush1.bf16.msra.mxu0 0
  %963 = vmatprep.subr.bf16.mxu0 0
  %964 = vmatpush1.bf16.msra.mxu0 0
  %965 = vmatprep.subr.bf16.mxu0 0
  %966 = vmatpush1.bf16.msra.mxu0 0
  %967 = vmatprep.subr.bf16.mxu0 0
  %968 = vmatpush1.bf16.msra.mxu0 0
  %969 = vmatprep.subr.bf16.mxu0 0
  %970 = vmatpush1.bf16.msra.mxu0 0
  %971 = vmatprep.subr.bf16.mxu0 0
  %972 = vmatpush1.bf16.msra.mxu0 0
  %973 = vmatprep.subr.bf16.mxu0 %v904
  %974 = vmatpush1.bf16.msra.mxu0 %v903
  %975 = vmatprep.subr.bf16.mxu0 0
  %976 = vmatpush2.bf16.msra.mxu0 0
  %977 = vmatprep.subr.bf16.mxu0 0
  %978 = vmatpush2.bf16.msra.mxu0 0
  %979 = vmatprep.subr.bf16.mxu0 0
  %980 = vmatpush2.bf16.msra.mxu0 0
  %981 = vmatprep.subr.bf16.mxu0 0
  %982 = vmatpush2.bf16.msra.mxu0 0
  %983 = vmatprep.subr.bf16.mxu0 0
  %984 = vmatpush2.bf16.msra.mxu0 0
  %985 = vmatprep.subr.bf16.mxu0 0
  %986 = vmatpush2.bf16.msra.mxu0 0
  %987 = vmatprep.subr.bf16.mxu0 0
  %988 = vmatpush2.bf16.msra.mxu0 0
  %989 = vmatprep.subr.bf16.mxu0 0
  %990 = vmatpush2.bf16.msra.mxu0 0
  %991 = vmatprep.mubr.bf16.mxu0 0
  %992 = vmatmul.mubr.bf16.gmra.mxu0 %v914
  %v993 = vpop.f32.mrf.mxu0
  %v994 = vadd.f32 0.0, %v993
  %v995 = vpop.f32.mrf.mxu0
  %v996 = vadd.f32 0.0, %v995
  %v997 = vpop.f32.mrf.mxu0
  %v998 = vadd.f32 0.0, %v997
  %v999 = vpop.f32.mrf.mxu0
  %v1000 = vadd.f32 0.0, %v999
  %1001 = vdwg.mxu0
  %1002 = vmatprep.subr.bf16.mxu0 0
  %1003 = vmatpush1.bf16.msra.mxu0 0
  %1004 = vmatprep.subr.bf16.mxu0 0
  %1005 = vmatpush1.bf16.msra.mxu0 0
  %1006 = vmatprep.subr.bf16.mxu0 0
  %1007 = vmatpush1.bf16.msra.mxu0 0
  %1008 = vmatprep.subr.bf16.mxu0 0
  %1009 = vmatpush1.bf16.msra.mxu0 0
  %1010 = vmatprep.subr.bf16.mxu0 0
  %1011 = vmatpush1.bf16.msra.mxu0 0
  %1012 = vmatprep.subr.bf16.mxu0 0
  %1013 = vmatpush1.bf16.msra.mxu0 0
  %1014 = vmatprep.subr.bf16.mxu0 0
  %1015 = vmatpush1.bf16.msra.mxu0 0
  %1016 = vmatprep.subr.bf16.mxu0 %v906
  %1017 = vmatpush1.bf16.msra.mxu0 %v905
  %1018 = vmatprep.subr.bf16.mxu0 0
  %1019 = vmatpush2.bf16.msra.mxu0 0
  %1020 = vmatprep.subr.bf16.mxu0 0
  %1021 = vmatpush2.bf16.msra.mxu0 0
  %1022 = vmatprep.subr.bf16.mxu0 0
  %1023 = vmatpush2.bf16.msra.mxu0 0
  %1024 = vmatprep.subr.bf16.mxu0 0
  %1025 = vmatpush2.bf16.msra.mxu0 0
  %1026 = vmatprep.subr.bf16.mxu0 0
  %1027 = vmatpush2.bf16.msra.mxu0 0
  %1028 = vmatprep.subr.bf16.mxu0 0
  %1029 = vmatpush2.bf16.msra.mxu0 0
  %1030 = vmatprep.subr.bf16.mxu0 0
  %1031 = vmatpush2.bf16.msra.mxu0 0
  %1032 = vmatprep.subr.bf16.mxu0 0
  %1033 = vmatpush2.bf16.msra.mxu0 0
  %1034 = vmatprep.mubr.bf16.mxu0 0
  %1035 = vmatmul.mubr.bf16.gmra.mxu0 %v914
  %v1036 = vpop.f32.mrf.mxu0
  %v1037 = vadd.f32 0.0, %v1036
  %v1038 = vpop.f32.mrf.mxu0
  %v1039 = vadd.f32 0.0, %v1038
  %v1040 = vpop.f32.mrf.mxu0
  %v1041 = vadd.f32 0.0, %v1040
  %v1042 = vpop.f32.mrf.mxu0
  %v1043 = vadd.f32 0.0, %v1042
  %1044 = vdwg.mxu0
  %v1045 = vld [vmem:[#allocation4] sm:$0xff]
  %v1046 = vld [vmem:[#allocation4 + $0x8] sm:$0xff]
  %v1047 = vld [vmem:[#allocation4 + $0x10] sm:$0xff]
  %v1048 = vld [vmem:[#allocation4 + $0x18] sm:$0xff]
  %v1049 = vld [vmem:[#allocation4 + $0x20] sm:$0xff]
  %v1050 = vld [vmem:[#allocation4 + $0x28] sm:$0xff]
  %v1051 = vld [vmem:[#allocation4 + $0x30] sm:$0xff]
  %v1052 = vld [vmem:[#allocation4 + $0x38] sm:$0xff]
  %v1053 = vld [vmem:[#allocation4 + $0x40] sm:$0xff]
  %v1054 = vld [vmem:[#allocation4 + $0x48] sm:$0xff]
  %v1055 = vld [vmem:[#allocation4 + $0x50] sm:$0xff]
  %v1056 = vld [vmem:[#allocation4 + $0x58] sm:$0xff]
  %v1057 = vadd.f32 %v1045, %v951
  %v1058 = vadd.f32 %v1046, %v953
  %v1059 = vadd.f32 %v1047, %v994
  %v1060 = vadd.f32 %v1048, %v996
  %v1061 = vadd.f32 %v1049, %v1037
  %v1062 = vadd.f32 %v1050, %v1039
  %v1063 = vadd.f32 %v1051, %v955
  %v1064 = vadd.f32 %v1052, %v957
  %v1065 = vadd.f32 %v1053, %v998
  %v1066 = vadd.f32 %v1054, %v1000
  %v1067 = vadd.f32 %v1055, %v1041
  %v1068 = vadd.f32 %v1056, %v1043
  %1069 = vst [vmem:[#allocation4] sm:$0xff] %v1057
  %1070 = vst [vmem:[#allocation4 + $0x8] sm:$0xff] %v1058
  %1071 = vst [vmem:[#allocation4 + $0x10] sm:$0xff] %v1059
  %1072 = vst [vmem:[#allocation4 + $0x18] sm:$0xff] %v1060
  %1073 = vst [vmem:[#allocation4 + $0x20] sm:$0xff] %v1061
  %1074 = vst [vmem:[#allocation4 + $0x28] sm:$0xff] %v1062
  %1075 = vst [vmem:[#allocation4 + $0x30] sm:$0xff] %v1063
  %1076 = vst [vmem:[#allocation4 + $0x38] sm:$0xff] %v1064
  %1077 = vst [vmem:[#allocation4 + $0x40] sm:$0xff] %v1065
  %1078 = vst [vmem:[#allocation4 + $0x48] sm:$0xff] %v1066
  %1079 = vst [vmem:[#allocation4 + $0x50] sm:$0xff] %v1067
  %1080 = vst [vmem:[#allocation4 + $0x58] sm:$0xff] %v1068
  %s1081 = scalar_lea.vmem %s0, 40
  %v1082 = vld [vmem:[%s1081] sm:$0xf]
  %v1083 = vld [vmem:[%s1081 + $0x4] sm:$0xf]
  %v1086 = vunpack.c.l.b16 %v1082
  %v1087 = vunpack.c.l.b16 %v1083
  %v1088 = vpack.c.b16 %v1087, %v1086
  %1089 = vrot.lane.b32.xlu0 %v107, 108
  %v1090 = vpop.permute.xlu0 %1089
  %1091 = vrot.lane.b32.xlu0 %v108, 108
  %v1092 = vpop.permute.xlu0 %1091
  %1093 = vrot.lane.b32.xlu0 %v109, 108
  %v1094 = vpop.permute.xlu0 %1093
  %1095 = vrot.lane.b32.xlu0 %v110, 108
  %v1096 = vpop.permute.xlu0 %1095
  %1097 = vrot.lane.b32.xlu0 %v111, 108
  %v1098 = vpop.permute.xlu0 %1097
  %1099 = vrot.lane.b32.xlu0 %v112, 108
  %v1100 = vpop.permute.xlu0 %1099
  %1101 = vrot.lane.b32.xlu0 %v276, 108
  %v1102 = vpop.permute.xlu0 %1101
  %vm1103 = vcmask 883712
  %v1104 = vsel %vm1103, %v1090, %v1092
  %v1105 = vsel %vm1103, %v1092, %v1094
  %v1106 = vsel %vm1103, %v1094, %v1096
  %v1107 = vsel %vm1103, %v1096, %v1098
  %v1108 = vsel %vm1103, %v1098, %v1100
  %v1109 = vsel %vm1103, %v1100, %v1102
  %v1117 = vsel %vm119, %v1088, 0
  %1119 = vmatprep.subr.bf16.mxu0 0
  %1120 = vmatpush1.bf16.msra.mxu0 0
  %1121 = vmatprep.subr.bf16.mxu0 0
  %1122 = vmatpush1.bf16.msra.mxu0 0
  %1123 = vmatprep.subr.bf16.mxu0 0
  %1124 = vmatpush1.bf16.msra.mxu0 0
  %1125 = vmatprep.subr.bf16.mxu0 0
  %1126 = vmatpush1.bf16.msra.mxu0 0
  %1127 = vmatprep.subr.bf16.mxu0 0
  %1128 = vmatpush1.bf16.msra.mxu0 0
  %1129 = vmatprep.subr.bf16.mxu0 0
  %1130 = vmatpush1.bf16.msra.mxu0 0
  %1131 = vmatprep.subr.bf16.mxu0 0
  %1132 = vmatpush1.bf16.msra.mxu0 0
  %1133 = vmatprep.subr.bf16.mxu0 %v1105
  %1134 = vmatpush1.bf16.msra.mxu0 %v1104
  %1135 = vmatprep.subr.bf16.mxu0 0
  %1136 = vmatpush2.bf16.msra.mxu0 0
  %1137 = vmatprep.subr.bf16.mxu0 0
  %1138 = vmatpush2.bf16.msra.mxu0 0
  %1139 = vmatprep.subr.bf16.mxu0 0
  %1140 = vmatpush2.bf16.msra.mxu0 0
  %1141 = vmatprep.subr.bf16.mxu0 0
  %1142 = vmatpush2.bf16.msra.mxu0 0
  %1143 = vmatprep.subr.bf16.mxu0 0
  %1144 = vmatpush2.bf16.msra.mxu0 0
  %1145 = vmatprep.subr.bf16.mxu0 0
  %1146 = vmatpush2.bf16.msra.mxu0 0
  %1147 = vmatprep.subr.bf16.mxu0 0
  %1148 = vmatpush2.bf16.msra.mxu0 0
  %1149 = vmatprep.subr.bf16.mxu0 0
  %1150 = vmatpush2.bf16.msra.mxu0 0
  %1151 = vmatprep.mubr.bf16.mxu0 0
  %1152 = vmatmul.mubr.bf16.gmra.mxu0 %v1117
  %v1153 = vpop.f32.mrf.mxu0
  %v1154 = vadd.f32 0.0, %v1153
  %v1155 = vpop.f32.mrf.mxu0
  %v1156 = vadd.f32 0.0, %v1155
  %v1157 = vpop.f32.mrf.mxu0
  %v1158 = vadd.f32 0.0, %v1157
  %v1159 = vpop.f32.mrf.mxu0
  %v1160 = vadd.f32 0.0, %v1159
  %1161 = vdwg.mxu0
  %1162 = vmatprep.subr.bf16.mxu0 0
  %1163 = vmatpush1.bf16.msra.mxu0 0
  %1164 = vmatprep.subr.bf16.mxu0 0
  %1165 = vmatpush1.bf16.msra.mxu0 0
  %1166 = vmatprep.subr.bf16.mxu0 0
  %1167 = vmatpush1.bf16.msra.mxu0 0
  %1168 = vmatprep.subr.bf16.mxu0 0
  %1169 = vmatpush1.bf16.msra.mxu0 0
  %1170 = vmatprep.subr.bf16.mxu0 0
  %1171 = vmatpush1.bf16.msra.mxu0 0
  %1172 = vmatprep.subr.bf16.mxu0 0
  %1173 = vmatpush1.bf16.msra.mxu0 0
  %1174 = vmatprep.subr.bf16.mxu0 0
  %1175 = vmatpush1.bf16.msra.mxu0 0
  %1176 = vmatprep.subr.bf16.mxu0 %v1107
  %1177 = vmatpush1.bf16.msra.mxu0 %v1106
  %1178 = vmatprep.subr.bf16.mxu0 0
  %1179 = vmatpush2.bf16.msra.mxu0 0
  %1180 = vmatprep.subr.bf16.mxu0 0
  %1181 = vmatpush2.bf16.msra.mxu0 0
  %1182 = vmatprep.subr.bf16.mxu0 0
  %1183 = vmatpush2.bf16.msra.mxu0 0
  %1184 = vmatprep.subr.bf16.mxu0 0
  %1185 = vmatpush2.bf16.msra.mxu0 0
  %1186 = vmatprep.subr.bf16.mxu0 0
  %1187 = vmatpush2.bf16.msra.mxu0 0
  %1188 = vmatprep.subr.bf16.mxu0 0
  %1189 = vmatpush2.bf16.msra.mxu0 0
  %1190 = vmatprep.subr.bf16.mxu0 0
  %1191 = vmatpush2.bf16.msra.mxu0 0
  %1192 = vmatprep.subr.bf16.mxu0 0
  %1193 = vmatpush2.bf16.msra.mxu0 0
  %1194 = vmatprep.mubr.bf16.mxu0 0
  %1195 = vmatmul.mubr.bf16.gmra.mxu0 %v1117
  %v1196 = vpop.f32.mrf.mxu0
  %v1197 = vadd.f32 0.0, %v1196
  %v1198 = vpop.f32.mrf.mxu0
  %v1199 = vadd.f32 0.0, %v1198
  %v1200 = vpop.f32.mrf.mxu0
  %v1201 = vadd.f32 0.0, %v1200
  %v1202 = vpop.f32.mrf.mxu0
  %v1203 = vadd.f32 0.0, %v1202
  %1204 = vdwg.mxu0
  %1205 = vmatprep.subr.bf16.mxu0 0
  %1206 = vmatpush1.bf16.msra.mxu0 0
  %1207 = vmatprep.subr.bf16.mxu0 0
  %1208 = vmatpush1.bf16.msra.mxu0 0
  %1209 = vmatprep.subr.bf16.mxu0 0
  %1210 = vmatpush1.bf16.msra.mxu0 0
  %1211 = vmatprep.subr.bf16.mxu0 0
  %1212 = vmatpush1.bf16.msra.mxu0 0
  %1213 = vmatprep.subr.bf16.mxu0 0
  %1214 = vmatpush1.bf16.msra.mxu0 0
  %1215 = vmatprep.subr.bf16.mxu0 0
  %1216 = vmatpush1.bf16.msra.mxu0 0
  %1217 = vmatprep.subr.bf16.mxu0 0
  %1218 = vmatpush1.bf16.msra.mxu0 0
  %1219 = vmatprep.subr.bf16.mxu0 %v1109
  %1220 = vmatpush1.bf16.msra.mxu0 %v1108
  %1221 = vmatprep.subr.bf16.mxu0 0
  %1222 = vmatpush2.bf16.msra.mxu0 0
  %1223 = vmatprep.subr.bf16.mxu0 0
  %1224 = vmatpush2.bf16.msra.mxu0 0
  %1225 = vmatprep.subr.bf16.mxu0 0
  %1226 = vmatpush2.bf16.msra.mxu0 0
  %1227 = vmatprep.subr.bf16.mxu0 0
  %1228 = vmatpush2.bf16.msra.mxu0 0
  %1229 = vmatprep.subr.bf16.mxu0 0
  %1230 = vmatpush2.bf16.msra.mxu0 0
  %1231 = vmatprep.subr.bf16.mxu0 0
  %1232 = vmatpush2.bf16.msra.mxu0 0
  %1233 = vmatprep.subr.bf16.mxu0 0
  %1234 = vmatpush2.bf16.msra.mxu0 0
  %1235 = vmatprep.subr.bf16.mxu0 0
  %1236 = vmatpush2.bf16.msra.mxu0 0
  %1237 = vmatprep.mubr.bf16.mxu0 0
  %1238 = vmatmul.mubr.bf16.gmra.mxu0 %v1117
  %v1239 = vpop.f32.mrf.mxu0
  %v1240 = vadd.f32 0.0, %v1239
  %v1241 = vpop.f32.mrf.mxu0
  %v1242 = vadd.f32 0.0, %v1241
  %v1243 = vpop.f32.mrf.mxu0
  %v1244 = vadd.f32 0.0, %v1243
  %v1245 = vpop.f32.mrf.mxu0
  %v1246 = vadd.f32 0.0, %v1245
  %1247 = vdwg.mxu0
  %v1248 = vld [vmem:[#allocation4] sm:$0xff]
  %v1249 = vld [vmem:[#allocation4 + $0x8] sm:$0xff]
  %v1250 = vld [vmem:[#allocation4 + $0x10] sm:$0xff]
  %v1251 = vld [vmem:[#allocation4 + $0x18] sm:$0xff]
  %v1252 = vld [vmem:[#allocation4 + $0x20] sm:$0xff]
  %v1253 = vld [vmem:[#allocation4 + $0x28] sm:$0xff]
  %v1254 = vld [vmem:[#allocation4 + $0x30] sm:$0xff]
  %v1255 = vld [vmem:[#allocation4 + $0x38] sm:$0xff]
  %v1256 = vld [vmem:[#allocation4 + $0x40] sm:$0xff]
  %v1257 = vld [vmem:[#allocation4 + $0x48] sm:$0xff]
  %v1258 = vld [vmem:[#allocation4 + $0x50] sm:$0xff]
  %v1259 = vld [vmem:[#allocation4 + $0x58] sm:$0xff]
  %v1260 = vadd.f32 %v1248, %v1154
  %v1261 = vadd.f32 %v1249, %v1156
  %v1262 = vadd.f32 %v1250, %v1197
  %v1263 = vadd.f32 %v1251, %v1199
  %v1264 = vadd.f32 %v1252, %v1240
  %v1265 = vadd.f32 %v1253, %v1242
  %v1266 = vadd.f32 %v1254, %v1158
  %v1267 = vadd.f32 %v1255, %v1160
  %v1268 = vadd.f32 %v1256, %v1201
  %v1269 = vadd.f32 %v1257, %v1203
  %v1270 = vadd.f32 %v1258, %v1244
  %v1271 = vadd.f32 %v1259, %v1246
  %1272 = vst [vmem:[#allocation4] sm:$0xff] %v1260
  %1273 = vst [vmem:[#allocation4 + $0x8] sm:$0xff] %v1261
  %1274 = vst [vmem:[#allocation4 + $0x10] sm:$0xff] %v1262
  %1275 = vst [vmem:[#allocation4 + $0x18] sm:$0xff] %v1263
  %1276 = vst [vmem:[#allocation4 + $0x20] sm:$0xff] %v1264
  %1277 = vst [vmem:[#allocation4 + $0x28] sm:$0xff] %v1265
  %1278 = vst [vmem:[#allocation4 + $0x30] sm:$0xff] %v1266
  %1279 = vst [vmem:[#allocation4 + $0x38] sm:$0xff] %v1267
  %1280 = vst [vmem:[#allocation4 + $0x40] sm:$0xff] %v1268
  %1281 = vst [vmem:[#allocation4 + $0x48] sm:$0xff] %v1269
  %1282 = vst [vmem:[#allocation4 + $0x50] sm:$0xff] %v1270
  %1283 = vst [vmem:[#allocation4 + $0x58] sm:$0xff] %v1271
  %s1284 = scalar_lea.vmem %s0, 48
  %v1285 = vld [vmem:[%s1284] sm:$0xf]
  %v1286 = vld [vmem:[%s1284 + $0x4] sm:$0xf]
  %v1289 = vunpack.c.l.b16 %v1285
  %v1290 = vunpack.c.l.b16 %v1286
  %v1291 = vpack.c.b16 %v1290, %v1289
  %1292 = vrot.lane.b32.xlu0 %v107, 92
  %v1293 = vpop.permute.xlu0 %1292
  %1294 = vrot.lane.b32.xlu0 %v108, 92
  %v1295 = vpop.permute.xlu0 %1294
  %1296 = vrot.lane.b32.xlu0 %v109, 92
  %v1297 = vpop.permute.xlu0 %1296
  %1298 = vrot.lane.b32.xlu0 %v110, 92
  %v1299 = vpop.permute.xlu0 %1298
  %1300 = vrot.lane.b32.xlu0 %v111, 92
  %v1301 = vpop.permute.xlu0 %1300
  %1302 = vrot.lane.b32.xlu0 %v112, 92
  %v1303 = vpop.permute.xlu0 %1302
  %1304 = vrot.lane.b32.xlu0 %v276, 92
  %v1305 = vpop.permute.xlu0 %1304
  %vm1306 = vcmask 752640
  %v1307 = vsel %vm1306, %v1293, %v1295
  %v1308 = vsel %vm1306, %v1295, %v1297
  %v1309 = vsel %vm1306, %v1297, %v1299
  %v1310 = vsel %vm1306, %v1299, %v1301
  %v1311 = vsel %vm1306, %v1301, %v1303
  %v1312 = vsel %vm1306, %v1303, %v1305
  %v1320 = vsel %vm119, %v1291, 0
  %1322 = vmatprep.subr.bf16.mxu0 0
  %1323 = vmatpush1.bf16.msra.mxu0 0
  %1324 = vmatprep.subr.bf16.mxu0 0
  %1325 = vmatpush1.bf16.msra.mxu0 0
  %1326 = vmatprep.subr.bf16.mxu0 0
  %1327 = vmatpush1.bf16.msra.mxu0 0
  %1328 = vmatprep.subr.bf16.mxu0 0
  %1329 = vmatpush1.bf16.msra.mxu0 0
  %1330 = vmatprep.subr.bf16.mxu0 0
  %1331 = vmatpush1.bf16.msra.mxu0 0
  %1332 = vmatprep.subr.bf16.mxu0 0
  %1333 = vmatpush1.bf16.msra.mxu0 0
  %1334 = vmatprep.subr.bf16.mxu0 0
  %1335 = vmatpush1.bf16.msra.mxu0 0
  %1336 = vmatprep.subr.bf16.mxu0 %v1308
  %1337 = vmatpush1.bf16.msra.mxu0 %v1307
  %1338 = vmatprep.subr.bf16.mxu0 0
  %1339 = vmatpush2.bf16.msra.mxu0 0
  %1340 = vmatprep.subr.bf16.mxu0 0
  %1341 = vmatpush2.bf16.msra.mxu0 0
  %1342 = vmatprep.subr.bf16.mxu0 0
  %1343 = vmatpush2.bf16.msra.mxu0 0
  %1344 = vmatprep.subr.bf16.mxu0 0
  %1345 = vmatpush2.bf16.msra.mxu0 0
  %1346 = vmatprep.subr.bf16.mxu0 0
  %1347 = vmatpush2.bf16.msra.mxu0 0
  %1348 = vmatprep.subr.bf16.mxu0 0
  %1349 = vmatpush2.bf16.msra.mxu0 0
  %1350 = vmatprep.subr.bf16.mxu0 0
  %1351 = vmatpush2.bf16.msra.mxu0 0
  %1352 = vmatprep.subr.bf16.mxu0 0
  %1353 = vmatpush2.bf16.msra.mxu0 0
  %1354 = vmatprep.mubr.bf16.mxu0 0
  %1355 = vmatmul.mubr.bf16.gmra.mxu0 %v1320
  %v1356 = vpop.f32.mrf.mxu0
  %v1357 = vadd.f32 0.0, %v1356
  %v1358 = vpop.f32.mrf.mxu0
  %v1359 = vadd.f32 0.0, %v1358
  %v1360 = vpop.f32.mrf.mxu0
  %v1361 = vadd.f32 0.0, %v1360
  %v1362 = vpop.f32.mrf.mxu0
  %v1363 = vadd.f32 0.0, %v1362
  %1364 = vdwg.mxu0
  %1365 = vmatprep.subr.bf16.mxu0 0
  %1366 = vmatpush1.bf16.msra.mxu0 0
  %1367 = vmatprep.subr.bf16.mxu0 0
  %1368 = vmatpush1.bf16.msra.mxu0 0
  %1369 = vmatprep.subr.bf16.mxu0 0
  %1370 = vmatpush1.bf16.msra.mxu0 0
  %1371 = vmatprep.subr.bf16.mxu0 0
  %1372 = vmatpush1.bf16.msra.mxu0 0
  %1373 = vmatprep.subr.bf16.mxu0 0
  %1374 = vmatpush1.bf16.msra.mxu0 0
  %1375 = vmatprep.subr.bf16.mxu0 0
  %1376 = vmatpush1.bf16.msra.mxu0 0
  %1377 = vmatprep.subr.bf16.mxu0 0
  %1378 = vmatpush1.bf16.msra.mxu0 0
  %1379 = vmatprep.subr.bf16.mxu0 %v1310
  %1380 = vmatpush1.bf16.msra.mxu0 %v1309
  %1381 = vmatprep.subr.bf16.mxu0 0
  %1382 = vmatpush2.bf16.msra.mxu0 0
  %1383 = vmatprep.subr.bf16.mxu0 0
  %1384 = vmatpush2.bf16.msra.mxu0 0
  %1385 = vmatprep.subr.bf16.mxu0 0
  %1386 = vmatpush2.bf16.msra.mxu0 0
  %1387 = vmatprep.subr.bf16.mxu0 0
  %1388 = vmatpush2.bf16.msra.mxu0 0
  %1389 = vmatprep.subr.bf16.mxu0 0
  %1390 = vmatpush2.bf16.msra.mxu0 0
  %1391 = vmatprep.subr.bf16.mxu0 0
  %1392 = vmatpush2.bf16.msra.mxu0 0
  %1393 = vmatprep.subr.bf16.mxu0 0
  %1394 = vmatpush2.bf16.msra.mxu0 0
  %1395 = vmatprep.subr.bf16.mxu0 0
  %1396 = vmatpush2.bf16.msra.mxu0 0
  %1397 = vmatprep.mubr.bf16.mxu0 0
  %1398 = vmatmul.mubr.bf16.gmra.mxu0 %v1320
  %v1399 = vpop.f32.mrf.mxu0
  %v1400 = vadd.f32 0.0, %v1399
  %v1401 = vpop.f32.mrf.mxu0
  %v1402 = vadd.f32 0.0, %v1401
  %v1403 = vpop.f32.mrf.mxu0
  %v1404 = vadd.f32 0.0, %v1403
  %v1405 = vpop.f32.mrf.mxu0
  %v1406 = vadd.f32 0.0, %v1405
  %1407 = vdwg.mxu0
  %1408 = vmatprep.subr.bf16.mxu0 0
  %1409 = vmatpush1.bf16.msra.mxu0 0
  %1410 = vmatprep.subr.bf16.mxu0 0
  %1411 = vmatpush1.bf16.msra.mxu0 0
  %1412 = vmatprep.subr.bf16.mxu0 0
  %1413 = vmatpush1.bf16.msra.mxu0 0
  %1414 = vmatprep.subr.bf16.mxu0 0
  %1415 = vmatpush1.bf16.msra.mxu0 0
  %1416 = vmatprep.subr.bf16.mxu0 0
  %1417 = vmatpush1.bf16.msra.mxu0 0
  %1418 = vmatprep.subr.bf16.mxu0 0
  %1419 = vmatpush1.bf16.msra.mxu0 0
  %1420 = vmatprep.subr.bf16.mxu0 0
  %1421 = vmatpush1.bf16.msra.mxu0 0
  %1422 = vmatprep.subr.bf16.mxu0 %v1312
  %1423 = vmatpush1.bf16.msra.mxu0 %v1311
  %1424 = vmatprep.subr.bf16.mxu0 0
  %1425 = vmatpush2.bf16.msra.mxu0 0
  %1426 = vmatprep.subr.bf16.mxu0 0
  %1427 = vmatpush2.bf16.msra.mxu0 0
  %1428 = vmatprep.subr.bf16.mxu0 0
  %1429 = vmatpush2.bf16.msra.mxu0 0
  %1430 = vmatprep.subr.bf16.mxu0 0
  %1431 = vmatpush2.bf16.msra.mxu0 0
  %1432 = vmatprep.subr.bf16.mxu0 0
  %1433 = vmatpush2.bf16.msra.mxu0 0
  %1434 = vmatprep.subr.bf16.mxu0 0
  %1435 = vmatpush2.bf16.msra.mxu0 0
  %1436 = vmatprep.subr.bf16.mxu0 0
  %1437 = vmatpush2.bf16.msra.mxu0 0
  %1438 = vmatprep.subr.bf16.mxu0 0
  %1439 = vmatpush2.bf16.msra.mxu0 0
  %1440 = vmatprep.mubr.bf16.mxu0 0
  %1441 = vmatmul.mubr.bf16.gmra.mxu0 %v1320
  %v1442 = vpop.f32.mrf.mxu0
  %v1443 = vadd.f32 0.0, %v1442
  %v1444 = vpop.f32.mrf.mxu0
  %v1445 = vadd.f32 0.0, %v1444
  %v1446 = vpop.f32.mrf.mxu0
  %v1447 = vadd.f32 0.0, %v1446
  %v1448 = vpop.f32.mrf.mxu0
  %v1449 = vadd.f32 0.0, %v1448
  %1450 = vdwg.mxu0
  %v1451 = vld [vmem:[#allocation4] sm:$0xff]
  %v1452 = vld [vmem:[#allocation4 + $0x8] sm:$0xff]
  %v1453 = vld [vmem:[#allocation4 + $0x10] sm:$0xff]
  %v1454 = vld [vmem:[#allocation4 + $0x18] sm:$0xff]
  %v1455 = vld [vmem:[#allocation4 + $0x20] sm:$0xff]
  %v1456 = vld [vmem:[#allocation4 + $0x28] sm:$0xff]
  %v1457 = vld [vmem:[#allocation4 + $0x30] sm:$0xff]
  %v1458 = vld [vmem:[#allocation4 + $0x38] sm:$0xff]
  %v1459 = vld [vmem:[#allocation4 + $0x40] sm:$0xff]
  %v1460 = vld [vmem:[#allocation4 + $0x48] sm:$0xff]
  %v1461 = vld [vmem:[#allocation4 + $0x50] sm:$0xff]
  %v1462 = vld [vmem:[#allocation4 + $0x58] sm:$0xff]
  %v1463 = vadd.f32 %v1451, %v1357
  %v1464 = vadd.f32 %v1452, %v1359
  %v1465 = vadd.f32 %v1453, %v1400
  %v1466 = vadd.f32 %v1454, %v1402
  %v1467 = vadd.f32 %v1455, %v1443
  %v1468 = vadd.f32 %v1456, %v1445
  %v1469 = vadd.f32 %v1457, %v1361
  %v1470 = vadd.f32 %v1458, %v1363
  %v1471 = vadd.f32 %v1459, %v1404
  %v1472 = vadd.f32 %v1460, %v1406
  %v1473 = vadd.f32 %v1461, %v1447
  %v1474 = vadd.f32 %v1462, %v1449
  %1475 = vst [vmem:[#allocation4] sm:$0xff] %v1463
  %1476 = vst [vmem:[#allocation4 + $0x8] sm:$0xff] %v1464
  %1477 = vst [vmem:[#allocation4 + $0x10] sm:$0xff] %v1465
  %1478 = vst [vmem:[#allocation4 + $0x18] sm:$0xff] %v1466
  %1479 = vst [vmem:[#allocation4 + $0x20] sm:$0xff] %v1467
  %1480 = vst [vmem:[#allocation4 + $0x28] sm:$0xff] %v1468
  %1481 = vst [vmem:[#allocation4 + $0x30] sm:$0xff] %v1469
  %1482 = vst [vmem:[#allocation4 + $0x38] sm:$0xff] %v1470
  %1483 = vst [vmem:[#allocation4 + $0x40] sm:$0xff] %v1471
  %1484 = vst [vmem:[#allocation4 + $0x48] sm:$0xff] %v1472
  %1485 = vst [vmem:[#allocation4 + $0x50] sm:$0xff] %v1473
  %1486 = vst [vmem:[#allocation4 + $0x58] sm:$0xff] %v1474
  %s1487 = scalar_lea.vmem %s0, 56
  %v1488 = vld [vmem:[%s1487] sm:$0xf]
  %v1489 = vld [vmem:[%s1487 + $0x4] sm:$0xf]
  %v1492 = vunpack.c.l.b16 %v1488
  %v1493 = vunpack.c.l.b16 %v1489
  %v1494 = vpack.c.b16 %v1493, %v1492
  %1495 = vrot.lane.b32.xlu0 %v107, 91
  %v1496 = vpop.permute.xlu0 %1495
  %1497 = vrot.lane.b32.xlu0 %v108, 91
  %v1498 = vpop.permute.xlu0 %1497
  %1499 = vrot.lane.b32.xlu0 %v109, 91
  %v1500 = vpop.permute.xlu0 %1499
  %1501 = vrot.lane.b32.xlu0 %v110, 91
  %v1502 = vpop.permute.xlu0 %1501
  %1503 = vrot.lane.b32.xlu0 %v111, 91
  %v1504 = vpop.permute.xlu0 %1503
  %1505 = vrot.lane.b32.xlu0 %v112, 91
  %v1506 = vpop.permute.xlu0 %1505
  %1507 = vrot.lane.b32.xlu0 %v276, 91
  %v1508 = vpop.permute.xlu0 %1507
  %vm1509 = vcmask 744448
  %v1510 = vsel %vm1509, %v1496, %v1498
  %v1511 = vsel %vm1509, %v1498, %v1500
  %v1512 = vsel %vm1509, %v1500, %v1502
  %v1513 = vsel %vm1509, %v1502, %v1504
  %v1514 = vsel %vm1509, %v1504, %v1506
  %v1515 = vsel %vm1509, %v1506, %v1508
  %v1523 = vsel %vm119, %v1494, 0
  %1525 = vmatprep.subr.bf16.mxu0 0
  %1526 = vmatpush1.bf16.msra.mxu0 0
  %1527 = vmatprep.subr.bf16.mxu0 0
  %1528 = vmatpush1.bf16.msra.mxu0 0
  %1529 = vmatprep.subr.bf16.mxu0 0
  %1530 = vmatpush1.bf16.msra.mxu0 0
  %1531 = vmatprep.subr.bf16.mxu0 0
  %1532 = vmatpush1.bf16.msra.mxu0 0
  %1533 = vmatprep.subr.bf16.mxu0 0
  %1534 = vmatpush1.bf16.msra.mxu0 0
  %1535 = vmatprep.subr.bf16.mxu0 0
  %1536 = vmatpush1.bf16.msra.mxu0 0
  %1537 = vmatprep.subr.bf16.mxu0 0
  %1538 = vmatpush1.bf16.msra.mxu0 0
  %1539 = vmatprep.subr.bf16.mxu0 %v1511
  %1540 = vmatpush1.bf16.msra.mxu0 %v1510
  %1541 = vmatprep.subr.bf16.mxu0 0
  %1542 = vmatpush2.bf16.msra.mxu0 0
  %1543 = vmatprep.subr.bf16.mxu0 0
  %1544 = vmatpush2.bf16.msra.mxu0 0
  %1545 = vmatprep.subr.bf16.mxu0 0
  %1546 = vmatpush2.bf16.msra.mxu0 0
  %1547 = vmatprep.subr.bf16.mxu0 0
  %1548 = vmatpush2.bf16.msra.mxu0 0
  %1549 = vmatprep.subr.bf16.mxu0 0
  %1550 = vmatpush2.bf16.msra.mxu0 0
  %1551 = vmatprep.subr.bf16.mxu0 0
  %1552 = vmatpush2.bf16.msra.mxu0 0
  %1553 = vmatprep.subr.bf16.mxu0 0
  %1554 = vmatpush2.bf16.msra.mxu0 0
  %1555 = vmatprep.subr.bf16.mxu0 0
  %1556 = vmatpush2.bf16.msra.mxu0 0
  %1557 = vmatprep.mubr.bf16.mxu0 0
  %1558 = vmatmul.mubr.bf16.gmra.mxu0 %v1523
  %v1559 = vpop.f32.mrf.mxu0
  %v1560 = vadd.f32 0.0, %v1559
  %v1561 = vpop.f32.mrf.mxu0
  %v1562 = vadd.f32 0.0, %v1561
  %v1563 = vpop.f32.mrf.mxu0
  %v1564 = vadd.f32 0.0, %v1563
  %v1565 = vpop.f32.mrf.mxu0
  %v1566 = vadd.f32 0.0, %v1565
  %1567 = vdwg.mxu0
  %1568 = vmatprep.subr.bf16.mxu0 0
  %1569 = vmatpush1.bf16.msra.mxu0 0
  %1570 = vmatprep.subr.bf16.mxu0 0
  %1571 = vmatpush1.bf16.msra.mxu0 0
  %1572 = vmatprep.subr.bf16.mxu0 0
  %1573 = vmatpush1.bf16.msra.mxu0 0
  %1574 = vmatprep.subr.bf16.mxu0 0
  %1575 = vmatpush1.bf16.msra.mxu0 0
  %1576 = vmatprep.subr.bf16.mxu0 0
  %1577 = vmatpush1.bf16.msra.mxu0 0
  %1578 = vmatprep.subr.bf16.mxu0 0
  %1579 = vmatpush1.bf16.msra.mxu0 0
  %1580 = vmatprep.subr.bf16.mxu0 0
  %1581 = vmatpush1.bf16.msra.mxu0 0
  %1582 = vmatprep.subr.bf16.mxu0 %v1513
  %1583 = vmatpush1.bf16.msra.mxu0 %v1512
  %1584 = vmatprep.subr.bf16.mxu0 0
  %1585 = vmatpush2.bf16.msra.mxu0 0
  %1586 = vmatprep.subr.bf16.mxu0 0
  %1587 = vmatpush2.bf16.msra.mxu0 0
  %1588 = vmatprep.subr.bf16.mxu0 0
  %1589 = vmatpush2.bf16.msra.mxu0 0
  %1590 = vmatprep.subr.bf16.mxu0 0
  %1591 = vmatpush2.bf16.msra.mxu0 0
  %1592 = vmatprep.subr.bf16.mxu0 0
  %1593 = vmatpush2.bf16.msra.mxu0 0
  %1594 = vmatprep.subr.bf16.mxu0 0
  %1595 = vmatpush2.bf16.msra.mxu0 0
  %1596 = vmatprep.subr.bf16.mxu0 0
  %1597 = vmatpush2.bf16.msra.mxu0 0
  %1598 = vmatprep.subr.bf16.mxu0 0
  %1599 = vmatpush2.bf16.msra.mxu0 0
  %1600 = vmatprep.mubr.bf16.mxu0 0
  %1601 = vmatmul.mubr.bf16.gmra.mxu0 %v1523
  %v1602 = vpop.f32.mrf.mxu0
  %v1603 = vadd.f32 0.0, %v1602
  %v1604 = vpop.f32.mrf.mxu0
  %v1605 = vadd.f32 0.0, %v1604
  %v1606 = vpop.f32.mrf.mxu0
  %v1607 = vadd.f32 0.0, %v1606
  %v1608 = vpop.f32.mrf.mxu0
  %v1609 = vadd.f32 0.0, %v1608
  %1610 = vdwg.mxu0
  %1611 = vmatprep.subr.bf16.mxu0 0
  %1612 = vmatpush1.bf16.msra.mxu0 0
  %1613 = vmatprep.subr.bf16.mxu0 0
  %1614 = vmatpush1.bf16.msra.mxu0 0
  %1615 = vmatprep.subr.bf16.mxu0 0
  %1616 = vmatpush1.bf16.msra.mxu0 0
  %1617 = vmatprep.subr.bf16.mxu0 0
  %1618 = vmatpush1.bf16.msra.mxu0 0
  %1619 = vmatprep.subr.bf16.mxu0 0
  %1620 = vmatpush1.bf16.msra.mxu0 0
  %1621 = vmatprep.subr.bf16.mxu0 0
  %1622 = vmatpush1.bf16.msra.mxu0 0
  %1623 = vmatprep.subr.bf16.mxu0 0
  %1624 = vmatpush1.bf16.msra.mxu0 0
  %1625 = vmatprep.subr.bf16.mxu0 %v1515
  %1626 = vmatpush1.bf16.msra.mxu0 %v1514
  %1627 = vmatprep.subr.bf16.mxu0 0
  %1628 = vmatpush2.bf16.msra.mxu0 0
  %1629 = vmatprep.subr.bf16.mxu0 0
  %1630 = vmatpush2.bf16.msra.mxu0 0
  %1631 = vmatprep.subr.bf16.mxu0 0
  %1632 = vmatpush2.bf16.msra.mxu0 0
  %1633 = vmatprep.subr.bf16.mxu0 0
  %1634 = vmatpush2.bf16.msra.mxu0 0
  %1635 = vmatprep.subr.bf16.mxu0 0
  %1636 = vmatpush2.bf16.msra.mxu0 0
  %1637 = vmatprep.subr.bf16.mxu0 0
  %1638 = vmatpush2.bf16.msra.mxu0 0
  %1639 = vmatprep.subr.bf16.mxu0 0
  %1640 = vmatpush2.bf16.msra.mxu0 0
  %1641 = vmatprep.subr.bf16.mxu0 0
  %1642 = vmatpush2.bf16.msra.mxu0 0
  %1643 = vmatprep.mubr.bf16.mxu0 0
  %1644 = vmatmul.mubr.bf16.gmra.mxu0 %v1523
  %v1645 = vpop.f32.mrf.mxu0
  %v1646 = vadd.f32 0.0, %v1645
  %v1647 = vpop.f32.mrf.mxu0
  %v1648 = vadd.f32 0.0, %v1647
  %v1649 = vpop.f32.mrf.mxu0
  %v1650 = vadd.f32 0.0, %v1649
  %v1651 = vpop.f32.mrf.mxu0
  %v1652 = vadd.f32 0.0, %v1651
  %1653 = vdwg.mxu0
  %v1654 = vld [vmem:[#allocation4] sm:$0xff]
  %v1655 = vld [vmem:[#allocation4 + $0x8] sm:$0xff]
  %v1656 = vld [vmem:[#allocation4 + $0x10] sm:$0xff]
  %v1657 = vld [vmem:[#allocation4 + $0x18] sm:$0xff]
  %v1658 = vld [vmem:[#allocation4 + $0x20] sm:$0xff]
  %v1659 = vld [vmem:[#allocation4 + $0x28] sm:$0xff]
  %v1660 = vld [vmem:[#allocation4 + $0x30] sm:$0xff]
  %v1661 = vld [vmem:[#allocation4 + $0x38] sm:$0xff]
  %v1662 = vld [vmem:[#allocation4 + $0x40] sm:$0xff]
  %v1663 = vld [vmem:[#allocation4 + $0x48] sm:$0xff]
  %v1664 = vld [vmem:[#allocation4 + $0x50] sm:$0xff]
  %v1665 = vld [vmem:[#allocation4 + $0x58] sm:$0xff]
  %v1666 = vadd.f32 %v1654, %v1560
  %v1667 = vadd.f32 %v1655, %v1562
  %v1668 = vadd.f32 %v1656, %v1603
  %v1669 = vadd.f32 %v1657, %v1605
  %v1670 = vadd.f32 %v1658, %v1646
  %v1671 = vadd.f32 %v1659, %v1648
  %v1672 = vadd.f32 %v1660, %v1564
  %v1673 = vadd.f32 %v1661, %v1566
  %v1674 = vadd.f32 %v1662, %v1607
  %v1675 = vadd.f32 %v1663, %v1609
  %v1676 = vadd.f32 %v1664, %v1650
  %v1677 = vadd.f32 %v1665, %v1652
  %1678 = vst [vmem:[#allocation4] sm:$0xff] %v1666
  %1679 = vst [vmem:[#allocation4 + $0x8] sm:$0xff] %v1667
  %1680 = vst [vmem:[#allocation4 + $0x10] sm:$0xff] %v1668
  %1681 = vst [vmem:[#allocation4 + $0x18] sm:$0xff] %v1669
  %1682 = vst [vmem:[#allocation4 + $0x20] sm:$0xff] %v1670
  %1683 = vst [vmem:[#allocation4 + $0x28] sm:$0xff] %v1671
  %1684 = vst [vmem:[#allocation4 + $0x30] sm:$0xff] %v1672
  %1685 = vst [vmem:[#allocation4 + $0x38] sm:$0xff] %v1673
  %1686 = vst [vmem:[#allocation4 + $0x40] sm:$0xff] %v1674
  %1687 = vst [vmem:[#allocation4 + $0x48] sm:$0xff] %v1675
  %1688 = vst [vmem:[#allocation4 + $0x50] sm:$0xff] %v1676
  %1689 = vst [vmem:[#allocation4 + $0x58] sm:$0xff] %v1677
  %s1690 = scalar_lea.vmem %s0, 64
  %v1691 = vld [vmem:[%s1690] sm:$0xf]
  %v1692 = vld [vmem:[%s1690 + $0x4] sm:$0xf]
  %v1695 = vunpack.c.l.b16 %v1691
  %v1696 = vunpack.c.l.b16 %v1692
  %v1697 = vpack.c.b16 %v1696, %v1695
  %1698 = vrot.lane.b32.xlu0 %v107, 90
  %v1699 = vpop.permute.xlu0 %1698
  %1700 = vrot.lane.b32.xlu0 %v108, 90
  %v1701 = vpop.permute.xlu0 %1700
  %1702 = vrot.lane.b32.xlu0 %v109, 90
  %v1703 = vpop.permute.xlu0 %1702
  %1704 = vrot.lane.b32.xlu0 %v110, 90
  %v1705 = vpop.permute.xlu0 %1704
  %1706 = vrot.lane.b32.xlu0 %v111, 90
  %v1707 = vpop.permute.xlu0 %1706
  %1708 = vrot.lane.b32.xlu0 %v112, 90
  %v1709 = vpop.permute.xlu0 %1708
  %1710 = vrot.lane.b32.xlu0 %v276, 90
  %v1711 = vpop.permute.xlu0 %1710
  %vm1712 = vcmask 736256
  %v1713 = vsel %vm1712, %v1699, %v1701
  %v1714 = vsel %vm1712, %v1701, %v1703
  %v1715 = vsel %vm1712, %v1703, %v1705
  %v1716 = vsel %vm1712, %v1705, %v1707
  %v1717 = vsel %vm1712, %v1707, %v1709
  %v1718 = vsel %vm1712, %v1709, %v1711
  %v1726 = vsel %vm119, %v1697, 0
  %1728 = vmatprep.subr.bf16.mxu0 0
  %1729 = vmatpush1.bf16.msra.mxu0 0
  %1730 = vmatprep.subr.bf16.mxu0 0
  %1731 = vmatpush1.bf16.msra.mxu0 0
  %1732 = vmatprep.subr.bf16.mxu0 0
  %1733 = vmatpush1.bf16.msra.mxu0 0
  %1734 = vmatprep.subr.bf16.mxu0 0
  %1735 = vmatpush1.bf16.msra.mxu0 0
  %1736 = vmatprep.subr.bf16.mxu0 0
  %1737 = vmatpush1.bf16.msra.mxu0 0
  %1738 = vmatprep.subr.bf16.mxu0 0
  %1739 = vmatpush1.bf16.msra.mxu0 0
  %1740 = vmatprep.subr.bf16.mxu0 0
  %1741 = vmatpush1.bf16.msra.mxu0 0
  %1742 = vmatprep.subr.bf16.mxu0 %v1714
  %1743 = vmatpush1.bf16.msra.mxu0 %v1713
  %1744 = vmatprep.subr.bf16.mxu0 0
  %1745 = vmatpush2.bf16.msra.mxu0 0
  %1746 = vmatprep.subr.bf16.mxu0 0
  %1747 = vmatpush2.bf16.msra.mxu0 0
  %1748 = vmatprep.subr.bf16.mxu0 0
  %1749 = vmatpush2.bf16.msra.mxu0 0
  %1750 = vmatprep.subr.bf16.mxu0 0
  %1751 = vmatpush2.bf16.msra.mxu0 0
  %1752 = vmatprep.subr.bf16.mxu0 0
  %1753 = vmatpush2.bf16.msra.mxu0 0
  %1754 = vmatprep.subr.bf16.mxu0 0
  %1755 = vmatpush2.bf16.msra.mxu0 0
  %1756 = vmatprep.subr.bf16.mxu0 0
  %1757 = vmatpush2.bf16.msra.mxu0 0
  %1758 = vmatprep.subr.bf16.mxu0 0
  %1759 = vmatpush2.bf16.msra.mxu0 0
  %1760 = vmatprep.mubr.bf16.mxu0 0
  %1761 = vmatmul.mubr.bf16.gmra.mxu0 %v1726
  %v1762 = vpop.f32.mrf.mxu0
  %v1763 = vadd.f32 0.0, %v1762
  %v1764 = vpop.f32.mrf.mxu0
  %v1765 = vadd.f32 0.0, %v1764
  %v1766 = vpop.f32.mrf.mxu0
  %v1767 = vadd.f32 0.0, %v1766
  %v1768 = vpop.f32.mrf.mxu0
  %v1769 = vadd.f32 0.0, %v1768
  %1770 = vdwg.mxu0
  %1771 = vmatprep.subr.bf16.mxu0 0
  %1772 = vmatpush1.bf16.msra.mxu0 0
  %1773 = vmatprep.subr.bf16.mxu0 0
  %1774 = vmatpush1.bf16.msra.mxu0 0
  %1775 = vmatprep.subr.bf16.mxu0 0
  %1776 = vmatpush1.bf16.msra.mxu0 0
  %1777 = vmatprep.subr.bf16.mxu0 0
  %1778 = vmatpush1.bf16.msra.mxu0 0
  %1779 = vmatprep.subr.bf16.mxu0 0
  %1780 = vmatpush1.bf16.msra.mxu0 0
  %1781 = vmatprep.subr.bf16.mxu0 0
  %1782 = vmatpush1.bf16.msra.mxu0 0
  %1783 = vmatprep.subr.bf16.mxu0 0
  %1784 = vmatpush1.bf16.msra.mxu0 0
  %1785 = vmatprep.subr.bf16.mxu0 %v1716
  %1786 = vmatpush1.bf16.msra.mxu0 %v1715
  %1787 = vmatprep.subr.bf16.mxu0 0
  %1788 = vmatpush2.bf16.msra.mxu0 0
  %1789 = vmatprep.subr.bf16.mxu0 0
  %1790 = vmatpush2.bf16.msra.mxu0 0
  %1791 = vmatprep.subr.bf16.mxu0 0
  %1792 = vmatpush2.bf16.msra.mxu0 0
  %1793 = vmatprep.subr.bf16.mxu0 0
  %1794 = vmatpush2.bf16.msra.mxu0 0
  %1795 = vmatprep.subr.bf16.mxu0 0
  %1796 = vmatpush2.bf16.msra.mxu0 0
  %1797 = vmatprep.subr.bf16.mxu0 0
  %1798 = vmatpush2.bf16.msra.mxu0 0
  %1799 = vmatprep.subr.bf16.mxu0 0
  %1800 = vmatpush2.bf16.msra.mxu0 0
  %1801 = vmatprep.subr.bf16.mxu0 0
  %1802 = vmatpush2.bf16.msra.mxu0 0
  %1803 = vmatprep.mubr.bf16.mxu0 0
  %1804 = vmatmul.mubr.bf16.gmra.mxu0 %v1726
  %v1805 = vpop.f32.mrf.mxu0
  %v1806 = vadd.f32 0.0, %v1805
  %v1807 = vpop.f32.mrf.mxu0
  %v1808 = vadd.f32 0.0, %v1807
  %v1809 = vpop.f32.mrf.mxu0
  %v1810 = vadd.f32 0.0, %v1809
  %v1811 = vpop.f32.mrf.mxu0
  %v1812 = vadd.f32 0.0, %v1811
  %1813 = vdwg.mxu0
  %1814 = vmatprep.subr.bf16.mxu0 0
  %1815 = vmatpush1.bf16.msra.mxu0 0
  %1816 = vmatprep.subr.bf16.mxu0 0
  %1817 = vmatpush1.bf16.msra.mxu0 0
  %1818 = vmatprep.subr.bf16.mxu0 0
  %1819 = vmatpush1.bf16.msra.mxu0 0
  %1820 = vmatprep.subr.bf16.mxu0 0
  %1821 = vmatpush1.bf16.msra.mxu0 0
  %1822 = vmatprep.subr.bf16.mxu0 0
  %1823 = vmatpush1.bf16.msra.mxu0 0
  %1824 = vmatprep.subr.bf16.mxu0 0
  %1825 = vmatpush1.bf16.msra.mxu0 0
  %1826 = vmatprep.subr.bf16.mxu0 0
  %1827 = vmatpush1.bf16.msra.mxu0 0
  %1828 = vmatprep.subr.bf16.mxu0 %v1718
  %1829 = vmatpush1.bf16.msra.mxu0 %v1717
  %1830 = vmatprep.subr.bf16.mxu0 0
  %1831 = vmatpush2.bf16.msra.mxu0 0
  %1832 = vmatprep.subr.bf16.mxu0 0
  %1833 = vmatpush2.bf16.msra.mxu0 0
  %1834 = vmatprep.subr.bf16.mxu0 0
  %1835 = vmatpush2.bf16.msra.mxu0 0
  %1836 = vmatprep.subr.bf16.mxu0 0
  %1837 = vmatpush2.bf16.msra.mxu0 0
  %1838 = vmatprep.subr.bf16.mxu0 0
  %1839 = vmatpush2.bf16.msra.mxu0 0
  %1840 = vmatprep.subr.bf16.mxu0 0
  %1841 = vmatpush2.bf16.msra.mxu0 0
  %1842 = vmatprep.subr.bf16.mxu0 0
  %1843 = vmatpush2.bf16.msra.mxu0 0
  %1844 = vmatprep.subr.bf16.mxu0 0
  %1845 = vmatpush2.bf16.msra.mxu0 0
  %1846 = vmatprep.mubr.bf16.mxu0 0
  %1847 = vmatmul.mubr.bf16.gmra.mxu0 %v1726
  %v1848 = vpop.f32.mrf.mxu0
  %v1849 = vadd.f32 0.0, %v1848
  %v1850 = vpop.f32.mrf.mxu0
  %v1851 = vadd.f32 0.0, %v1850
  %v1852 = vpop.f32.mrf.mxu0
  %v1853 = vadd.f32 0.0, %v1852
  %v1854 = vpop.f32.mrf.mxu0
  %v1855 = vadd.f32 0.0, %v1854
  %1856 = vdwg.mxu0
  %v1857 = vld [vmem:[#allocation4] sm:$0xff]
  %v1858 = vld [vmem:[#allocation4 + $0x8] sm:$0xff]
  %v1859 = vld [vmem:[#allocation4 + $0x10] sm:$0xff]
  %v1860 = vld [vmem:[#allocation4 + $0x18] sm:$0xff]
  %v1861 = vld [vmem:[#allocation4 + $0x20] sm:$0xff]
  %v1862 = vld [vmem:[#allocation4 + $0x28] sm:$0xff]
  %v1863 = vld [vmem:[#allocation4 + $0x30] sm:$0xff]
  %v1864 = vld [vmem:[#allocation4 + $0x38] sm:$0xff]
  %v1865 = vld [vmem:[#allocation4 + $0x40] sm:$0xff]
  %v1866 = vld [vmem:[#allocation4 + $0x48] sm:$0xff]
  %v1867 = vld [vmem:[#allocation4 + $0x50] sm:$0xff]
  %v1868 = vld [vmem:[#allocation4 + $0x58] sm:$0xff]
  %v1869 = vadd.f32 %v1857, %v1763
  %v1870 = vadd.f32 %v1858, %v1765
  %v1871 = vadd.f32 %v1859, %v1806
  %v1872 = vadd.f32 %v1860, %v1808
  %v1873 = vadd.f32 %v1861, %v1849
  %v1874 = vadd.f32 %v1862, %v1851
  %v1875 = vadd.f32 %v1863, %v1767
  %v1876 = vadd.f32 %v1864, %v1769
  %v1877 = vadd.f32 %v1865, %v1810
  %v1878 = vadd.f32 %v1866, %v1812
  %v1879 = vadd.f32 %v1867, %v1853
  %v1880 = vadd.f32 %v1868, %v1855
  %1881 = vst [vmem:[#allocation4] sm:$0xff] %v1869
  %1882 = vst [vmem:[#allocation4 + $0x8] sm:$0xff] %v1870
  %1883 = vst [vmem:[#allocation4 + $0x10] sm:$0xff] %v1871
  %1884 = vst [vmem:[#allocation4 + $0x18] sm:$0xff] %v1872
  %1885 = vst [vmem:[#allocation4 + $0x20] sm:$0xff] %v1873
  %1886 = vst [vmem:[#allocation4 + $0x28] sm:$0xff] %v1874
  %1887 = vst [vmem:[#allocation4 + $0x30] sm:$0xff] %v1875
  %1888 = vst [vmem:[#allocation4 + $0x38] sm:$0xff] %v1876
  %1889 = vst [vmem:[#allocation4 + $0x40] sm:$0xff] %v1877
  %1890 = vst [vmem:[#allocation4 + $0x48] sm:$0xff] %v1878
  %1891 = vst [vmem:[#allocation4 + $0x50] sm:$0xff] %v1879
  %1892 = vst [vmem:[#allocation4 + $0x58] sm:$0xff] %v1880
  %v1893 = vld [vmem:[#allocation4] sm:$0xff]
  %v1894 = vld [vmem:[#allocation4 + $0x8] sm:$0xff]
  %v1895 = vld [vmem:[#allocation4 + $0x10] sm:$0xff]
  %v1896 = vld [vmem:[#allocation4 + $0x18] sm:$0xff]
  %v1897 = vld [vmem:[#allocation4 + $0x20] sm:$0xff]
  %v1898 = vld [vmem:[#allocation4 + $0x28] sm:$0xff]
  %v1899 = vld [vmem:[#allocation4 + $0x30] sm:$0xff]
  %v1900 = vld [vmem:[#allocation4 + $0x38] sm:$0xff]
  %v1901 = vld [vmem:[#allocation4 + $0x40] sm:$0xff]
  %v1902 = vld [vmem:[#allocation4 + $0x48] sm:$0xff]
  %v1903 = vld [vmem:[#allocation4 + $0x50] sm:$0xff]
  %v1904 = vld [vmem:[#allocation4 + $0x58] sm:$0xff]
  %v1905 = vtanh.pop %v1893
  %v1906 = vtanh.pop %v1894
  %v1907 = vtanh.pop %v1895
  %v1908 = vtanh.pop %v1896
  %v1909 = vtanh.pop %v1897
  %v1910 = vtanh.pop %v1898
  %v1911 = vtanh.pop %v1899
  %v1912 = vtanh.pop %v1900
  %v1913 = vtanh.pop %v1901
  %v1914 = vtanh.pop %v1902
  %v1915 = vtanh.pop %v1903
  %v1916 = vtanh.pop %v1904
  %1917 = vst [vmem:[%s2] sm:$0xff] %v1905
  %1918 = vst [vmem:[%s2 + $0x8] sm:$0xff] %v1906
  %1919 = vst [vmem:[%s2 + $0x10] sm:$0xff] %v1907
  %1920 = vst [vmem:[%s2 + $0x18] sm:$0xff] %v1908
  %1921 = vst [vmem:[%s2 + $0x20] sm:$0xff] %v1909
  %1922 = vst [vmem:[%s2 + $0x28] sm:$0xff] %v1910
  %1923 = vst [vmem:[%s2 + $0x30] sm:$0xff] %v1911
  %1924 = vst [vmem:[%s2 + $0x38] sm:$0xff] %v1912
  %1925 = vst [vmem:[%s2 + $0x40] sm:$0xff] %v1913
  %1926 = vst [vmem:[%s2 + $0x48] sm:$0xff] %v1914
  %1927 = vst [vmem:[%s2 + $0x50] sm:$0xff] %v1915
  %1928 = vst [vmem:[%s2 + $0x58] sm:$0xff] %v1916
  // Predicated region
  $region40: #{dcgan_g_resizedconv_forward.5} parent=0 // pred_check
    _
  $region41: #{dcgan_g_resizedconv_forward.5} parent=0 // pred_check_branch
    %1930 = sbr.rel (0) target = $region43
  $region42: #{dcgan_g_resizedconv_forward.5} parent=0 // pred_region
    _
  $region43: #{dcgan_g_resizedconv_forward.5} parent=0 // pred_fallthru
    _
  // Predicated region
  $region44: #{dcgan_g_resizedconv_forward.5} parent=0 // pred_check
    _
  $region45: #{dcgan_g_resizedconv_forward.5} parent=0 // pred_check_branch
    %1932 = sbr.rel (0) target = $region47
  $region46: #{dcgan_g_resizedconv_forward.5} parent=0 // pred_region
    _
  $region47: #{dcgan_g_resizedconv_forward.5} parent=0 // pred_fallthru
    _
  %1933 = vsyncmov [#allocation3]
  %s1934 = vpop.sfrf %1933
  %p1935 = scmp.eq.s32.totalorder %s1934, 0
  %p1936 = pneg %p1935
  %1938 = shalt.err (%p1936)

</llo_original>
